<compile_context>
chip_gen: v6e
topology: v6e:2x2x1
jax: 0.10.0
libtpu: 0.0.40
codegen_flags: <defaults>
</compile_context>

<pallas_src>
import numpy as np
import jax
import jax.numpy as jnp
from jax.experimental import pallas as pl
from jax.experimental.pallas import tpu as pltpu

EPS = 1e-5

# ------------------------- model hyper-parameters ---------------------------
LATENT = 16
NUM_PARAM = 4          # H
WINDOW = 32            # W  (divisible by 16)
F1, F2, F3, F4 = 8, 16, 32, 64
W16, W8, W4, W2 = WINDOW // 16, WINDOW // 8, WINDOW // 4, WINDOW // 2
METRIC = "BCE"         # -> sigmoid output activation


# ------------------------------ Pallas kernel -------------------------------
def _fs(shape):
    nd = len(shape)
    return pl.BlockSpec(shape, lambda i, _nd=nd: (0,) * _nd)


def _decoder_kernel(x_ref, fcw_ref, fcb_ref, w1_ref, b1_ref,
                    g1_ref, be1_ref, pj1_ref,
                    op2_ref, cb2_ref, g2_ref, be2_ref, pj2_ref,
                    op3_ref, cb3_ref, g3_ref, be3_ref, pj3_ref,
                    op4_ref, cb4_ref, g4_ref, be4_ref, pj4_ref,
                    op5_ref, lastb_ref, o_ref):

    def mm(a, b):
        return jnp.dot(a, b, preferred_element_type=jnp.float32)

    def bn_relu(x, pj, gamma, beta):
        # pj broadcasts per-channel averages (over the P*W positions) back to columns;
        # combined with the row (batch) mean this is exact BatchNorm2d batch statistics.
        mu = jnp.mean(mm(x, pj), axis=0, keepdims=True)          # per-channel mean
        xc = x - mu
        var = jnp.mean(mm(xc * xc, pj), axis=0, keepdims=True)   # biased variance
        return jnp.maximum(xc * jax.lax.rsqrt(var + EPS) * gamma + beta, 0.0)

    # ---- shared stem: fc -> relu -> deconv1_1 (1x1 spatial => matmul) -> bn1 -> relu
    h = jnp.maximum(mm(x_ref[...], fcw_ref[...]) + fcb_ref[...], 0.0)    # (B, 64)
    h = mm(h, w1_ref[...]) + b1_ref[...]                                 # (B, 256)
    h = bn_relu(h, pj1_ref[...], g1_ref[...], be1_ref[...])              # (B, 256)

    # ---- three branches (kernel widths 3/5/7), fully unrolled, accumulated 3->1 mix
    acc = jnp.zeros(o_ref.shape, jnp.float32)
    for br in range(3):
        y = mm(h, op2_ref[br]) + cb2_ref[br]                             # up1 + deconv2
        y = bn_relu(y, pj2_ref[...], g2_ref[...], be2_ref[...])          # (B, 256)
        y = mm(y, op3_ref[br]) + cb3_ref[br]                             # up2 + deconv3
        y = bn_relu(y, pj3_ref[...], g3_ref[...], be3_ref[...])          # (B, 256)
        y = mm(y, op4_ref[br]) + cb4_ref[br]                             # up3 + deconv4
        y = bn_relu(y, pj4_ref[...], g4_ref[...], be4_ref[...])          # (B, 64)
        acc = acc + mm(y, op5_ref[br])                                   # up4 * convlast_w[br]

    o_ref[...] = jax.nn.sigmoid(acc + lastb_ref[...])                    # BCE metric (B, 128)


# -------------------- host-side (one-time) weight folding --------------------
def bilinear_matrix(w_in, w_out):
    """nn.Upsample(mode='bilinear', align_corners=False) along W as a (w_in, w_out) matrix."""
    M = np.zeros((w_in, w_out), np.float32)
    scale = w_in / w_out
    for j in range(w_out):
        src = (j + 0.5) * scale - 0.5
        src = max(src, 0.0)
        i0 = min(int(np.floor(src)), w_in - 1)
        i1 = min(i0 + 1, w_in - 1)
        l1 = src - i0
        M[i0, j] += 1.0 - l1
        M[i1, j] += l1
    return M


def deconv_taps(w_ct):
    """ConvTranspose2d weight (Cin, Cout, 1, k) -> cross-correlation taps (k, Cin, Cout)."""
    return np.transpose(w_ct[:, :, 0, ::-1], (2, 0, 1))


def conv_w_block(taps, Wl):
    """Stride-1 'same' conv along W as a (Wl*Cin, Wl*Cout) matrix (columns = (w, c))."""
    k, Cin, Cout = taps.shape
    pad = (k - 1) // 2
    A = np.zeros((Wl * Cin, Wl * Cout), np.float32)
    for wo in range(Wl):
        for d in range(k):
            wi = wo + d - pad
            if 0 <= wi < Wl:
                A[wi * Cin:(wi + 1) * Cin, wo * Cout:(wo + 1) * Cout] += taps[d]
    return A


def conv_full(taps, Wl, P=NUM_PARAM):
    return np.kron(np.eye(P, dtype=np.float32), conv_w_block(taps, Wl))


def up_full(U, C, P=NUM_PARAM):
    """W-bilinear upsample on the flattened (p, w, c) column space (H upsample is identity)."""
    return np.kron(np.eye(P, dtype=np.float32), np.kron(U, np.eye(C, dtype=np.float32)))


def bn_proj(N, C):
    """Projection that averages the N/C positions of each channel and broadcasts back."""
    idx = np.arange(N)
    return (idx[:, None] % C == idx[None, :] % C).astype(np.float32) * (C / N)


def init_params(key):
    ks = iter(jax.random.split(key, 40))

    def nrm(shape, scale=0.1):
        return np.asarray(scale * jax.random.normal(next(ks), shape, jnp.float32))

    p = {}
    # fc: Linear(latent, F4) stored as (latent, F4)
    p["fc_w"] = nrm((LATENT, F4))
    p["fc_b"] = nrm((F4,))[None, :]

    # deconv1_1: ConvTranspose2d(F4, F3, (P, W/16)); 1x1 input spatial -> pure matmul
    wd1 = nrm((F4, F3, NUM_PARAM, W16))
    bd1 = nrm((F3,))
    p["w1"] = np.transpose(wd1, (0, 2, 3, 1)).reshape(F4, NUM_PARAM * W16 * F3)
    p["b1"] = np.tile(bd1, NUM_PARAM * W16)[None, :]

    # batch-norm affine params (tiled to column layout) + per-channel pooling projections
    def bn_par(c):
        return 1.0 + nrm((c,), 0.05), nrm((c,), 0.05)
    (g1, bb1), (g2, bb2), (g3, bb3), (g4, bb4) = bn_par(F3), bn_par(F2), bn_par(F1), bn_par(1)
    p["bn1_g"] = np.tile(g1, NUM_PARAM * W16)[None, :]; p["bn1_b"] = np.tile(bb1, NUM_PARAM * W16)[None, :]
    p["bn1_pj"] = bn_proj(NUM_PARAM * W16 * F3, F3)
    p["bn2_g"] = np.tile(g2, NUM_PARAM * W8)[None, :];  p["bn2_b"] = np.tile(bb2, NUM_PARAM * W8)[None, :]
    p["bn2_pj"] = bn_proj(NUM_PARAM * W8 * F2, F2)
    p["bn3_g"] = np.tile(g3, NUM_PARAM * W4)[None, :];  p["bn3_b"] = np.tile(bb3, NUM_PARAM * W4)[None, :]
    p["bn3_pj"] = bn_proj(NUM_PARAM * W4 * F1, F1)
    p["bn4_g"] = np.tile(g4, NUM_PARAM * W2)[None, :];  p["bn4_b"] = np.tile(bb4, NUM_PARAM * W2)[None, :]
    p["bn4_pj"] = bn_proj(NUM_PARAM * W2 * 1, 1)

    # bilinear upsample matrices (W axis only; H is identity since H == num_param)
    U1, U2, U3, U4 = (bilinear_matrix(W16, W8), bilinear_matrix(W8, W4),
                      bilinear_matrix(W4, W2), bilinear_matrix(W2, WINDOW))

    # convlast: Conv2d(3, 1, 1x1)
    lw = nrm((3,))
    lb = nrm((1,))

    # per-branch folded stage operators (fold previous upsample into the next conv)
    op2, cb2, op3, cb3, op4, cb4, op5 = [], [], [], [], [], [], []
    for kk in (3, 5, 7):
        t2 = deconv_taps(nrm((F3, F2, 1, kk))); b2 = nrm((F2,))
        t3 = deconv_taps(nrm((F2, F1, 1, kk))); b3 = nrm((F1,))
        t4 = deconv_taps(nrm((F1, 1, 1, kk)));  b4 = nrm((1,))
        op2.append(up_full(U1, F3) @ conv_full(t2, W8)); cb2.append(np.tile(b2, NUM_PARAM * W8)[None, :])
        op3.append(up_full(U2, F2) @ conv_full(t3, W4)); cb3.append(np.tile(b3, NUM_PARAM * W4)[None, :])
        op4.append(up_full(U3, F1) @ conv_full(t4, W2)); cb4.append(np.tile(b4, NUM_PARAM * W2)[None, :])
    for br in range(3):
        op5.append(up_full(U4, 1) * lw[br])              # fold up4 with the 1x1 conv weight

    p["op2"] = np.stack(op2); p["cb2"] = np.stack(cb2)
    p["op3"] = np.stack(op3); p["cb3"] = np.stack(cb3)
    p["op4"] = np.stack(op4); p["cb4"] = np.stack(cb4)
    p["op5"] = np.stack(op5)
    p["last_b"] = np.full((1, NUM_PARAM * WINDOW), float(lb[0]), np.float32)

    return {k: jnp.asarray(v, jnp.float32) for k, v in p.items()}


# ------------------------------- forward -------------------------------------
@jax.jit
def decoder_forward(x, params):
    B = x.shape[0]
    p = params
    operands = [x, p["fc_w"], p["fc_b"], p["w1"], p["b1"],
                p["bn1_g"], p["bn1_b"], p["bn1_pj"],
                p["op2"], p["cb2"], p["bn2_g"], p["bn2_b"], p["bn2_pj"],
                p["op3"], p["cb3"], p["bn3_g"], p["bn3_b"], p["bn3_pj"],
                p["op4"], p["cb4"], p["bn4_g"], p["bn4_b"], p["bn4_pj"],
                p["op5"], p["last_b"]]
    out = pl.pallas_call(
        _decoder_kernel,
        out_shape=jax.ShapeDtypeStruct((B, NUM_PARAM * WINDOW), jnp.float32),
        grid=(1,),
        in_specs=[_fs(a.shape) for a in operands],
        out_specs=_fs((B, NUM_PARAM * WINDOW)),
        compiler_params=pltpu.CompilerParams(dimension_semantics=("arbitrary",)),
    )(*operands)
    return out.reshape(B, NUM_PARAM, WINDOW)


# --------------------------------- main ---------------------------------------
if __name__ == "__main__":
    key = jax.random.PRNGKey(0)
    k_in, k_par = jax.random.split(key)
    params = init_params(k_par)
    x = jax.random.normal(k_in, (2, LATENT), jnp.float32)

    out = jax.block_until_ready(decoder_forward(x, params))

    assert out.shape == (2, NUM_PARAM, WINDOW), out.shape
    assert bool(jnp.all(jnp.isfinite(out)))
    assert bool(jnp.all((out >= 0.0) & (out <= 1.0)))   # sigmoid range (metric='BCE')
    print("KERNEL_OK")
</pallas_src>

<mosaic_0001>
module attributes {stable_mosaic.version = 11 : i64} {
  func.func @_decoder_kernel(%arg0: i32, %arg1: memref<2x16xf32, #tpu.memory_space<vmem>>, %arg2: memref<16x64xf32, #tpu.memory_space<vmem>>, %arg3: memref<1x64xf32, #tpu.memory_space<vmem>>, %arg4: memref<64x256xf32, #tpu.memory_space<vmem>>, %arg5: memref<1x256xf32, #tpu.memory_space<vmem>>, %arg6: memref<1x256xf32, #tpu.memory_space<vmem>>, %arg7: memref<1x256xf32, #tpu.memory_space<vmem>>, %arg8: memref<256x256xf32, #tpu.memory_space<vmem>>, %arg9: memref<3x256x256xf32, #tpu.memory_space<vmem>>, %arg10: memref<3x1x256xf32, #tpu.memory_space<vmem>>, %arg11: memref<1x256xf32, #tpu.memory_space<vmem>>, %arg12: memref<1x256xf32, #tpu.memory_space<vmem>>, %arg13: memref<256x256xf32, #tpu.memory_space<vmem>>, %arg14: memref<3x256x256xf32, #tpu.memory_space<vmem>>, %arg15: memref<3x1x256xf32, #tpu.memory_space<vmem>>, %arg16: memref<1x256xf32, #tpu.memory_space<vmem>>, %arg17: memref<1x256xf32, #tpu.memory_space<vmem>>, %arg18: memref<256x256xf32, #tpu.memory_space<vmem>>, %arg19: memref<3x256x64xf32, #tpu.memory_space<vmem>>, %arg20: memref<3x1x64xf32, #tpu.memory_space<vmem>>, %arg21: memref<1x64xf32, #tpu.memory_space<vmem>>, %arg22: memref<1x64xf32, #tpu.memory_space<vmem>>, %arg23: memref<64x64xf32, #tpu.memory_space<vmem>>, %arg24: memref<3x64x128xf32, #tpu.memory_space<vmem>>, %arg25: memref<1x128xf32, #tpu.memory_space<vmem>>, %arg26: memref<2x128xf32, #tpu.memory_space<vmem>>) attributes {dimension_semantics = [#tpu.dimension_semantics<arbitrary>], iteration_bounds = array<i64: 1>, scalar_prefetch = 0 : i64, scratch_operands = 0 : i64, tpu.core_type = #tpu.core_type<tc>, window_params = [{pipeline_mode = #tpu.pipeline_mode<synchronous>, transform_indices = @transform_0, window_bounds = array<i64: 2, 16>}, {pipeline_mode = #tpu.pipeline_mode<synchronous>, transform_indices = @transform_1, window_bounds = array<i64: 16, 64>}, {pipeline_mode = #tpu.pipeline_mode<synchronous>, transform_indices = @transform_2, window_bounds = array<i64: 1, 64>}, {pipeline_mode = #tpu.pipeline_mode<synchronous>, transform_indices = @transform_3, window_bounds = array<i64: 64, 256>}, {pipeline_mode = #tpu.pipeline_mode<synchronous>, transform_indices = @transform_4, window_bounds = array<i64: 1, 256>}, {pipeline_mode = #tpu.pipeline_mode<synchronous>, transform_indices = @transform_5, window_bounds = array<i64: 1, 256>}, {pipeline_mode = #tpu.pipeline_mode<synchronous>, transform_indices = @transform_6, window_bounds = array<i64: 1, 256>}, {pipeline_mode = #tpu.pipeline_mode<synchronous>, transform_indices = @transform_7, window_bounds = array<i64: 256, 256>}, {pipeline_mode = #tpu.pipeline_mode<synchronous>, transform_indices = @transform_8, window_bounds = array<i64: 3, 256, 256>}, {pipeline_mode = #tpu.pipeline_mode<synchronous>, transform_indices = @transform_9, window_bounds = array<i64: 3, 1, 256>}, {pipeline_mode = #tpu.pipeline_mode<synchronous>, transform_indices = @transform_10, window_bounds = array<i64: 1, 256>}, {pipeline_mode = #tpu.pipeline_mode<synchronous>, transform_indices = @transform_11, window_bounds = array<i64: 1, 256>}, {pipeline_mode = #tpu.pipeline_mode<synchronous>, transform_indices = @transform_12, window_bounds = array<i64: 256, 256>}, {pipeline_mode = #tpu.pipeline_mode<synchronous>, transform_indices = @transform_13, window_bounds = array<i64: 3, 256, 256>}, {pipeline_mode = #tpu.pipeline_mode<synchronous>, transform_indices = @transform_14, window_bounds = array<i64: 3, 1, 256>}, {pipeline_mode = #tpu.pipeline_mode<synchronous>, transform_indices = @transform_15, window_bounds = array<i64: 1, 256>}, {pipeline_mode = #tpu.pipeline_mode<synchronous>, transform_indices = @transform_16, window_bounds = array<i64: 1, 256>}, {pipeline_mode = #tpu.pipeline_mode<synchronous>, transform_indices = @transform_17, window_bounds = array<i64: 256, 256>}, {pipeline_mode = #tpu.pipeline_mode<synchronous>, transform_indices = @transform_18, window_bounds = array<i64: 3, 256, 64>}, {pipeline_mode = #tpu.pipeline_mode<synchronous>, transform_indices = @transform_19, window_bounds = array<i64: 3, 1, 64>}, {pipeline_mode = #tpu.pipeline_mode<synchronous>, transform_indices = @transform_20, window_bounds = array<i64: 1, 64>}, {pipeline_mode = #tpu.pipeline_mode<synchronous>, transform_indices = @transform_21, window_bounds = array<i64: 1, 64>}, {pipeline_mode = #tpu.pipeline_mode<synchronous>, transform_indices = @transform_22, window_bounds = array<i64: 64, 64>}, {pipeline_mode = #tpu.pipeline_mode<synchronous>, transform_indices = @transform_23, window_bounds = array<i64: 3, 64, 128>}, {pipeline_mode = #tpu.pipeline_mode<synchronous>, transform_indices = @transform_24, window_bounds = array<i64: 1, 128>}, {pipeline_mode = #tpu.pipeline_mode<synchronous>, transform_indices = @transform_25, window_bounds = array<i64: 2, 128>}]} {
    %c0 = arith.constant 0 : index
    %c0_0 = arith.constant 0 : index
    %0 = vector.load %arg1[%c0, %c0_0] : memref<2x16xf32, #tpu.memory_space<vmem>>, vector<2x16xf32>
    %c0_1 = arith.constant 0 : index
    %c0_2 = arith.constant 0 : index
    %1 = vector.load %arg2[%c0_1, %c0_2] : memref<16x64xf32, #tpu.memory_space<vmem>>, vector<16x64xf32>
    %cst = arith.constant dense<0.000000e+00> : vector<2x64xf32>
    %2 = tpu.matmul %0, %1, %cst {dimension_numbers = #tpu.dot_dimension_numbers<[1], [0], [0], [1], [0, 0, 1, 1], [], []>} : vector<2x16xf32>, vector<16x64xf32>, vector<2x64xf32> -> vector<2x64xf32>
    %c0_3 = arith.constant 0 : index
    %c0_4 = arith.constant 0 : index
    %3 = vector.load %arg3[%c0_3, %c0_4] : memref<1x64xf32, #tpu.memory_space<vmem>>, vector<1x64xf32>
    %4 = vector.broadcast %3 : vector<1x64xf32> to vector<2x64xf32>
    %5 = arith.addf %2, %4 : vector<2x64xf32>
    %cst_5 = arith.constant 0.000000e+00 : f32
    %6 = vector.broadcast %cst_5 : f32 to vector<2x64xf32>
    %7 = arith.maximumf %5, %6 : vector<2x64xf32>
    %c0_6 = arith.constant 0 : index
    %c0_7 = arith.constant 0 : index
    %8 = vector.load %arg4[%c0_6, %c0_7] : memref<64x256xf32, #tpu.memory_space<vmem>>, vector<64x256xf32>
    %cst_8 = arith.constant dense<0.000000e+00> : vector<2x256xf32>
    %9 = tpu.matmul %7, %8, %cst_8 {dimension_numbers = #tpu.dot_dimension_numbers<[1], [0], [0], [1], [0, 0, 1, 1], [], []>} : vector<2x64xf32>, vector<64x256xf32>, vector<2x256xf32> -> vector<2x256xf32>
    %c0_9 = arith.constant 0 : index
    %c0_10 = arith.constant 0 : index
    %10 = vector.load %arg5[%c0_9, %c0_10] : memref<1x256xf32, #tpu.memory_space<vmem>>, vector<1x256xf32>
    %11 = vector.broadcast %10 : vector<1x256xf32> to vector<2x256xf32>
    %12 = arith.addf %9, %11 : vector<2x256xf32>
    %c0_11 = arith.constant 0 : index
    %c0_12 = arith.constant 0 : index
    %13 = vector.load %arg8[%c0_11, %c0_12] : memref<256x256xf32, #tpu.memory_space<vmem>>, vector<256x256xf32>
    %c0_13 = arith.constant 0 : index
    %c0_14 = arith.constant 0 : index
    %14 = vector.load %arg6[%c0_13, %c0_14] : memref<1x256xf32, #tpu.memory_space<vmem>>, vector<1x256xf32>
    %c0_15 = arith.constant 0 : index
    %c0_16 = arith.constant 0 : index
    %15 = vector.load %arg7[%c0_15, %c0_16] : memref<1x256xf32, #tpu.memory_space<vmem>>, vector<1x256xf32>
    %cst_17 = arith.constant dense<0.000000e+00> : vector<2x256xf32>
    %16 = tpu.matmul %12, %13, %cst_17 {dimension_numbers = #tpu.dot_dimension_numbers<[1], [0], [0], [1], [0, 0, 1, 1], [], []>} : vector<2x256xf32>, vector<256x256xf32>, vector<2x256xf32> -> vector<2x256xf32>
    %cst_18 = arith.constant dense<0.000000e+00> : vector<256xf32>
    %17 = vector.multi_reduction <add>, %16, %cst_18 [0] : vector<2x256xf32> to vector<256xf32>
    %18 = vector.shape_cast %17 : vector<256xf32> to vector<1x256xf32>
    %cst_19 = arith.constant 2.000000e+00 : f32
    %19 = vector.broadcast %cst_19 : f32 to vector<1x256xf32>
    %20 = arith.divf %18, %19 : vector<1x256xf32>
    %21 = vector.broadcast %20 : vector<1x256xf32> to vector<2x256xf32>
    %22 = arith.subf %12, %21 : vector<2x256xf32>
    %23 = arith.mulf %22, %22 : vector<2x256xf32>
    %cst_20 = arith.constant dense<0.000000e+00> : vector<2x256xf32>
    %24 = tpu.matmul %23, %13, %cst_20 {dimension_numbers = #tpu.dot_dimension_numbers<[1], [0], [0], [1], [0, 0, 1, 1], [], []>} : vector<2x256xf32>, vector<256x256xf32>, vector<2x256xf32> -> vector<2x256xf32>
    %cst_21 = arith.constant dense<0.000000e+00> : vector<256xf32>
    %25 = vector.multi_reduction <add>, %24, %cst_21 [0] : vector<2x256xf32> to vector<256xf32>
    %26 = vector.shape_cast %25 : vector<256xf32> to vector<1x256xf32>
    %cst_22 = arith.constant 2.000000e+00 : f32
    %27 = vector.broadcast %cst_22 : f32 to vector<1x256xf32>
    %28 = arith.divf %26, %27 : vector<1x256xf32>
    %cst_23 = arith.constant 9.99999974E-6 : f32
    %29 = vector.broadcast %cst_23 : f32 to vector<1x256xf32>
    %30 = arith.addf %28, %29 : vector<1x256xf32>
    %31 = math.rsqrt %30 : vector<1x256xf32>
    %32 = vector.broadcast %31 : vector<1x256xf32> to vector<2x256xf32>
    %33 = arith.mulf %22, %32 : vector<2x256xf32>
    %34 = vector.broadcast %14 : vector<1x256xf32> to vector<2x256xf32>
    %35 = arith.mulf %33, %34 : vector<2x256xf32>
    %36 = vector.broadcast %15 : vector<1x256xf32> to vector<2x256xf32>
    %37 = arith.addf %35, %36 : vector<2x256xf32>
    %cst_24 = arith.constant 0.000000e+00 : f32
    %38 = vector.broadcast %cst_24 : f32 to vector<2x256xf32>
    %39 = arith.maximumf %37, %38 : vector<2x256xf32>
    %cst_25 = arith.constant 0.000000e+00 : f32
    %40 = vector.broadcast %cst_25 : f32 to vector<2x128xf32>
    %c0_26 = arith.constant 0 : index
    %c0_27 = arith.constant 0 : index
    %c0_28 = arith.constant 0 : index
    %41 = vector.load %arg9[%c0_26, %c0_27, %c0_28] : memref<3x256x256xf32, #tpu.memory_space<vmem>>, vector<1x256x256xf32>
    %42 = vector.shape_cast %41 : vector<1x256x256xf32> to vector<256x256xf32>
    %cst_29 = arith.constant dense<0.000000e+00> : vector<2x256xf32>
    %43 = tpu.matmul %39, %42, %cst_29 {dimension_numbers = #tpu.dot_dimension_numbers<[1], [0], [0], [1], [0, 0, 1, 1], [], []>} : vector<2x256xf32>, vector<256x256xf32>, vector<2x256xf32> -> vector<2x256xf32>
    %c0_30 = arith.constant 0 : index
    %c0_31 = arith.constant 0 : index
    %c0_32 = arith.constant 0 : index
    %44 = vector.load %arg10[%c0_30, %c0_31, %c0_32] : memref<3x1x256xf32, #tpu.memory_space<vmem>>, vector<1x1x256xf32>
    %45 = vector.shape_cast %44 : vector<1x1x256xf32> to vector<1x256xf32>
    %46 = vector.broadcast %45 : vector<1x256xf32> to vector<2x256xf32>
    %47 = arith.addf %43, %46 : vector<2x256xf32>
    %c0_33 = arith.constant 0 : index
    %c0_34 = arith.constant 0 : index
    %48 = vector.load %arg13[%c0_33, %c0_34] : memref<256x256xf32, #tpu.memory_space<vmem>>, vector<256x256xf32>
    %c0_35 = arith.constant 0 : index
    %c0_36 = arith.constant 0 : index
    %49 = vector.load %arg11[%c0_35, %c0_36] : memref<1x256xf32, #tpu.memory_space<vmem>>, vector<1x256xf32>
    %c0_37 = arith.constant 0 : index
    %c0_38 = arith.constant 0 : index
    %50 = vector.load %arg12[%c0_37, %c0_38] : memref<1x256xf32, #tpu.memory_space<vmem>>, vector<1x256xf32>
    %cst_39 = arith.constant dense<0.000000e+00> : vector<2x256xf32>
    %51 = tpu.matmul %47, %48, %cst_39 {dimension_numbers = #tpu.dot_dimension_numbers<[1], [0], [0], [1], [0, 0, 1, 1], [], []>} : vector<2x256xf32>, vector<256x256xf32>, vector<2x256xf32> -> vector<2x256xf32>
    %cst_40 = arith.constant dense<0.000000e+00> : vector<256xf32>
    %52 = vector.multi_reduction <add>, %51, %cst_40 [0] : vector<2x256xf32> to vector<256xf32>
    %53 = vector.shape_cast %52 : vector<256xf32> to vector<1x256xf32>
    %cst_41 = arith.constant 2.000000e+00 : f32
    %54 = vector.broadcast %cst_41 : f32 to vector<1x256xf32>
    %55 = arith.divf %53, %54 : vector<1x256xf32>
    %56 = vector.broadcast %55 : vector<1x256xf32> to vector<2x256xf32>
    %57 = arith.subf %47, %56 : vector<2x256xf32>
    %58 = arith.mulf %57, %57 : vector<2x256xf32>
    %cst_42 = arith.constant dense<0.000000e+00> : vector<2x256xf32>
    %59 = tpu.matmul %58, %48, %cst_42 {dimension_numbers = #tpu.dot_dimension_numbers<[1], [0], [0], [1], [0, 0, 1, 1], [], []>} : vector<2x256xf32>, vector<256x256xf32>, vector<2x256xf32> -> vector<2x256xf32>
    %cst_43 = arith.constant dense<0.000000e+00> : vector<256xf32>
    %60 = vector.multi_reduction <add>, %59, %cst_43 [0] : vector<2x256xf32> to vector<256xf32>
    %61 = vector.shape_cast %60 : vector<256xf32> to vector<1x256xf32>
    %cst_44 = arith.constant 2.000000e+00 : f32
    %62 = vector.broadcast %cst_44 : f32 to vector<1x256xf32>
    %63 = arith.divf %61, %62 : vector<1x256xf32>
    %cst_45 = arith.constant 9.99999974E-6 : f32
    %64 = vector.broadcast %cst_45 : f32 to vector<1x256xf32>
    %65 = arith.addf %63, %64 : vector<1x256xf32>
    %66 = math.rsqrt %65 : vector<1x256xf32>
    %67 = vector.broadcast %66 : vector<1x256xf32> to vector<2x256xf32>
    %68 = arith.mulf %57, %67 : vector<2x256xf32>
    %69 = vector.broadcast %49 : vector<1x256xf32> to vector<2x256xf32>
    %70 = arith.mulf %68, %69 : vector<2x256xf32>
    %71 = vector.broadcast %50 : vector<1x256xf32> to vector<2x256xf32>
    %72 = arith.addf %70, %71 : vector<2x256xf32>
    %cst_46 = arith.constant 0.000000e+00 : f32
    %73 = vector.broadcast %cst_46 : f32 to vector<2x256xf32>
    %74 = arith.maximumf %72, %73 : vector<2x256xf32>
    %c0_47 = arith.constant 0 : index
    %c0_48 = arith.constant 0 : index
    %c0_49 = arith.constant 0 : index
    %75 = vector.load %arg14[%c0_47, %c0_48, %c0_49] : memref<3x256x256xf32, #tpu.memory_space<vmem>>, vector<1x256x256xf32>
    %76 = vector.shape_cast %75 : vector<1x256x256xf32> to vector<256x256xf32>
    %cst_50 = arith.constant dense<0.000000e+00> : vector<2x256xf32>
    %77 = tpu.matmul %74, %76, %cst_50 {dimension_numbers = #tpu.dot_dimension_numbers<[1], [0], [0], [1], [0, 0, 1, 1], [], []>} : vector<2x256xf32>, vector<256x256xf32>, vector<2x256xf32> -> vector<2x256xf32>
    %c0_51 = arith.constant 0 : index
    %c0_52 = arith.constant 0 : index
    %c0_53 = arith.constant 0 : index
    %78 = vector.load %arg15[%c0_51, %c0_52, %c0_53] : memref<3x1x256xf32, #tpu.memory_space<vmem>>, vector<1x1x256xf32>
    %79 = vector.shape_cast %78 : vector<1x1x256xf32> to vector<1x256xf32>
    %80 = vector.broadcast %79 : vector<1x256xf32> to vector<2x256xf32>
    %81 = arith.addf %77, %80 : vector<2x256xf32>
    %c0_54 = arith.constant 0 : index
    %c0_55 = arith.constant 0 : index
    %82 = vector.load %arg18[%c0_54, %c0_55] : memref<256x256xf32, #tpu.memory_space<vmem>>, vector<256x256xf32>
    %c0_56 = arith.constant 0 : index
    %c0_57 = arith.constant 0 : index
    %83 = vector.load %arg16[%c0_56, %c0_57] : memref<1x256xf32, #tpu.memory_space<vmem>>, vector<1x256xf32>
    %c0_58 = arith.constant 0 : index
    %c0_59 = arith.constant 0 : index
    %84 = vector.load %arg17[%c0_58, %c0_59] : memref<1x256xf32, #tpu.memory_space<vmem>>, vector<1x256xf32>
    %cst_60 = arith.constant dense<0.000000e+00> : vector<2x256xf32>
    %85 = tpu.matmul %81, %82, %cst_60 {dimension_numbers = #tpu.dot_dimension_numbers<[1], [0], [0], [1], [0, 0, 1, 1], [], []>} : vector<2x256xf32>, vector<256x256xf32>, vector<2x256xf32> -> vector<2x256xf32>
    %cst_61 = arith.constant dense<0.000000e+00> : vector<256xf32>
    %86 = vector.multi_reduction <add>, %85, %cst_61 [0] : vector<2x256xf32> to vector<256xf32>
    %87 = vector.shape_cast %86 : vector<256xf32> to vector<1x256xf32>
    %cst_62 = arith.constant 2.000000e+00 : f32
    %88 = vector.broadcast %cst_62 : f32 to vector<1x256xf32>
    %89 = arith.divf %87, %88 : vector<1x256xf32>
    %90 = vector.broadcast %89 : vector<1x256xf32> to vector<2x256xf32>
    %91 = arith.subf %81, %90 : vector<2x256xf32>
    %92 = arith.mulf %91, %91 : vector<2x256xf32>
    %cst_63 = arith.constant dense<0.000000e+00> : vector<2x256xf32>
    %93 = tpu.matmul %92, %82, %cst_63 {dimension_numbers = #tpu.dot_dimension_numbers<[1], [0], [0], [1], [0, 0, 1, 1], [], []>} : vector<2x256xf32>, vector<256x256xf32>, vector<2x256xf32> -> vector<2x256xf32>
    %cst_64 = arith.constant dense<0.000000e+00> : vector<256xf32>
    %94 = vector.multi_reduction <add>, %93, %cst_64 [0] : vector<2x256xf32> to vector<256xf32>
    %95 = vector.shape_cast %94 : vector<256xf32> to vector<1x256xf32>
    %cst_65 = arith.constant 2.000000e+00 : f32
    %96 = vector.broadcast %cst_65 : f32 to vector<1x256xf32>
    %97 = arith.divf %95, %96 : vector<1x256xf32>
    %cst_66 = arith.constant 9.99999974E-6 : f32
    %98 = vector.broadcast %cst_66 : f32 to vector<1x256xf32>
    %99 = arith.addf %97, %98 : vector<1x256xf32>
    %100 = math.rsqrt %99 : vector<1x256xf32>
    %101 = vector.broadcast %100 : vector<1x256xf32> to vector<2x256xf32>
    %102 = arith.mulf %91, %101 : vector<2x256xf32>
    %103 = vector.broadcast %83 : vector<1x256xf32> to vector<2x256xf32>
    %104 = arith.mulf %102, %103 : vector<2x256xf32>
    %105 = vector.broadcast %84 : vector<1x256xf32> to vector<2x256xf32>
    %106 = arith.addf %104, %105 : vector<2x256xf32>
    %cst_67 = arith.constant 0.000000e+00 : f32
    %107 = vector.broadcast %cst_67 : f32 to vector<2x256xf32>
    %108 = arith.maximumf %106, %107 : vector<2x256xf32>
    %c0_68 = arith.constant 0 : index
    %c0_69 = arith.constant 0 : index
    %c0_70 = arith.constant 0 : index
    %109 = vector.load %arg19[%c0_68, %c0_69, %c0_70] : memref<3x256x64xf32, #tpu.memory_space<vmem>>, vector<1x256x64xf32>
    %110 = vector.shape_cast %109 : vector<1x256x64xf32> to vector<256x64xf32>
    %cst_71 = arith.constant dense<0.000000e+00> : vector<2x64xf32>
    %111 = tpu.matmul %108, %110, %cst_71 {dimension_numbers = #tpu.dot_dimension_numbers<[1], [0], [0], [1], [0, 0, 1, 1], [], []>} : vector<2x256xf32>, vector<256x64xf32>, vector<2x64xf32> -> vector<2x64xf32>
    %c0_72 = arith.constant 0 : index
    %c0_73 = arith.constant 0 : index
    %c0_74 = arith.constant 0 : index
    %112 = vector.load %arg20[%c0_72, %c0_73, %c0_74] : memref<3x1x64xf32, #tpu.memory_space<vmem>>, vector<1x1x64xf32>
    %113 = vector.shape_cast %112 : vector<1x1x64xf32> to vector<1x64xf32>
    %114 = vector.broadcast %113 : vector<1x64xf32> to vector<2x64xf32>
    %115 = arith.addf %111, %114 : vector<2x64xf32>
    %c0_75 = arith.constant 0 : index
    %c0_76 = arith.constant 0 : index
    %116 = vector.load %arg23[%c0_75, %c0_76] : memref<64x64xf32, #tpu.memory_space<vmem>>, vector<64x64xf32>
    %c0_77 = arith.constant 0 : index
    %c0_78 = arith.constant 0 : index
    %117 = vector.load %arg21[%c0_77, %c0_78] : memref<1x64xf32, #tpu.memory_space<vmem>>, vector<1x64xf32>
    %c0_79 = arith.constant 0 : index
    %c0_80 = arith.constant 0 : index
    %118 = vector.load %arg22[%c0_79, %c0_80] : memref<1x64xf32, #tpu.memory_space<vmem>>, vector<1x64xf32>
    %cst_81 = arith.constant dense<0.000000e+00> : vector<2x64xf32>
    %119 = tpu.matmul %115, %116, %cst_81 {dimension_numbers = #tpu.dot_dimension_numbers<[1], [0], [0], [1], [0, 0, 1, 1], [], []>} : vector<2x64xf32>, vector<64x64xf32>, vector<2x64xf32> -> vector<2x64xf32>
    %cst_82 = arith.constant dense<0.000000e+00> : vector<64xf32>
    %120 = vector.multi_reduction <add>, %119, %cst_82 [0] : vector<2x64xf32> to vector<64xf32>
    %121 = vector.shape_cast %120 : vector<64xf32> to vector<1x64xf32>
    %cst_83 = arith.constant 2.000000e+00 : f32
    %122 = vector.broadcast %cst_83 : f32 to vector<1x64xf32>
    %123 = arith.divf %121, %122 : vector<1x64xf32>
    %124 = vector.broadcast %123 : vector<1x64xf32> to vector<2x64xf32>
    %125 = arith.subf %115, %124 : vector<2x64xf32>
    %126 = arith.mulf %125, %125 : vector<2x64xf32>
    %cst_84 = arith.constant dense<0.000000e+00> : vector<2x64xf32>
    %127 = tpu.matmul %126, %116, %cst_84 {dimension_numbers = #tpu.dot_dimension_numbers<[1], [0], [0], [1], [0, 0, 1, 1], [], []>} : vector<2x64xf32>, vector<64x64xf32>, vector<2x64xf32> -> vector<2x64xf32>
    %cst_85 = arith.constant dense<0.000000e+00> : vector<64xf32>
    %128 = vector.multi_reduction <add>, %127, %cst_85 [0] : vector<2x64xf32> to vector<64xf32>
    %129 = vector.shape_cast %128 : vector<64xf32> to vector<1x64xf32>
    %cst_86 = arith.constant 2.000000e+00 : f32
    %130 = vector.broadcast %cst_86 : f32 to vector<1x64xf32>
    %131 = arith.divf %129, %130 : vector<1x64xf32>
    %cst_87 = arith.constant 9.99999974E-6 : f32
    %132 = vector.broadcast %cst_87 : f32 to vector<1x64xf32>
    %133 = arith.addf %131, %132 : vector<1x64xf32>
    %134 = math.rsqrt %133 : vector<1x64xf32>
    %135 = vector.broadcast %134 : vector<1x64xf32> to vector<2x64xf32>
    %136 = arith.mulf %125, %135 : vector<2x64xf32>
    %137 = vector.broadcast %117 : vector<1x64xf32> to vector<2x64xf32>
    %138 = arith.mulf %136, %137 : vector<2x64xf32>
    %139 = vector.broadcast %118 : vector<1x64xf32> to vector<2x64xf32>
    %140 = arith.addf %138, %139 : vector<2x64xf32>
    %cst_88 = arith.constant 0.000000e+00 : f32
    %141 = vector.broadcast %cst_88 : f32 to vector<2x64xf32>
    %142 = arith.maximumf %140, %141 : vector<2x64xf32>
    %c0_89 = arith.constant 0 : index
    %c0_90 = arith.constant 0 : index
    %c0_91 = arith.constant 0 : index
    %143 = vector.load %arg24[%c0_89, %c0_90, %c0_91] : memref<3x64x128xf32, #tpu.memory_space<vmem>>, vector<1x64x128xf32>
    %144 = vector.shape_cast %143 : vector<1x64x128xf32> to vector<64x128xf32>
    %cst_92 = arith.constant dense<0.000000e+00> : vector<2x128xf32>
    %145 = tpu.matmul %142, %144, %cst_92 {dimension_numbers = #tpu.dot_dimension_numbers<[1], [0], [0], [1], [0, 0, 1, 1], [], []>} : vector<2x64xf32>, vector<64x128xf32>, vector<2x128xf32> -> vector<2x128xf32>
    %146 = arith.addf %40, %145 : vector<2x128xf32>
    %c1 = arith.constant 1 : index
    %c0_93 = arith.constant 0 : index
    %c0_94 = arith.constant 0 : index
    %147 = vector.load %arg9[%c1, %c0_93, %c0_94] : memref<3x256x256xf32, #tpu.memory_space<vmem>>, vector<1x256x256xf32>
    %148 = vector.shape_cast %147 : vector<1x256x256xf32> to vector<256x256xf32>
    %cst_95 = arith.constant dense<0.000000e+00> : vector<2x256xf32>
    %149 = tpu.matmul %39, %148, %cst_95 {dimension_numbers = #tpu.dot_dimension_numbers<[1], [0], [0], [1], [0, 0, 1, 1], [], []>} : vector<2x256xf32>, vector<256x256xf32>, vector<2x256xf32> -> vector<2x256xf32>
    %c1_96 = arith.constant 1 : index
    %c0_97 = arith.constant 0 : index
    %c0_98 = arith.constant 0 : index
    %150 = vector.load %arg10[%c1_96, %c0_97, %c0_98] : memref<3x1x256xf32, #tpu.memory_space<vmem>>, vector<1x1x256xf32>
    %151 = vector.shape_cast %150 : vector<1x1x256xf32> to vector<1x256xf32>
    %152 = vector.broadcast %151 : vector<1x256xf32> to vector<2x256xf32>
    %153 = arith.addf %149, %152 : vector<2x256xf32>
    %c0_99 = arith.constant 0 : index
    %c0_100 = arith.constant 0 : index
    %154 = vector.load %arg13[%c0_99, %c0_100] : memref<256x256xf32, #tpu.memory_space<vmem>>, vector<256x256xf32>
    %c0_101 = arith.constant 0 : index
    %c0_102 = arith.constant 0 : index
    %155 = vector.load %arg11[%c0_101, %c0_102] : memref<1x256xf32, #tpu.memory_space<vmem>>, vector<1x256xf32>
    %c0_103 = arith.constant 0 : index
    %c0_104 = arith.constant 0 : index
    %156 = vector.load %arg12[%c0_103, %c0_104] : memref<1x256xf32, #tpu.memory_space<vmem>>, vector<1x256xf32>
    %cst_105 = arith.constant dense<0.000000e+00> : vector<2x256xf32>
    %157 = tpu.matmul %153, %154, %cst_105 {dimension_numbers = #tpu.dot_dimension_numbers<[1], [0], [0], [1], [0, 0, 1, 1], [], []>} : vector<2x256xf32>, vector<256x256xf32>, vector<2x256xf32> -> vector<2x256xf32>
    %cst_106 = arith.constant dense<0.000000e+00> : vector<256xf32>
    %158 = vector.multi_reduction <add>, %157, %cst_106 [0] : vector<2x256xf32> to vector<256xf32>
    %159 = vector.shape_cast %158 : vector<256xf32> to vector<1x256xf32>
    %cst_107 = arith.constant 2.000000e+00 : f32
    %160 = vector.broadcast %cst_107 : f32 to vector<1x256xf32>
    %161 = arith.divf %159, %160 : vector<1x256xf32>
    %162 = vector.broadcast %161 : vector<1x256xf32> to vector<2x256xf32>
    %163 = arith.subf %153, %162 : vector<2x256xf32>
    %164 = arith.mulf %163, %163 : vector<2x256xf32>
    %cst_108 = arith.constant dense<0.000000e+00> : vector<2x256xf32>
    %165 = tpu.matmul %164, %154, %cst_108 {dimension_numbers = #tpu.dot_dimension_numbers<[1], [0], [0], [1], [0, 0, 1, 1], [], []>} : vector<2x256xf32>, vector<256x256xf32>, vector<2x256xf32> -> vector<2x256xf32>
    %cst_109 = arith.constant dense<0.000000e+00> : vector<256xf32>
    %166 = vector.multi_reduction <add>, %165, %cst_109 [0] : vector<2x256xf32> to vector<256xf32>
    %167 = vector.shape_cast %166 : vector<256xf32> to vector<1x256xf32>
    %cst_110 = arith.constant 2.000000e+00 : f32
    %168 = vector.broadcast %cst_110 : f32 to vector<1x256xf32>
    %169 = arith.divf %167, %168 : vector<1x256xf32>
    %cst_111 = arith.constant 9.99999974E-6 : f32
    %170 = vector.broadcast %cst_111 : f32 to vector<1x256xf32>
    %171 = arith.addf %169, %170 : vector<1x256xf32>
    %172 = math.rsqrt %171 : vector<1x256xf32>
    %173 = vector.broadcast %172 : vector<1x256xf32> to vector<2x256xf32>
    %174 = arith.mulf %163, %173 : vector<2x256xf32>
    %175 = vector.broadcast %155 : vector<1x256xf32> to vector<2x256xf32>
    %176 = arith.mulf %174, %175 : vector<2x256xf32>
    %177 = vector.broadcast %156 : vector<1x256xf32> to vector<2x256xf32>
    %178 = arith.addf %176, %177 : vector<2x256xf32>
    %cst_112 = arith.constant 0.000000e+00 : f32
    %179 = vector.broadcast %cst_112 : f32 to vector<2x256xf32>
    %180 = arith.maximumf %178, %179 : vector<2x256xf32>
    %c1_113 = arith.constant 1 : index
    %c0_114 = arith.constant 0 : index
    %c0_115 = arith.constant 0 : index
    %181 = vector.load %arg14[%c1_113, %c0_114, %c0_115] : memref<3x256x256xf32, #tpu.memory_space<vmem>>, vector<1x256x256xf32>
    %182 = vector.shape_cast %181 : vector<1x256x256xf32> to vector<256x256xf32>
    %cst_116 = arith.constant dense<0.000000e+00> : vector<2x256xf32>
    %183 = tpu.matmul %180, %182, %cst_116 {dimension_numbers = #tpu.dot_dimension_numbers<[1], [0], [0], [1], [0, 0, 1, 1], [], []>} : vector<2x256xf32>, vector<256x256xf32>, vector<2x256xf32> -> vector<2x256xf32>
    %c1_117 = arith.constant 1 : index
    %c0_118 = arith.constant 0 : index
    %c0_119 = arith.constant 0 : index
    %184 = vector.load %arg15[%c1_117, %c0_118, %c0_119] : memref<3x1x256xf32, #tpu.memory_space<vmem>>, vector<1x1x256xf32>
    %185 = vector.shape_cast %184 : vector<1x1x256xf32> to vector<1x256xf32>
    %186 = vector.broadcast %185 : vector<1x256xf32> to vector<2x256xf32>
    %187 = arith.addf %183, %186 : vector<2x256xf32>
    %c0_120 = arith.constant 0 : index
    %c0_121 = arith.constant 0 : index
    %188 = vector.load %arg18[%c0_120, %c0_121] : memref<256x256xf32, #tpu.memory_space<vmem>>, vector<256x256xf32>
    %c0_122 = arith.constant 0 : index
    %c0_123 = arith.constant 0 : index
    %189 = vector.load %arg16[%c0_122, %c0_123] : memref<1x256xf32, #tpu.memory_space<vmem>>, vector<1x256xf32>
    %c0_124 = arith.constant 0 : index
    %c0_125 = arith.constant 0 : index
    %190 = vector.load %arg17[%c0_124, %c0_125] : memref<1x256xf32, #tpu.memory_space<vmem>>, vector<1x256xf32>
    %cst_126 = arith.constant dense<0.000000e+00> : vector<2x256xf32>
    %191 = tpu.matmul %187, %188, %cst_126 {dimension_numbers = #tpu.dot_dimension_numbers<[1], [0], [0], [1], [0, 0, 1, 1], [], []>} : vector<2x256xf32>, vector<256x256xf32>, vector<2x256xf32> -> vector<2x256xf32>
    %cst_127 = arith.constant dense<0.000000e+00> : vector<256xf32>
    %192 = vector.multi_reduction <add>, %191, %cst_127 [0] : vector<2x256xf32> to vector<256xf32>
    %193 = vector.shape_cast %192 : vector<256xf32> to vector<1x256xf32>
    %cst_128 = arith.constant 2.000000e+00 : f32
    %194 = vector.broadcast %cst_128 : f32 to vector<1x256xf32>
    %195 = arith.divf %193, %194 : vector<1x256xf32>
    %196 = vector.broadcast %195 : vector<1x256xf32> to vector<2x256xf32>
    %197 = arith.subf %187, %196 : vector<2x256xf32>
    %198 = arith.mulf %197, %197 : vector<2x256xf32>
    %cst_129 = arith.constant dense<0.000000e+00> : vector<2x256xf32>
    %199 = tpu.matmul %198, %188, %cst_129 {dimension_numbers = #tpu.dot_dimension_numbers<[1], [0], [0], [1], [0, 0, 1, 1], [], []>} : vector<2x256xf32>, vector<256x256xf32>, vector<2x256xf32> -> vector<2x256xf32>
    %cst_130 = arith.constant dense<0.000000e+00> : vector<256xf32>
    %200 = vector.multi_reduction <add>, %199, %cst_130 [0] : vector<2x256xf32> to vector<256xf32>
    %201 = vector.shape_cast %200 : vector<256xf32> to vector<1x256xf32>
    %cst_131 = arith.constant 2.000000e+00 : f32
    %202 = vector.broadcast %cst_131 : f32 to vector<1x256xf32>
    %203 = arith.divf %201, %202 : vector<1x256xf32>
    %cst_132 = arith.constant 9.99999974E-6 : f32
    %204 = vector.broadcast %cst_132 : f32 to vector<1x256xf32>
    %205 = arith.addf %203, %204 : vector<1x256xf32>
    %206 = math.rsqrt %205 : vector<1x256xf32>
    %207 = vector.broadcast %206 : vector<1x256xf32> to vector<2x256xf32>
    %208 = arith.mulf %197, %207 : vector<2x256xf32>
    %209 = vector.broadcast %189 : vector<1x256xf32> to vector<2x256xf32>
    %210 = arith.mulf %208, %209 : vector<2x256xf32>
    %211 = vector.broadcast %190 : vector<1x256xf32> to vector<2x256xf32>
    %212 = arith.addf %210, %211 : vector<2x256xf32>
    %cst_133 = arith.constant 0.000000e+00 : f32
    %213 = vector.broadcast %cst_133 : f32 to vector<2x256xf32>
    %214 = arith.maximumf %212, %213 : vector<2x256xf32>
    %c1_134 = arith.constant 1 : index
    %c0_135 = arith.constant 0 : index
    %c0_136 = arith.constant 0 : index
    %215 = vector.load %arg19[%c1_134, %c0_135, %c0_136] : memref<3x256x64xf32, #tpu.memory_space<vmem>>, vector<1x256x64xf32>
    %216 = vector.shape_cast %215 : vector<1x256x64xf32> to vector<256x64xf32>
    %cst_137 = arith.constant dense<0.000000e+00> : vector<2x64xf32>
    %217 = tpu.matmul %214, %216, %cst_137 {dimension_numbers = #tpu.dot_dimension_numbers<[1], [0], [0], [1], [0, 0, 1, 1], [], []>} : vector<2x256xf32>, vector<256x64xf32>, vector<2x64xf32> -> vector<2x64xf32>
    %c1_138 = arith.constant 1 : index
    %c0_139 = arith.constant 0 : index
    %c0_140 = arith.constant 0 : index
    %218 = vector.load %arg20[%c1_138, %c0_139, %c0_140] : memref<3x1x64xf32, #tpu.memory_space<vmem>>, vector<1x1x64xf32>
    %219 = vector.shape_cast %218 : vector<1x1x64xf32> to vector<1x64xf32>
    %220 = vector.broadcast %219 : vector<1x64xf32> to vector<2x64xf32>
    %221 = arith.addf %217, %220 : vector<2x64xf32>
    %c0_141 = arith.constant 0 : index
    %c0_142 = arith.constant 0 : index
    %222 = vector.load %arg23[%c0_141, %c0_142] : memref<64x64xf32, #tpu.memory_space<vmem>>, vector<64x64xf32>
    %c0_143 = arith.constant 0 : index
    %c0_144 = arith.constant 0 : index
    %223 = vector.load %arg21[%c0_143, %c0_144] : memref<1x64xf32, #tpu.memory_space<vmem>>, vector<1x64xf32>
    %c0_145 = arith.constant 0 : index
    %c0_146 = arith.constant 0 : index
    %224 = vector.load %arg22[%c0_145, %c0_146] : memref<1x64xf32, #tpu.memory_space<vmem>>, vector<1x64xf32>
    %cst_147 = arith.constant dense<0.000000e+00> : vector<2x64xf32>
    %225 = tpu.matmul %221, %222, %cst_147 {dimension_numbers = #tpu.dot_dimension_numbers<[1], [0], [0], [1], [0, 0, 1, 1], [], []>} : vector<2x64xf32>, vector<64x64xf32>, vector<2x64xf32> -> vector<2x64xf32>
    %cst_148 = arith.constant dense<0.000000e+00> : vector<64xf32>
    %226 = vector.multi_reduction <add>, %225, %cst_148 [0] : vector<2x64xf32> to vector<64xf32>
    %227 = vector.shape_cast %226 : vector<64xf32> to vector<1x64xf32>
    %cst_149 = arith.constant 2.000000e+00 : f32
    %228 = vector.broadcast %cst_149 : f32 to vector<1x64xf32>
    %229 = arith.divf %227, %228 : vector<1x64xf32>
    %230 = vector.broadcast %229 : vector<1x64xf32> to vector<2x64xf32>
    %231 = arith.subf %221, %230 : vector<2x64xf32>
    %232 = arith.mulf %231, %231 : vector<2x64xf32>
    %cst_150 = arith.constant dense<0.000000e+00> : vector<2x64xf32>
    %233 = tpu.matmul %232, %222, %cst_150 {dimension_numbers = #tpu.dot_dimension_numbers<[1], [0], [0], [1], [0, 0, 1, 1], [], []>} : vector<2x64xf32>, vector<64x64xf32>, vector<2x64xf32> -> vector<2x64xf32>
    %cst_151 = arith.constant dense<0.000000e+00> : vector<64xf32>
    %234 = vector.multi_reduction <add>, %233, %cst_151 [0] : vector<2x64xf32> to vector<64xf32>
    %235 = vector.shape_cast %234 : vector<64xf32> to vector<1x64xf32>
    %cst_152 = arith.constant 2.000000e+00 : f32
    %236 = vector.broadcast %cst_152 : f32 to vector<1x64xf32>
    %237 = arith.divf %235, %236 : vector<1x64xf32>
    %cst_153 = arith.constant 9.99999974E-6 : f32
    %238 = vector.broadcast %cst_153 : f32 to vector<1x64xf32>
    %239 = arith.addf %237, %238 : vector<1x64xf32>
    %240 = math.rsqrt %239 : vector<1x64xf32>
    %241 = vector.broadcast %240 : vector<1x64xf32> to vector<2x64xf32>
    %242 = arith.mulf %231, %241 : vector<2x64xf32>
    %243 = vector.broadcast %223 : vector<1x64xf32> to vector<2x64xf32>
    %244 = arith.mulf %242, %243 : vector<2x64xf32>
    %245 = vector.broadcast %224 : vector<1x64xf32> to vector<2x64xf32>
    %246 = arith.addf %244, %245 : vector<2x64xf32>
    %cst_154 = arith.constant 0.000000e+00 : f32
    %247 = vector.broadcast %cst_154 : f32 to vector<2x64xf32>
    %248 = arith.maximumf %246, %247 : vector<2x64xf32>
    %c1_155 = arith.constant 1 : index
    %c0_156 = arith.constant 0 : index
    %c0_157 = arith.constant 0 : index
    %249 = vector.load %arg24[%c1_155, %c0_156, %c0_157] : memref<3x64x128xf32, #tpu.memory_space<vmem>>, vector<1x64x128xf32>
    %250 = vector.shape_cast %249 : vector<1x64x128xf32> to vector<64x128xf32>
    %cst_158 = arith.constant dense<0.000000e+00> : vector<2x128xf32>
    %251 = tpu.matmul %248, %250, %cst_158 {dimension_numbers = #tpu.dot_dimension_numbers<[1], [0], [0], [1], [0, 0, 1, 1], [], []>} : vector<2x64xf32>, vector<64x128xf32>, vector<2x128xf32> -> vector<2x128xf32>
    %252 = arith.addf %146, %251 : vector<2x128xf32>
    %c2 = arith.constant 2 : index
    %c0_159 = arith.constant 0 : index
    %c0_160 = arith.constant 0 : index
    %253 = vector.load %arg9[%c2, %c0_159, %c0_160] : memref<3x256x256xf32, #tpu.memory_space<vmem>>, vector<1x256x256xf32>
    %254 = vector.shape_cast %253 : vector<1x256x256xf32> to vector<256x256xf32>
    %cst_161 = arith.constant dense<0.000000e+00> : vector<2x256xf32>
    %255 = tpu.matmul %39, %254, %cst_161 {dimension_numbers = #tpu.dot_dimension_numbers<[1], [0], [0], [1], [0, 0, 1, 1], [], []>} : vector<2x256xf32>, vector<256x256xf32>, vector<2x256xf32> -> vector<2x256xf32>
    %c2_162 = arith.constant 2 : index
    %c0_163 = arith.constant 0 : index
    %c0_164 = arith.constant 0 : index
    %256 = vector.load %arg10[%c2_162, %c0_163, %c0_164] : memref<3x1x256xf32, #tpu.memory_space<vmem>>, vector<1x1x256xf32>
    %257 = vector.shape_cast %256 : vector<1x1x256xf32> to vector<1x256xf32>
    %258 = vector.broadcast %257 : vector<1x256xf32> to vector<2x256xf32>
    %259 = arith.addf %255, %258 : vector<2x256xf32>
    %c0_165 = arith.constant 0 : index
    %c0_166 = arith.constant 0 : index
    %260 = vector.load %arg13[%c0_165, %c0_166] : memref<256x256xf32, #tpu.memory_space<vmem>>, vector<256x256xf32>
    %c0_167 = arith.constant 0 : index
    %c0_168 = arith.constant 0 : index
    %261 = vector.load %arg11[%c0_167, %c0_168] : memref<1x256xf32, #tpu.memory_space<vmem>>, vector<1x256xf32>
    %c0_169 = arith.constant 0 : index
    %c0_170 = arith.constant 0 : index
    %262 = vector.load %arg12[%c0_169, %c0_170] : memref<1x256xf32, #tpu.memory_space<vmem>>, vector<1x256xf32>
    %cst_171 = arith.constant dense<0.000000e+00> : vector<2x256xf32>
    %263 = tpu.matmul %259, %260, %cst_171 {dimension_numbers = #tpu.dot_dimension_numbers<[1], [0], [0], [1], [0, 0, 1, 1], [], []>} : vector<2x256xf32>, vector<256x256xf32>, vector<2x256xf32> -> vector<2x256xf32>
    %cst_172 = arith.constant dense<0.000000e+00> : vector<256xf32>
    %264 = vector.multi_reduction <add>, %263, %cst_172 [0] : vector<2x256xf32> to vector<256xf32>
    %265 = vector.shape_cast %264 : vector<256xf32> to vector<1x256xf32>
    %cst_173 = arith.constant 2.000000e+00 : f32
    %266 = vector.broadcast %cst_173 : f32 to vector<1x256xf32>
    %267 = arith.divf %265, %266 : vector<1x256xf32>
    %268 = vector.broadcast %267 : vector<1x256xf32> to vector<2x256xf32>
    %269 = arith.subf %259, %268 : vector<2x256xf32>
    %270 = arith.mulf %269, %269 : vector<2x256xf32>
    %cst_174 = arith.constant dense<0.000000e+00> : vector<2x256xf32>
    %271 = tpu.matmul %270, %260, %cst_174 {dimension_numbers = #tpu.dot_dimension_numbers<[1], [0], [0], [1], [0, 0, 1, 1], [], []>} : vector<2x256xf32>, vector<256x256xf32>, vector<2x256xf32> -> vector<2x256xf32>
    %cst_175 = arith.constant dense<0.000000e+00> : vector<256xf32>
    %272 = vector.multi_reduction <add>, %271, %cst_175 [0] : vector<2x256xf32> to vector<256xf32>
    %273 = vector.shape_cast %272 : vector<256xf32> to vector<1x256xf32>
    %cst_176 = arith.constant 2.000000e+00 : f32
    %274 = vector.broadcast %cst_176 : f32 to vector<1x256xf32>
    %275 = arith.divf %273, %274 : vector<1x256xf32>
    %cst_177 = arith.constant 9.99999974E-6 : f32
    %276 = vector.broadcast %cst_177 : f32 to vector<1x256xf32>
    %277 = arith.addf %275, %276 : vector<1x256xf32>
    %278 = math.rsqrt %277 : vector<1x256xf32>
    %279 = vector.broadcast %278 : vector<1x256xf32> to vector<2x256xf32>
    %280 = arith.mulf %269, %279 : vector<2x256xf32>
    %281 = vector.broadcast %261 : vector<1x256xf32> to vector<2x256xf32>
    %282 = arith.mulf %280, %281 : vector<2x256xf32>
    %283 = vector.broadcast %262 : vector<1x256xf32> to vector<2x256xf32>
    %284 = arith.addf %282, %283 : vector<2x256xf32>
    %cst_178 = arith.constant 0.000000e+00 : f32
    %285 = vector.broadcast %cst_178 : f32 to vector<2x256xf32>
    %286 = arith.maximumf %284, %285 : vector<2x256xf32>
    %c2_179 = arith.constant 2 : index
    %c0_180 = arith.constant 0 : index
    %c0_181 = arith.constant 0 : index
    %287 = vector.load %arg14[%c2_179, %c0_180, %c0_181] : memref<3x256x256xf32, #tpu.memory_space<vmem>>, vector<1x256x256xf32>
    %288 = vector.shape_cast %287 : vector<1x256x256xf32> to vector<256x256xf32>
    %cst_182 = arith.constant dense<0.000000e+00> : vector<2x256xf32>
    %289 = tpu.matmul %286, %288, %cst_182 {dimension_numbers = #tpu.dot_dimension_numbers<[1], [0], [0], [1], [0, 0, 1, 1], [], []>} : vector<2x256xf32>, vector<256x256xf32>, vector<2x256xf32> -> vector<2x256xf32>
    %c2_183 = arith.constant 2 : index
    %c0_184 = arith.constant 0 : index
    %c0_185 = arith.constant 0 : index
    %290 = vector.load %arg15[%c2_183, %c0_184, %c0_185] : memref<3x1x256xf32, #tpu.memory_space<vmem>>, vector<1x1x256xf32>
    %291 = vector.shape_cast %290 : vector<1x1x256xf32> to vector<1x256xf32>
    %292 = vector.broadcast %291 : vector<1x256xf32> to vector<2x256xf32>
    %293 = arith.addf %289, %292 : vector<2x256xf32>
    %c0_186 = arith.constant 0 : index
    %c0_187 = arith.constant 0 : index
    %294 = vector.load %arg18[%c0_186, %c0_187] : memref<256x256xf32, #tpu.memory_space<vmem>>, vector<256x256xf32>
    %c0_188 = arith.constant 0 : index
    %c0_189 = arith.constant 0 : index
    %295 = vector.load %arg16[%c0_188, %c0_189] : memref<1x256xf32, #tpu.memory_space<vmem>>, vector<1x256xf32>
    %c0_190 = arith.constant 0 : index
    %c0_191 = arith.constant 0 : index
    %296 = vector.load %arg17[%c0_190, %c0_191] : memref<1x256xf32, #tpu.memory_space<vmem>>, vector<1x256xf32>
    %cst_192 = arith.constant dense<0.000000e+00> : vector<2x256xf32>
    %297 = tpu.matmul %293, %294, %cst_192 {dimension_numbers = #tpu.dot_dimension_numbers<[1], [0], [0], [1], [0, 0, 1, 1], [], []>} : vector<2x256xf32>, vector<256x256xf32>, vector<2x256xf32> -> vector<2x256xf32>
    %cst_193 = arith.constant dense<0.000000e+00> : vector<256xf32>
    %298 = vector.multi_reduction <add>, %297, %cst_193 [0] : vector<2x256xf32> to vector<256xf32>
    %299 = vector.shape_cast %298 : vector<256xf32> to vector<1x256xf32>
    %cst_194 = arith.constant 2.000000e+00 : f32
    %300 = vector.broadcast %cst_194 : f32 to vector<1x256xf32>
    %301 = arith.divf %299, %300 : vector<1x256xf32>
    %302 = vector.broadcast %301 : vector<1x256xf32> to vector<2x256xf32>
    %303 = arith.subf %293, %302 : vector<2x256xf32>
    %304 = arith.mulf %303, %303 : vector<2x256xf32>
    %cst_195 = arith.constant dense<0.000000e+00> : vector<2x256xf32>
    %305 = tpu.matmul %304, %294, %cst_195 {dimension_numbers = #tpu.dot_dimension_numbers<[1], [0], [0], [1], [0, 0, 1, 1], [], []>} : vector<2x256xf32>, vector<256x256xf32>, vector<2x256xf32> -> vector<2x256xf32>
    %cst_196 = arith.constant dense<0.000000e+00> : vector<256xf32>
    %306 = vector.multi_reduction <add>, %305, %cst_196 [0] : vector<2x256xf32> to vector<256xf32>
    %307 = vector.shape_cast %306 : vector<256xf32> to vector<1x256xf32>
    %cst_197 = arith.constant 2.000000e+00 : f32
    %308 = vector.broadcast %cst_197 : f32 to vector<1x256xf32>
    %309 = arith.divf %307, %308 : vector<1x256xf32>
    %cst_198 = arith.constant 9.99999974E-6 : f32
    %310 = vector.broadcast %cst_198 : f32 to vector<1x256xf32>
    %311 = arith.addf %309, %310 : vector<1x256xf32>
    %312 = math.rsqrt %311 : vector<1x256xf32>
    %313 = vector.broadcast %312 : vector<1x256xf32> to vector<2x256xf32>
    %314 = arith.mulf %303, %313 : vector<2x256xf32>
    %315 = vector.broadcast %295 : vector<1x256xf32> to vector<2x256xf32>
    %316 = arith.mulf %314, %315 : vector<2x256xf32>
    %317 = vector.broadcast %296 : vector<1x256xf32> to vector<2x256xf32>
    %318 = arith.addf %316, %317 : vector<2x256xf32>
    %cst_199 = arith.constant 0.000000e+00 : f32
    %319 = vector.broadcast %cst_199 : f32 to vector<2x256xf32>
    %320 = arith.maximumf %318, %319 : vector<2x256xf32>
    %c2_200 = arith.constant 2 : index
    %c0_201 = arith.constant 0 : index
    %c0_202 = arith.constant 0 : index
    %321 = vector.load %arg19[%c2_200, %c0_201, %c0_202] : memref<3x256x64xf32, #tpu.memory_space<vmem>>, vector<1x256x64xf32>
    %322 = vector.shape_cast %321 : vector<1x256x64xf32> to vector<256x64xf32>
    %cst_203 = arith.constant dense<0.000000e+00> : vector<2x64xf32>
    %323 = tpu.matmul %320, %322, %cst_203 {dimension_numbers = #tpu.dot_dimension_numbers<[1], [0], [0], [1], [0, 0, 1, 1], [], []>} : vector<2x256xf32>, vector<256x64xf32>, vector<2x64xf32> -> vector<2x64xf32>
    %c2_204 = arith.constant 2 : index
    %c0_205 = arith.constant 0 : index
    %c0_206 = arith.constant 0 : index
    %324 = vector.load %arg20[%c2_204, %c0_205, %c0_206] : memref<3x1x64xf32, #tpu.memory_space<vmem>>, vector<1x1x64xf32>
    %325 = vector.shape_cast %324 : vector<1x1x64xf32> to vector<1x64xf32>
    %326 = vector.broadcast %325 : vector<1x64xf32> to vector<2x64xf32>
    %327 = arith.addf %323, %326 : vector<2x64xf32>
    %c0_207 = arith.constant 0 : index
    %c0_208 = arith.constant 0 : index
    %328 = vector.load %arg23[%c0_207, %c0_208] : memref<64x64xf32, #tpu.memory_space<vmem>>, vector<64x64xf32>
    %c0_209 = arith.constant 0 : index
    %c0_210 = arith.constant 0 : index
    %329 = vector.load %arg21[%c0_209, %c0_210] : memref<1x64xf32, #tpu.memory_space<vmem>>, vector<1x64xf32>
    %c0_211 = arith.constant 0 : index
    %c0_212 = arith.constant 0 : index
    %330 = vector.load %arg22[%c0_211, %c0_212] : memref<1x64xf32, #tpu.memory_space<vmem>>, vector<1x64xf32>
    %cst_213 = arith.constant dense<0.000000e+00> : vector<2x64xf32>
    %331 = tpu.matmul %327, %328, %cst_213 {dimension_numbers = #tpu.dot_dimension_numbers<[1], [0], [0], [1], [0, 0, 1, 1], [], []>} : vector<2x64xf32>, vector<64x64xf32>, vector<2x64xf32> -> vector<2x64xf32>
    %cst_214 = arith.constant dense<0.000000e+00> : vector<64xf32>
    %332 = vector.multi_reduction <add>, %331, %cst_214 [0] : vector<2x64xf32> to vector<64xf32>
    %333 = vector.shape_cast %332 : vector<64xf32> to vector<1x64xf32>
    %cst_215 = arith.constant 2.000000e+00 : f32
    %334 = vector.broadcast %cst_215 : f32 to vector<1x64xf32>
    %335 = arith.divf %333, %334 : vector<1x64xf32>
    %336 = vector.broadcast %335 : vector<1x64xf32> to vector<2x64xf32>
    %337 = arith.subf %327, %336 : vector<2x64xf32>
    %338 = arith.mulf %337, %337 : vector<2x64xf32>
    %cst_216 = arith.constant dense<0.000000e+00> : vector<2x64xf32>
    %339 = tpu.matmul %338, %328, %cst_216 {dimension_numbers = #tpu.dot_dimension_numbers<[1], [0], [0], [1], [0, 0, 1, 1], [], []>} : vector<2x64xf32>, vector<64x64xf32>, vector<2x64xf32> -> vector<2x64xf32>
    %cst_217 = arith.constant dense<0.000000e+00> : vector<64xf32>
    %340 = vector.multi_reduction <add>, %339, %cst_217 [0] : vector<2x64xf32> to vector<64xf32>
    %341 = vector.shape_cast %340 : vector<64xf32> to vector<1x64xf32>
    %cst_218 = arith.constant 2.000000e+00 : f32
    %342 = vector.broadcast %cst_218 : f32 to vector<1x64xf32>
    %343 = arith.divf %341, %342 : vector<1x64xf32>
    %cst_219 = arith.constant 9.99999974E-6 : f32
    %344 = vector.broadcast %cst_219 : f32 to vector<1x64xf32>
    %345 = arith.addf %343, %344 : vector<1x64xf32>
    %346 = math.rsqrt %345 : vector<1x64xf32>
    %347 = vector.broadcast %346 : vector<1x64xf32> to vector<2x64xf32>
    %348 = arith.mulf %337, %347 : vector<2x64xf32>
    %349 = vector.broadcast %329 : vector<1x64xf32> to vector<2x64xf32>
    %350 = arith.mulf %348, %349 : vector<2x64xf32>
    %351 = vector.broadcast %330 : vector<1x64xf32> to vector<2x64xf32>
    %352 = arith.addf %350, %351 : vector<2x64xf32>
    %cst_220 = arith.constant 0.000000e+00 : f32
    %353 = vector.broadcast %cst_220 : f32 to vector<2x64xf32>
    %354 = arith.maximumf %352, %353 : vector<2x64xf32>
    %c2_221 = arith.constant 2 : index
    %c0_222 = arith.constant 0 : index
    %c0_223 = arith.constant 0 : index
    %355 = vector.load %arg24[%c2_221, %c0_222, %c0_223] : memref<3x64x128xf32, #tpu.memory_space<vmem>>, vector<1x64x128xf32>
    %356 = vector.shape_cast %355 : vector<1x64x128xf32> to vector<64x128xf32>
    %cst_224 = arith.constant dense<0.000000e+00> : vector<2x128xf32>
    %357 = tpu.matmul %354, %356, %cst_224 {dimension_numbers = #tpu.dot_dimension_numbers<[1], [0], [0], [1], [0, 0, 1, 1], [], []>} : vector<2x64xf32>, vector<64x128xf32>, vector<2x128xf32> -> vector<2x128xf32>
    %358 = arith.addf %252, %357 : vector<2x128xf32>
    %c0_225 = arith.constant 0 : index
    %c0_226 = arith.constant 0 : index
    %359 = vector.load %arg25[%c0_225, %c0_226] : memref<1x128xf32, #tpu.memory_space<vmem>>, vector<1x128xf32>
    %360 = vector.broadcast %359 : vector<1x128xf32> to vector<2x128xf32>
    %361 = arith.addf %358, %360 : vector<2x128xf32>
    %362 = arith.negf %361 : vector<2x128xf32>
    %363 = math.exp %362 : vector<2x128xf32>
    %cst_227 = arith.constant 1.000000e+00 : f32
    %364 = vector.broadcast %cst_227 : f32 to vector<2x128xf32>
    %365 = arith.addf %364, %363 : vector<2x128xf32>
    %366 = arith.divf %364, %365 : vector<2x128xf32>
    %c0_228 = arith.constant 0 : index
    %c0_229 = arith.constant 0 : index
    %367 = vector.load %arg26[%c0_228, %c0_229] : memref<2x128xf32, #tpu.memory_space<vmem>>, vector<2x128xf32>
    tpu.vector_store %arg26[%c0_228, %c0_229], %366 {strides = array<i32>} : memref<2x128xf32, #tpu.memory_space<vmem>>, vector<2x128xf32>,
    return
  }
  func.func @transform_0(%arg0: i32) -> (i32, i32) {
    %c0_i32 = arith.constant 0 : i32
    %c0_i32_0 = arith.constant 0 : i32
    %c0_i32_1 = arith.constant 0 : i32
    return %c0_i32, %c0_i32_0 : i32, i32
  }
  func.func @transform_1(%arg0: i32) -> (i32, i32) {
    %c0_i32 = arith.constant 0 : i32
    %c0_i32_0 = arith.constant 0 : i32
    %c0_i32_1 = arith.constant 0 : i32
    return %c0_i32, %c0_i32_0 : i32, i32
  }
  func.func @transform_2(%arg0: i32) -> (i32, i32) {
    %c0_i32 = arith.constant 0 : i32
    %c0_i32_0 = arith.constant 0 : i32
    %c0_i32_1 = arith.constant 0 : i32
    return %c0_i32, %c0_i32_0 : i32, i32
  }
  func.func @transform_3(%arg0: i32) -> (i32, i32) {
    %c0_i32 = arith.constant 0 : i32
    %c0_i32_0 = arith.constant 0 : i32
    %c0_i32_1 = arith.constant 0 : i32
    return %c0_i32, %c0_i32_0 : i32, i32
  }
  func.func @transform_4(%arg0: i32) -> (i32, i32) {
    %c0_i32 = arith.constant 0 : i32
    %c0_i32_0 = arith.constant 0 : i32
    %c0_i32_1 = arith.constant 0 : i32
    return %c0_i32, %c0_i32_0 : i32, i32
  }
  func.func @transform_5(%arg0: i32) -> (i32, i32) {
    %c0_i32 = arith.constant 0 : i32
    %c0_i32_0 = arith.constant 0 : i32
    %c0_i32_1 = arith.constant 0 : i32
    return %c0_i32, %c0_i32_0 : i32, i32
  }
  func.func @transform_6(%arg0: i32) -> (i32, i32) {
    %c0_i32 = arith.constant 0 : i32
    %c0_i32_0 = arith.constant 0 : i32
    %c0_i32_1 = arith.constant 0 : i32
    return %c0_i32, %c0_i32_0 : i32, i32
  }
  func.func @transform_7(%arg0: i32) -> (i32, i32) {
    %c0_i32 = arith.constant 0 : i32
    %c0_i32_0 = arith.constant 0 : i32
    %c0_i32_1 = arith.constant 0 : i32
    return %c0_i32, %c0_i32_0 : i32, i32
  }
  func.func @transform_8(%arg0: i32) -> (i32, i32, i32) {
    %c0_i32 = arith.constant 0 : i32
    %c0_i32_0 = arith.constant 0 : i32
    %c0_i32_1 = arith.constant 0 : i32
    %c0_i32_2 = arith.constant 0 : i32
    return %c0_i32, %c0_i32_0, %c0_i32_1 : i32, i32, i32
  }
  func.func @transform_9(%arg0: i32) -> (i32, i32, i32) {
    %c0_i32 = arith.constant 0 : i32
    %c0_i32_0 = arith.constant 0 : i32
    %c0_i32_1 = arith.constant 0 : i32
    %c0_i32_2 = arith.constant 0 : i32
    return %c0_i32, %c0_i32_0, %c0_i32_1 : i32, i32, i32
  }
  func.func @transform_10(%arg0: i32) -> (i32, i32) {
    %c0_i32 = arith.constant 0 : i32
    %c0_i32_0 = arith.constant 0 : i32
    %c0_i32_1 = arith.constant 0 : i32
    return %c0_i32, %c0_i32_0 : i32, i32
  }
  func.func @transform_11(%arg0: i32) -> (i32, i32) {
    %c0_i32 = arith.constant 0 : i32
    %c0_i32_0 = arith.constant 0 : i32
    %c0_i32_1 = arith.constant 0 : i32
    return %c0_i32, %c0_i32_0 : i32, i32
  }
  func.func @transform_12(%arg0: i32) -> (i32, i32) {
    %c0_i32 = arith.constant 0 : i32
    %c0_i32_0 = arith.constant 0 : i32
    %c0_i32_1 = arith.constant 0 : i32
    return %c0_i32, %c0_i32_0 : i32, i32
  }
  func.func @transform_13(%arg0: i32) -> (i32, i32, i32) {
    %c0_i32 = arith.constant 0 : i32
    %c0_i32_0 = arith.constant 0 : i32
    %c0_i32_1 = arith.constant 0 : i32
    %c0_i32_2 = arith.constant 0 : i32
    return %c0_i32, %c0_i32_0, %c0_i32_1 : i32, i32, i32
  }
  func.func @transform_14(%arg0: i32) -> (i32, i32, i32) {
    %c0_i32 = arith.constant 0 : i32
    %c0_i32_0 = arith.constant 0 : i32
    %c0_i32_1 = arith.constant 0 : i32
    %c0_i32_2 = arith.constant 0 : i32
    return %c0_i32, %c0_i32_0, %c0_i32_1 : i32, i32, i32
  }
  func.func @transform_15(%arg0: i32) -> (i32, i32) {
    %c0_i32 = arith.constant 0 : i32
    %c0_i32_0 = arith.constant 0 : i32
    %c0_i32_1 = arith.constant 0 : i32
    return %c0_i32, %c0_i32_0 : i32, i32
  }
  func.func @transform_16(%arg0: i32) -> (i32, i32) {
    %c0_i32 = arith.constant 0 : i32
    %c0_i32_0 = arith.constant 0 : i32
    %c0_i32_1 = arith.constant 0 : i32
    return %c0_i32, %c0_i32_0 : i32, i32
  }
  func.func @transform_17(%arg0: i32) -> (i32, i32) {
    %c0_i32 = arith.constant 0 : i32
    %c0_i32_0 = arith.constant 0 : i32
    %c0_i32_1 = arith.constant 0 : i32
    return %c0_i32, %c0_i32_0 : i32, i32
  }
  func.func @transform_18(%arg0: i32) -> (i32, i32, i32) {
    %c0_i32 = arith.constant 0 : i32
    %c0_i32_0 = arith.constant 0 : i32
    %c0_i32_1 = arith.constant 0 : i32
    %c0_i32_2 = arith.constant 0 : i32
    return %c0_i32, %c0_i32_0, %c0_i32_1 : i32, i32, i32
  }
  func.func @transform_19(%arg0: i32) -> (i32, i32, i32) {
    %c0_i32 = arith.constant 0 : i32
    %c0_i32_0 = arith.constant 0 : i32
    %c0_i32_1 = arith.constant 0 : i32
    %c0_i32_2 = arith.constant 0 : i32
    return %c0_i32, %c0_i32_0, %c0_i32_1 : i32, i32, i32
  }
  func.func @transform_20(%arg0: i32) -> (i32, i32) {
    %c0_i32 = arith.constant 0 : i32
    %c0_i32_0 = arith.constant 0 : i32
    %c0_i32_1 = arith.constant 0 : i32
    return %c0_i32, %c0_i32_0 : i32, i32
  }
  func.func @transform_21(%arg0: i32) -> (i32, i32) {
    %c0_i32 = arith.constant 0 : i32
    %c0_i32_0 = arith.constant 0 : i32
    %c0_i32_1 = arith.constant 0 : i32
    return %c0_i32, %c0_i32_0 : i32, i32
  }
  func.func @transform_22(%arg0: i32) -> (i32, i32) {
    %c0_i32 = arith.constant 0 : i32
    %c0_i32_0 = arith.constant 0 : i32
    %c0_i32_1 = arith.constant 0 : i32
    return %c0_i32, %c0_i32_0 : i32, i32
  }
  func.func @transform_23(%arg0: i32) -> (i32, i32, i32) {
    %c0_i32 = arith.constant 0 : i32
    %c0_i32_0 = arith.constant 0 : i32
    %c0_i32_1 = arith.constant 0 : i32
    %c0_i32_2 = arith.constant 0 : i32
    return %c0_i32, %c0_i32_0, %c0_i32_1 : i32, i32, i32
  }
  func.func @transform_24(%arg0: i32) -> (i32, i32) {
    %c0_i32 = arith.constant 0 : i32
    %c0_i32_0 = arith.constant 0 : i32
    %c0_i32_1 = arith.constant 0 : i32
    return %c0_i32, %c0_i32_0 : i32, i32
  }
  func.func @transform_25(%arg0: i32) -> (i32, i32) {
    %c0_i32 = arith.constant 0 : i32
    %c0_i32_0 = arith.constant 0 : i32
    %c0_i32_1 = arith.constant 0 : i32
    return %c0_i32, %c0_i32_0 : i32, i32
  }
}

</mosaic_0001>

<llo_original>
// kernel: decoder_forward.1
$region0: #{decoder_forward.1}
  #allocation0 [shape = 'u32[]', space=smem, size = 0x4, offset = 0x4, fixed_abs, tag = 'smem constant byte address 0x4 - core index']
  #allocation1 [shape = 'u32[144,128]{1,0:T(1,128)}', space=vmem, size = 0x12000, scoped, tag = 'internal scratch']
  %s0 = inlined_call_operand.hbm [shape: f32[2,16], index: 0, kind: input, shape index: {}]
  %s1 = inlined_call_operand.vmem [shape: f32[16,64], index: 1, kind: input, shape index: {}]
  %s2 = inlined_call_operand.hbm [shape: f32[1,64], index: 2, kind: input, shape index: {}]
  %s3 = inlined_call_operand.vmem [shape: f32[64,256], index: 3, kind: input, shape index: {}]
  %s4 = inlined_call_operand.hbm [shape: f32[1,256], index: 4, kind: input, shape index: {}]
  %s5 = inlined_call_operand.hbm [shape: f32[1,256], index: 5, kind: input, shape index: {}]
  %s6 = inlined_call_operand.hbm [shape: f32[1,256], index: 6, kind: input, shape index: {}]
  %s7 = inlined_call_operand.vmem [shape: f32[256,256], index: 7, kind: input, shape index: {}]
  %s8 = inlined_call_operand.hbm [shape: f32[3,256,256], index: 8, kind: input, shape index: {}]
  %s9 = inlined_call_operand.vmem [shape: f32[3,1,256], index: 9, kind: input, shape index: {}]
  %s10 = inlined_call_operand.hbm [shape: f32[1,256], index: 10, kind: input, shape index: {}]
  %s11 = inlined_call_operand.hbm [shape: f32[1,256], index: 11, kind: input, shape index: {}]
  %s12 = inlined_call_operand.vmem [shape: f32[256,256], index: 12, kind: input, shape index: {}]
  %s13 = inlined_call_operand.hbm [shape: f32[3,256,256], index: 13, kind: input, shape index: {}]
  %s14 = inlined_call_operand.hbm [shape: f32[3,1,256], index: 14, kind: input, shape index: {}]
  %s15 = inlined_call_operand.hbm [shape: f32[1,256], index: 15, kind: input, shape index: {}]
  %s16 = inlined_call_operand.hbm [shape: f32[1,256], index: 16, kind: input, shape index: {}]
  %s17 = inlined_call_operand.hbm [shape: f32[256,256], index: 17, kind: input, shape index: {}]
  %s18 = inlined_call_operand.vmem [shape: f32[3,256,64], index: 18, kind: input, shape index: {}]
  %s19 = inlined_call_operand.vmem [shape: f32[3,1,64], index: 19, kind: input, shape index: {}]
  %s20 = inlined_call_operand.hbm [shape: f32[1,64], index: 20, kind: input, shape index: {}]
  %s21 = inlined_call_operand.hbm [shape: f32[1,64], index: 21, kind: input, shape index: {}]
  %s22 = inlined_call_operand.hbm [shape: f32[64,64], index: 22, kind: input, shape index: {}]
  %s23 = inlined_call_operand.hbm [shape: f32[3,64,128], index: 23, kind: input, shape index: {}]
  %s24 = inlined_call_operand.hbm [shape: f32[1,128], index: 24, kind: input, shape index: {}]
  %s25 = inlined_call_operand.vmem [shape: f32[2,128], index: 25, kind: output, shape index: {}]
  %s26 = sld [smem:[#allocation0]]
  $region182: #{decoder_forward.1} parent=0
    _
  %s28 = ssub.s32 1, %s26
  %s29 = scalar_select 0, %s28, %s26
  $region1: #{decoder_forward.1} parent=0
    #allocation2 [shape = 'u8[1024]{0}', space=vmem, size = 0x400, scoped, tag = 'input window, operand 0, single buffered']
    #allocation3 [shape = 's32[1]{0}', space=sflag, size = 0x4, scoped, tag = 'scoped memory for decoder_forward.1']
    #allocation4 [shape = 'u8[512]{0}', space=vmem, size = 0x400, scoped, tag = 'input window, operand 2, single buffered']
    #allocation5 [shape = 's32[1]{0}', space=sflag, size = 0x4, scoped, tag = 'scoped memory for decoder_forward.1']
    #allocation6 [shape = 'u8[1024]{0}', space=vmem, size = 0x400, scoped, tag = 'input window, operand 4, single buffered']
    #allocation7 [shape = 'u8[1024]{0}', space=vmem, size = 0x400, scoped, tag = 'input window, operand 5, single buffered']
    #allocation8 [shape = 's32[1]{0}', space=sflag, size = 0x4, scoped, tag = 'scoped memory for decoder_forward.1']
    #allocation9 [shape = 'u8[1024]{0}', space=vmem, size = 0x400, scoped, tag = 'input window, operand 6, single buffered']
    #allocation10 [shape = 'u8[786432]{0}', space=vmem, size = 0xc0000, scoped, tag = 'input window, operand 8, single buffered']
    #allocation11 [shape = 's32[1]{0}', space=sflag, size = 0x4, scoped, tag = 'scoped memory for decoder_forward.1']
    #allocation12 [shape = 'u8[1024]{0}', space=vmem, size = 0x400, scoped, tag = 'input window, operand 10, single buffered']
    #allocation13 [shape = 'u8[1024]{0}', space=vmem, size = 0x400, scoped, tag = 'input window, operand 11, single buffered']
    #allocation14 [shape = 's32[1]{0}', space=sflag, size = 0x4, scoped, tag = 'scoped memory for decoder_forward.1']
    #allocation15 [shape = 'u8[786432]{0}', space=vmem, size = 0xc0000, scoped, tag = 'input window, operand 13, single buffered']
    #allocation16 [shape = 'u8[3072]{0}', space=vmem, size = 0xc00, scoped, tag = 'input window, operand 14, single buffered']
    #allocation17 [shape = 's32[1]{0}', space=sflag, size = 0x4, scoped, tag = 'scoped memory for decoder_forward.1']
    #allocation18 [shape = 'u8[1024]{0}', space=vmem, size = 0x400, scoped, tag = 'input window, operand 15, single buffered']
    #allocation19 [shape = 'u8[1024]{0}', space=vmem, size = 0x400, scoped, tag = 'input window, operand 16, single buffered']
    #allocation20 [shape = 's32[1]{0}', space=sflag, size = 0x4, scoped, tag = 'scoped memory for decoder_forward.1']
    #allocation21 [shape = 'u8[262144]{0}', space=vmem, size = 0x40000, scoped, tag = 'input window, operand 17, single buffered']
    #allocation22 [shape = 'u8[512]{0}', space=vmem, size = 0x400, scoped, tag = 'input window, operand 20, single buffered']
    #allocation23 [shape = 's32[1]{0}', space=sflag, size = 0x4, scoped, tag = 'scoped memory for decoder_forward.1']
    #allocation24 [shape = 'u8[512]{0}', space=vmem, size = 0x400, scoped, tag = 'input window, operand 21, single buffered']
    #allocation25 [shape = 'u8[32768]{0}', space=vmem, size = 0x8000, scoped, tag = 'input window, operand 22, single buffered']
    #allocation26 [shape = 's32[1]{0}', space=sflag, size = 0x4, scoped, tag = 'scoped memory for decoder_forward.1']
    #allocation27 [shape = 'u8[98304]{0}', space=vmem, size = 0x18000, scoped, tag = 'input window, operand 23, single buffered']
    #allocation28 [shape = 'u8[512]{0}', space=vmem, size = 0x400, scoped, tag = 'input window, operand 24, single buffered']
    #allocation29 [shape = 's32[1]{0}', space=sflag, size = 0x4, scoped, tag = 'scoped memory for decoder_forward.1']
    %30 = vsyncpa [#allocation3], 0
    %31 = vsyncpa [#allocation5], 0
    %32 = vsyncpa [#allocation8], 0
    %33 = vsyncpa [#allocation11], 0
    %34 = vsyncpa [#allocation14], 0
    %35 = vsyncpa [#allocation17], 0
    %36 = vsyncpa [#allocation20], 0
    %37 = vsyncpa [#allocation23], 0
    %38 = vsyncpa [#allocation26], 0
    %39 = vsyncpa [#allocation29], 0
    // Predicated region
    $region2: #{decoder_forward.1} parent=1 // pred_check
      _
    $region3: #{decoder_forward.1} parent=1 // pred_check_branch
      %41 = sbr.rel (0) target = $region5
    $region4: #{decoder_forward.1} parent=1 // pred_region
      %s43 = ssub.s32 32, 32
      %44 = vsyncadd [#allocation3], %s43
      %s46 = sshll.u32 [#allocation2], 4
      %s47 = int_to_ptr.vmem [resolvable:$true] %s46
      %49 = dma.hbm_to_vmem [thread:$0]  %s0, 32, %s47, [#allocation3]
    $region5: #{decoder_forward.1} parent=1 // pred_fallthru
      _
    // Predicated region
    $region6: #{decoder_forward.1} parent=1 // pred_check
      _
    $region7: #{decoder_forward.1} parent=1 // pred_check_branch
      %51 = sbr.rel (0) target = $region9
    $region8: #{decoder_forward.1} parent=1 // pred_region
      _
    $region9: #{decoder_forward.1} parent=1 // pred_fallthru
      _
    // Predicated region
    $region10: #{decoder_forward.1} parent=1 // pred_check
      _
    $region11: #{decoder_forward.1} parent=1 // pred_check_branch
      %53 = sbr.rel (0) target = $region13
    $region12: #{decoder_forward.1} parent=1 // pred_region
      %s55 = ssub.s32 16, 16
      %56 = vsyncadd [#allocation5], %s55
      %s58 = sshll.u32 [#allocation4], 4
      %s59 = int_to_ptr.vmem [resolvable:$true] %s58
      %61 = dma.hbm_to_vmem [thread:$0]  %s2, 16, %s59, [#allocation5]
    $region13: #{decoder_forward.1} parent=1 // pred_fallthru
      _
    // Predicated region
    $region14: #{decoder_forward.1} parent=1 // pred_check
      _
    $region15: #{decoder_forward.1} parent=1 // pred_check_branch
      %63 = sbr.rel (0) target = $region17
    $region16: #{decoder_forward.1} parent=1 // pred_region
      _
    $region17: #{decoder_forward.1} parent=1 // pred_fallthru
      _
    // Predicated region
    $region18: #{decoder_forward.1} parent=1 // pred_check
      _
    $region19: #{decoder_forward.1} parent=1 // pred_check_branch
      %65 = sbr.rel (0) target = $region21
    $region20: #{decoder_forward.1} parent=1 // pred_region
      %s67 = ssub.s32 32, 32
      %68 = vsyncadd [#allocation5], %s67
      %s70 = sshll.u32 [#allocation6], 4
      %s71 = int_to_ptr.vmem [resolvable:$true] %s70
      %73 = dma.hbm_to_vmem [thread:$0]  %s4, 32, %s71, [#allocation5]
    $region21: #{decoder_forward.1} parent=1 // pred_fallthru
      _
    // Predicated region
    $region22: #{decoder_forward.1} parent=1 // pred_check
      _
    $region23: #{decoder_forward.1} parent=1 // pred_check_branch
      %75 = sbr.rel (0) target = $region25
    $region24: #{decoder_forward.1} parent=1 // pred_region
      %s77 = ssub.s32 32, 32
      %78 = vsyncadd [#allocation8], %s77
      %s80 = sshll.u32 [#allocation7], 4
      %s81 = int_to_ptr.vmem [resolvable:$true] %s80
      %83 = dma.hbm_to_vmem [thread:$0]  %s5, 32, %s81, [#allocation8]
    $region25: #{decoder_forward.1} parent=1 // pred_fallthru
      _
    // Predicated region
    $region26: #{decoder_forward.1} parent=1 // pred_check
      _
    $region27: #{decoder_forward.1} parent=1 // pred_check_branch
      %85 = sbr.rel (0) target = $region29
    $region28: #{decoder_forward.1} parent=1 // pred_region
      %s87 = ssub.s32 32, 32
      %88 = vsyncadd [#allocation8], %s87
      %s90 = sshll.u32 [#allocation9], 4
      %s91 = int_to_ptr.vmem [resolvable:$true] %s90
      %93 = dma.hbm_to_vmem [thread:$0]  %s6, 32, %s91, [#allocation8]
    $region29: #{decoder_forward.1} parent=1 // pred_fallthru
      _
    // Predicated region
    $region30: #{decoder_forward.1} parent=1 // pred_check
      _
    $region31: #{decoder_forward.1} parent=1 // pred_check_branch
      %95 = sbr.rel (0) target = $region33
    $region32: #{decoder_forward.1} parent=1 // pred_region
      _
    $region33: #{decoder_forward.1} parent=1 // pred_fallthru
      _
    // Predicated region
    $region34: #{decoder_forward.1} parent=1 // pred_check
      _
    $region35: #{decoder_forward.1} parent=1 // pred_check_branch
      %97 = sbr.rel (0) target = $region37
    $region36: #{decoder_forward.1} parent=1 // pred_region
      %s99 = ssub.s32 24576, 24576
      %100 = vsyncadd [#allocation11], %s99
      %s101 = sshll.u32 [#allocation10], 4
      %s102 = int_to_ptr.vmem [resolvable:$true] %s101
      %107 = dma.hbm_to_vmem [thread:$0]  %s8, 24576, %s102, [#allocation11], 256, 256, 16
    $region37: #{decoder_forward.1} parent=1 // pred_fallthru
      _
    // Predicated region
    $region38: #{decoder_forward.1} parent=1 // pred_check
      _
    $region39: #{decoder_forward.1} parent=1 // pred_check_branch
      %109 = sbr.rel (0) target = $region41
    $region40: #{decoder_forward.1} parent=1 // pred_region
      _
    $region41: #{decoder_forward.1} parent=1 // pred_fallthru
      _
    // Predicated region
    $region42: #{decoder_forward.1} parent=1 // pred_check
      _
    $region43: #{decoder_forward.1} parent=1 // pred_check_branch
      %111 = sbr.rel (0) target = $region45
    $region44: #{decoder_forward.1} parent=1 // pred_region
      %s113 = ssub.s32 32, 32
      %114 = vsyncadd [#allocation11], %s113
      %s116 = sshll.u32 [#allocation12], 4
      %s117 = int_to_ptr.vmem [resolvable:$true] %s116
      %119 = dma.hbm_to_vmem [thread:$0]  %s10, 32, %s117, [#allocation11]
    $region45: #{decoder_forward.1} parent=1 // pred_fallthru
      _
    // Predicated region
    $region46: #{decoder_forward.1} parent=1 // pred_check
      _
    $region47: #{decoder_forward.1} parent=1 // pred_check_branch
      %121 = sbr.rel (0) target = $region49
    $region48: #{decoder_forward.1} parent=1 // pred_region
      %s123 = ssub.s32 32, 32
      %124 = vsyncadd [#allocation14], %s123
      %s126 = sshll.u32 [#allocation13], 4
      %s127 = int_to_ptr.vmem [resolvable:$true] %s126
      %129 = dma.hbm_to_vmem [thread:$0]  %s11, 32, %s127, [#allocation14]
    $region49: #{decoder_forward.1} parent=1 // pred_fallthru
      _
    // Predicated region
    $region50: #{decoder_forward.1} parent=1 // pred_check
      _
    $region51: #{decoder_forward.1} parent=1 // pred_check_branch
      %131 = sbr.rel (0) target = $region53
    $region52: #{decoder_forward.1} parent=1 // pred_region
      _
    $region53: #{decoder_forward.1} parent=1 // pred_fallthru
      _
    // Predicated region
    $region54: #{decoder_forward.1} parent=1 // pred_check
      _
    $region55: #{decoder_forward.1} parent=1 // pred_check_branch
      %133 = sbr.rel (0) target = $region57
    $region56: #{decoder_forward.1} parent=1 // pred_region
      %s135 = ssub.s32 24576, 24576
      %136 = vsyncadd [#allocation14], %s135
      %s137 = sshll.u32 [#allocation15], 4
      %s138 = int_to_ptr.vmem [resolvable:$true] %s137
      %143 = dma.hbm_to_vmem [thread:$0]  %s13, 24576, %s138, [#allocation14], 256, 256, 16
    $region57: #{decoder_forward.1} parent=1 // pred_fallthru
      _
    // Predicated region
    $region58: #{decoder_forward.1} parent=1 // pred_check
      _
    $region59: #{decoder_forward.1} parent=1 // pred_check_branch
      %145 = sbr.rel (0) target = $region61
    $region60: #{decoder_forward.1} parent=1 // pred_region
      %s147 = ssub.s32 96, 96
      %148 = vsyncadd [#allocation17], %s147
      %s149 = sshll.u32 [#allocation16], 4
      %s150 = int_to_ptr.vmem [resolvable:$true] %s149
      %155 = dma.hbm_to_vmem [thread:$0]  %s14, 96, %s150, [#allocation17], 32, 32, 2
    $region61: #{decoder_forward.1} parent=1 // pred_fallthru
      _
    // Predicated region
    $region62: #{decoder_forward.1} parent=1 // pred_check
      _
    $region63: #{decoder_forward.1} parent=1 // pred_check_branch
      %157 = sbr.rel (0) target = $region65
    $region64: #{decoder_forward.1} parent=1 // pred_region
      %s159 = ssub.s32 32, 32
      %160 = vsyncadd [#allocation17], %s159
      %s162 = sshll.u32 [#allocation18], 4
      %s163 = int_to_ptr.vmem [resolvable:$true] %s162
      %165 = dma.hbm_to_vmem [thread:$0]  %s15, 32, %s163, [#allocation17]
    $region65: #{decoder_forward.1} parent=1 // pred_fallthru
      _
    // Predicated region
    $region66: #{decoder_forward.1} parent=1 // pred_check
      _
    $region67: #{decoder_forward.1} parent=1 // pred_check_branch
      %167 = sbr.rel (0) target = $region69
    $region68: #{decoder_forward.1} parent=1 // pred_region
      %s169 = ssub.s32 32, 32
      %170 = vsyncadd [#allocation20], %s169
      %s172 = sshll.u32 [#allocation19], 4
      %s173 = int_to_ptr.vmem [resolvable:$true] %s172
      %175 = dma.hbm_to_vmem [thread:$0]  %s16, 32, %s173, [#allocation20]
    $region69: #{decoder_forward.1} parent=1 // pred_fallthru
      _
    // Predicated region
    $region70: #{decoder_forward.1} parent=1 // pred_check
      _
    $region71: #{decoder_forward.1} parent=1 // pred_check_branch
      %177 = sbr.rel (0) target = $region73
    $region72: #{decoder_forward.1} parent=1 // pred_region
      %s179 = ssub.s32 8192, 8192
      %180 = vsyncadd [#allocation20], %s179
      %s181 = sshll.u32 [#allocation21], 4
      %s182 = int_to_ptr.vmem [resolvable:$true] %s181
      %187 = dma.hbm_to_vmem [thread:$0]  %s17, 8192, %s182, [#allocation20], 256, 256, 16
    $region73: #{decoder_forward.1} parent=1 // pred_fallthru
      _
    // Predicated region
    $region74: #{decoder_forward.1} parent=1 // pred_check
      _
    $region75: #{decoder_forward.1} parent=1 // pred_check_branch
      %189 = sbr.rel (0) target = $region77
    $region76: #{decoder_forward.1} parent=1 // pred_region
      _
    $region77: #{decoder_forward.1} parent=1 // pred_fallthru
      _
    // Predicated region
    $region78: #{decoder_forward.1} parent=1 // pred_check
      _
    $region79: #{decoder_forward.1} parent=1 // pred_check_branch
      %191 = sbr.rel (0) target = $region81
    $region80: #{decoder_forward.1} parent=1 // pred_region
      _
    $region81: #{decoder_forward.1} parent=1 // pred_fallthru
      _
    // Predicated region
    $region82: #{decoder_forward.1} parent=1 // pred_check
      _
    $region83: #{decoder_forward.1} parent=1 // pred_check_branch
      %193 = sbr.rel (0) target = $region85
    $region84: #{decoder_forward.1} parent=1 // pred_region
      %s195 = ssub.s32 16, 16
      %196 = vsyncadd [#allocation23], %s195
      %s198 = sshll.u32 [#allocation22], 4
      %s199 = int_to_ptr.vmem [resolvable:$true] %s198
      %201 = dma.hbm_to_vmem [thread:$0]  %s20, 16, %s199, [#allocation23]
    $region85: #{decoder_forward.1} parent=1 // pred_fallthru
      _
    // Predicated region
    $region86: #{decoder_forward.1} parent=1 // pred_check
      _
    $region87: #{decoder_forward.1} parent=1 // pred_check_branch
      %203 = sbr.rel (0) target = $region89
    $region88: #{decoder_forward.1} parent=1 // pred_region
      %s205 = ssub.s32 16, 16
      %206 = vsyncadd [#allocation23], %s205
      %s208 = sshll.u32 [#allocation24], 4
      %s209 = int_to_ptr.vmem [resolvable:$true] %s208
      %211 = dma.hbm_to_vmem [thread:$0]  %s21, 16, %s209, [#allocation23]
    $region89: #{decoder_forward.1} parent=1 // pred_fallthru
      _
    // Predicated region
    $region90: #{decoder_forward.1} parent=1 // pred_check
      _
    $region91: #{decoder_forward.1} parent=1 // pred_check_branch
      %213 = sbr.rel (0) target = $region93
    $region92: #{decoder_forward.1} parent=1 // pred_region
      %s215 = ssub.s32 1024, 1024
      %216 = vsyncadd [#allocation26], %s215
      %s217 = sshll.u32 [#allocation25], 4
      %s218 = int_to_ptr.vmem [resolvable:$true] %s217
      %223 = dma.hbm_to_vmem [thread:$0]  %s22, 1024, %s218, [#allocation26], 128, 128, 8
    $region93: #{decoder_forward.1} parent=1 // pred_fallthru
      _
    // Predicated region
    $region94: #{decoder_forward.1} parent=1 // pred_check
      _
    $region95: #{decoder_forward.1} parent=1 // pred_check_branch
      %225 = sbr.rel (0) target = $region97
    $region96: #{decoder_forward.1} parent=1 // pred_region
      %s227 = ssub.s32 3072, 3072
      %228 = vsyncadd [#allocation26], %s227
      %s229 = sshll.u32 [#allocation27], 4
      %s230 = int_to_ptr.vmem [resolvable:$true] %s229
      %235 = dma.hbm_to_vmem [thread:$0]  %s23, 3072, %s230, [#allocation26], 128, 128, 8
    $region97: #{decoder_forward.1} parent=1 // pred_fallthru
      _
    // Predicated region
    $region98: #{decoder_forward.1} parent=1 // pred_check
      _
    $region99: #{decoder_forward.1} parent=1 // pred_check_branch
      %237 = sbr.rel (0) target = $region101
    $region100: #{decoder_forward.1} parent=1 // pred_region
      %s239 = ssub.s32 16, 16
      %240 = vsyncadd [#allocation29], %s239
      %s242 = sshll.u32 [#allocation28], 4
      %s243 = int_to_ptr.vmem [resolvable:$true] %s242
      %245 = dma.hbm_to_vmem [thread:$0]  %s24, 16, %s243, [#allocation29]
    $region101: #{decoder_forward.1} parent=1 // pred_fallthru
      _
    // Predicated region
    $region102: #{decoder_forward.1} parent=1 // pred_check
      _
    $region103: #{decoder_forward.1} parent=1 // pred_check_branch
      %247 = sbr.rel (0) target = $region105
    $region104: #{decoder_forward.1} parent=1 // pred_region
      %248 = dma.done [#allocation3], 32
    $region105: #{decoder_forward.1} parent=1 // pred_fallthru
      _
    // Predicated region
    $region106: #{decoder_forward.1} parent=1 // pred_check
      _
    $region107: #{decoder_forward.1} parent=1 // pred_check_branch
      %250 = sbr.rel (0) target = $region109
    $region108: #{decoder_forward.1} parent=1 // pred_region
      %251 = dma.done [#allocation5], 16
    $region109: #{decoder_forward.1} parent=1 // pred_fallthru
      _
    // Predicated region
    $region110: #{decoder_forward.1} parent=1 // pred_check
      _
    $region111: #{decoder_forward.1} parent=1 // pred_check_branch
      %253 = sbr.rel (0) target = $region113
    $region112: #{decoder_forward.1} parent=1 // pred_region
      %254 = dma.done [#allocation5], 32
    $region113: #{decoder_forward.1} parent=1 // pred_fallthru
      _
    // Predicated region
    $region114: #{decoder_forward.1} parent=1 // pred_check
      _
    $region115: #{decoder_forward.1} parent=1 // pred_check_branch
      %256 = sbr.rel (0) target = $region117
    $region116: #{decoder_forward.1} parent=1 // pred_region
      %257 = dma.done [#allocation8], 32
    $region117: #{decoder_forward.1} parent=1 // pred_fallthru
      _
    // Predicated region
    $region118: #{decoder_forward.1} parent=1 // pred_check
      _
    $region119: #{decoder_forward.1} parent=1 // pred_check_branch
      %259 = sbr.rel (0) target = $region121
    $region120: #{decoder_forward.1} parent=1 // pred_region
      %260 = dma.done [#allocation8], 32
    $region121: #{decoder_forward.1} parent=1 // pred_fallthru
      _
    // Predicated region
    $region122: #{decoder_forward.1} parent=1 // pred_check
      _
    $region123: #{decoder_forward.1} parent=1 // pred_check_branch
      %262 = sbr.rel (0) target = $region125
    $region124: #{decoder_forward.1} parent=1 // pred_region
      %263 = dma.done [#allocation11], 24576
    $region125: #{decoder_forward.1} parent=1 // pred_fallthru
      _
    // Predicated region
    $region126: #{decoder_forward.1} parent=1 // pred_check
      _
    $region127: #{decoder_forward.1} parent=1 // pred_check_branch
      %265 = sbr.rel (0) target = $region129
    $region128: #{decoder_forward.1} parent=1 // pred_region
      %266 = dma.done [#allocation11], 32
    $region129: #{decoder_forward.1} parent=1 // pred_fallthru
      _
    // Predicated region
    $region130: #{decoder_forward.1} parent=1 // pred_check
      _
    $region131: #{decoder_forward.1} parent=1 // pred_check_branch
      %268 = sbr.rel (0) target = $region133
    $region132: #{decoder_forward.1} parent=1 // pred_region
      %269 = dma.done [#allocation14], 32
    $region133: #{decoder_forward.1} parent=1 // pred_fallthru
      _
    // Predicated region
    $region134: #{decoder_forward.1} parent=1 // pred_check
      _
    $region135: #{decoder_forward.1} parent=1 // pred_check_branch
      %271 = sbr.rel (0) target = $region137
    $region136: #{decoder_forward.1} parent=1 // pred_region
      %272 = dma.done [#allocation14], 24576
    $region137: #{decoder_forward.1} parent=1 // pred_fallthru
      _
    // Predicated region
    $region138: #{decoder_forward.1} parent=1 // pred_check
      _
    $region139: #{decoder_forward.1} parent=1 // pred_check_branch
      %274 = sbr.rel (0) target = $region141
    $region140: #{decoder_forward.1} parent=1 // pred_region
      %275 = dma.done [#allocation17], 96
    $region141: #{decoder_forward.1} parent=1 // pred_fallthru
      _
    // Predicated region
    $region142: #{decoder_forward.1} parent=1 // pred_check
      _
    $region143: #{decoder_forward.1} parent=1 // pred_check_branch
      %277 = sbr.rel (0) target = $region145
    $region144: #{decoder_forward.1} parent=1 // pred_region
      %278 = dma.done [#allocation17], 32
    $region145: #{decoder_forward.1} parent=1 // pred_fallthru
      _
    // Predicated region
    $region146: #{decoder_forward.1} parent=1 // pred_check
      _
    $region147: #{decoder_forward.1} parent=1 // pred_check_branch
      %280 = sbr.rel (0) target = $region149
    $region148: #{decoder_forward.1} parent=1 // pred_region
      %281 = dma.done [#allocation20], 32
    $region149: #{decoder_forward.1} parent=1 // pred_fallthru
      _
    // Predicated region
    $region150: #{decoder_forward.1} parent=1 // pred_check
      _
    $region151: #{decoder_forward.1} parent=1 // pred_check_branch
      %283 = sbr.rel (0) target = $region153
    $region152: #{decoder_forward.1} parent=1 // pred_region
      %284 = dma.done [#allocation20], 8192
    $region153: #{decoder_forward.1} parent=1 // pred_fallthru
      _
    // Predicated region
    $region154: #{decoder_forward.1} parent=1 // pred_check
      _
    $region155: #{decoder_forward.1} parent=1 // pred_check_branch
      %286 = sbr.rel (0) target = $region157
    $region156: #{decoder_forward.1} parent=1 // pred_region
      %287 = dma.done [#allocation23], 16
    $region157: #{decoder_forward.1} parent=1 // pred_fallthru
      _
    // Predicated region
    $region158: #{decoder_forward.1} parent=1 // pred_check
      _
    $region159: #{decoder_forward.1} parent=1 // pred_check_branch
      %289 = sbr.rel (0) target = $region161
    $region160: #{decoder_forward.1} parent=1 // pred_region
      %290 = dma.done [#allocation23], 16
    $region161: #{decoder_forward.1} parent=1 // pred_fallthru
      _
    // Predicated region
    $region162: #{decoder_forward.1} parent=1 // pred_check
      _
    $region163: #{decoder_forward.1} parent=1 // pred_check_branch
      %292 = sbr.rel (0) target = $region165
    $region164: #{decoder_forward.1} parent=1 // pred_region
      %293 = dma.done [#allocation26], 1024
    $region165: #{decoder_forward.1} parent=1 // pred_fallthru
      _
    // Predicated region
    $region166: #{decoder_forward.1} parent=1 // pred_check
      _
    $region167: #{decoder_forward.1} parent=1 // pred_check_branch
      %295 = sbr.rel (0) target = $region169
    $region168: #{decoder_forward.1} parent=1 // pred_region
      %296 = dma.done [#allocation26], 3072
    $region169: #{decoder_forward.1} parent=1 // pred_fallthru
      _
    // Predicated region
    $region170: #{decoder_forward.1} parent=1 // pred_check
      _
    $region171: #{decoder_forward.1} parent=1 // pred_check_branch
      %298 = sbr.rel (0) target = $region173
    $region172: #{decoder_forward.1} parent=1 // pred_region
      %299 = dma.done [#allocation29], 16
    $region173: #{decoder_forward.1} parent=1 // pred_fallthru
      _
    %v300 = vld [vmem:[#allocation2] sm:$0x3]
    %v301 = vld [vmem:[%s1] sm:$0xff]
    %v302 = vld [vmem:[%s1 + $0x8] sm:$0xff]
    %v303 = vld [vmem:[#allocation4] sm:$0x1]
    %v305 = vlaneseq
    %v306 = vshrl.u32 %v305, 7
    %v307 = vsub.s32 0, %v306
    %v308 = vrot.slane %v303, %v307
    %vm310 = vcmask 130048
    %v312 = vsel %vm310, %v300, 0
    %314 = vmatprep.subr.mxu0 0.0
    %315 = vmatpush1.msra.mxu0 0.0
    %316 = vmatprep.subr.mxu0 0.0
    %317 = vmatpush1.msra.mxu0 0.0
    %318 = vmatprep.subr.mxu0 0.0
    %319 = vmatpush1.msra.mxu0 0.0
    %320 = vmatprep.subr.mxu0 0.0
    %321 = vmatpush1.msra.mxu0 0.0
    %322 = vmatprep.subr.mxu0 0.0
    %323 = vmatpush1.msra.mxu0 0.0
    %324 = vmatprep.subr.mxu0 0.0
    %325 = vmatpush1.msra.mxu0 0.0
    %326 = vmatprep.subr.mxu0 0.0
    %327 = vmatpush1.msra.mxu0 0.0
    %328 = vmatprep.subr.mxu0 0.0
    %329 = vmatpush1.msra.mxu0 0.0
    %330 = vmatprep.subr.mxu0 0.0
    %331 = vmatpush1.msra.mxu0 0.0
    %332 = vmatprep.subr.mxu0 0.0
    %333 = vmatpush1.msra.mxu0 0.0
    %334 = vmatprep.subr.mxu0 0.0
    %335 = vmatpush1.msra.mxu0 0.0
    %336 = vmatprep.subr.mxu0 0.0
    %337 = vmatpush1.msra.mxu0 0.0
    %338 = vmatprep.subr.mxu0 0.0
    %339 = vmatpush1.msra.mxu0 0.0
    %340 = vmatprep.subr.mxu0 0.0
    %341 = vmatpush1.msra.mxu0 0.0
    %342 = vmatprep.subr.mxu0 0.0
    %343 = vmatpush1.msra.mxu0 %v302
    %344 = vmatprep.subr.mxu0 0.0
    %345 = vmatpush1.msra.mxu0 %v301
    %346 = vmatprep.subr.mxu0 0.0
    %347 = vmatpush2.msra.mxu0 0.0
    %348 = vmatprep.subr.mxu0 0.0
    %349 = vmatpush2.msra.mxu0 0.0
    %350 = vmatprep.subr.mxu0 0.0
    %351 = vmatpush2.msra.mxu0 0.0
    %352 = vmatprep.subr.mxu0 0.0
    %353 = vmatpush2.msra.mxu0 0.0
    %354 = vmatprep.subr.mxu0 0.0
    %355 = vmatpush2.msra.mxu0 0.0
    %356 = vmatprep.subr.mxu0 0.0
    %357 = vmatpush2.msra.mxu0 0.0
    %358 = vmatprep.subr.mxu0 0.0
    %359 = vmatpush2.msra.mxu0 0.0
    %360 = vmatprep.subr.mxu0 0.0
    %361 = vmatpush2.msra.mxu0 0.0
    %362 = vmatprep.subr.mxu0 0.0
    %363 = vmatpush2.msra.mxu0 0.0
    %364 = vmatprep.subr.mxu0 0.0
    %365 = vmatpush2.msra.mxu0 0.0
    %366 = vmatprep.subr.mxu0 0.0
    %367 = vmatpush2.msra.mxu0 0.0
    %368 = vmatprep.subr.mxu0 0.0
    %369 = vmatpush2.msra.mxu0 0.0
    %370 = vmatprep.subr.mxu0 0.0
    %371 = vmatpush2.msra.mxu0 0.0
    %372 = vmatprep.subr.mxu0 0.0
    %373 = vmatpush2.msra.mxu0 0.0
    %374 = vmatprep.subr.mxu0 0.0
    %375 = vmatpush2.msra.mxu0 0.0
    %376 = vmatprep.subr.mxu0 0.0
    %377 = vmatpush2.msra.mxu0 0.0
    %378 = vmatprep.mubr.f32.mxu0 0.0
    %379 = vmatmul.mubr.f32.gmra.mxu0 %v312
    %v380 = vpop.f32.mrf.mxu0
    %v381 = vadd.f32 %v308, %v380
    %v382 = vpop.f32.mrf.mxu0
    %383 = vdwg.mxu0
    %v384 = vmax.f32 %v381, 0.0
    %v385 = vld [vmem:[%s3] sm:$0xff]
    %v386 = vld [vmem:[%s3 + $0x8] sm:$0xff]
    %v387 = vld [vmem:[%s3 + $0x10] sm:$0xff]
    %v388 = vld [vmem:[%s3 + $0x18] sm:$0xff]
    %v389 = vld [vmem:[%s3 + $0x20] sm:$0xff]
    %v390 = vld [vmem:[%s3 + $0x28] sm:$0xff]
    %v391 = vld [vmem:[%s3 + $0x30] sm:$0xff]
    %v392 = vld [vmem:[%s3 + $0x38] sm:$0xff]
    %v393 = vld [vmem:[%s3 + $0x40] sm:$0xff]
    %v394 = vld [vmem:[%s3 + $0x48] sm:$0xff]
    %v395 = vld [vmem:[%s3 + $0x50] sm:$0xff]
    %v396 = vld [vmem:[%s3 + $0x58] sm:$0xff]
    %v397 = vld [vmem:[%s3 + $0x60] sm:$0xff]
    %v398 = vld [vmem:[%s3 + $0x68] sm:$0xff]
    %v399 = vld [vmem:[%s3 + $0x70] sm:$0xff]
    %v400 = vld [vmem:[%s3 + $0x78] sm:$0xff]
    %v401 = vld [vmem:[#allocation6] sm:$0x3]
    %v403 = vlaneseq
    %v404 = vshrl.u32 %v403, 7
    %v405 = vsub.s32 0, %v404
    %v406 = vrot.slane %v401, %v405
    %v407 = vlaneseq
    %v408 = vshrl.u32 %v407, 7
    %v409 = vsub.s32 1, %v408
    %v410 = vrot.slane %v401, %v409
    %vm413 = vcmask 523264
    %v415 = vsel %vm413, %v384, 0
    %417 = vmatprep.subr.mxu0 0.0
    %418 = vmatpush1.msra.mxu0 0.0
    %419 = vmatprep.subr.mxu0 0.0
    %420 = vmatpush1.msra.mxu0 0.0
    %421 = vmatprep.subr.mxu0 0.0
    %422 = vmatpush1.msra.mxu0 0.0
    %423 = vmatprep.subr.mxu0 0.0
    %424 = vmatpush1.msra.mxu0 0.0
    %425 = vmatprep.subr.mxu0 0.0
    %426 = vmatpush1.msra.mxu0 0.0
    %427 = vmatprep.subr.mxu0 0.0
    %428 = vmatpush1.msra.mxu0 0.0
    %429 = vmatprep.subr.mxu0 0.0
    %430 = vmatpush1.msra.mxu0 0.0
    %431 = vmatprep.subr.mxu0 0.0
    %432 = vmatpush1.msra.mxu0 0.0
    %433 = vmatprep.subr.mxu0 %v400
    %434 = vmatpush1.msra.mxu0 %v399
    %435 = vmatprep.subr.mxu0 %v398
    %436 = vmatpush1.msra.mxu0 %v397
    %437 = vmatprep.subr.mxu0 %v396
    %438 = vmatpush1.msra.mxu0 %v395
    %439 = vmatprep.subr.mxu0 %v394
    %440 = vmatpush1.msra.mxu0 %v393
    %441 = vmatprep.subr.mxu0 %v392
    %442 = vmatpush1.msra.mxu0 %v391
    %443 = vmatprep.subr.mxu0 %v390
    %444 = vmatpush1.msra.mxu0 %v389
    %445 = vmatprep.subr.mxu0 %v388
    %446 = vmatpush1.msra.mxu0 %v387
    %447 = vmatprep.subr.mxu0 %v386
    %448 = vmatpush1.msra.mxu0 %v385
    %449 = vmatprep.subr.mxu0 0.0
    %450 = vmatpush2.msra.mxu0 0.0
    %451 = vmatprep.subr.mxu0 0.0
    %452 = vmatpush2.msra.mxu0 0.0
    %453 = vmatprep.subr.mxu0 0.0
    %454 = vmatpush2.msra.mxu0 0.0
    %455 = vmatprep.subr.mxu0 0.0
    %456 = vmatpush2.msra.mxu0 0.0
    %457 = vmatprep.subr.mxu0 0.0
    %458 = vmatpush2.msra.mxu0 0.0
    %459 = vmatprep.subr.mxu0 0.0
    %460 = vmatpush2.msra.mxu0 0.0
    %461 = vmatprep.subr.mxu0 0.0
    %462 = vmatpush2.msra.mxu0 0.0
    %463 = vmatprep.subr.mxu0 0.0
    %464 = vmatpush2.msra.mxu0 0.0
    %465 = vmatprep.subr.mxu0 0.0
    %466 = vmatpush2.msra.mxu0 0.0
    %467 = vmatprep.subr.mxu0 0.0
    %468 = vmatpush2.msra.mxu0 0.0
    %469 = vmatprep.subr.mxu0 0.0
    %470 = vmatpush2.msra.mxu0 0.0
    %471 = vmatprep.subr.mxu0 0.0
    %472 = vmatpush2.msra.mxu0 0.0
    %473 = vmatprep.subr.mxu0 0.0
    %474 = vmatpush2.msra.mxu0 0.0
    %475 = vmatprep.subr.mxu0 0.0
    %476 = vmatpush2.msra.mxu0 0.0
    %477 = vmatprep.subr.mxu0 0.0
    %478 = vmatpush2.msra.mxu0 0.0
    %479 = vmatprep.subr.mxu0 0.0
    %480 = vmatpush2.msra.mxu0 0.0
    %481 = vmatprep.mubr.f32.mxu0 0.0
    %482 = vmatmul.mubr.f32.gmra.mxu0 %v415
    %v483 = vpop.f32.mrf.mxu0
    %v484 = vadd.f32 %v406, %v483
    %v485 = vpop.f32.mrf.mxu0
    %v486 = vadd.f32 %v410, %v485
    %487 = vdwg.mxu0
    %v488 = vld [vmem:[%s7] sm:$0xff]
    %v489 = vld [vmem:[%s7 + $0x8] sm:$0xff]
    %v490 = vld [vmem:[%s7 + $0x10] sm:$0xff]
    %v491 = vld [vmem:[%s7 + $0x18] sm:$0xff]
    %v492 = vld [vmem:[%s7 + $0x20] sm:$0xff]
    %v493 = vld [vmem:[%s7 + $0x28] sm:$0xff]
    %v494 = vld [vmem:[%s7 + $0x30] sm:$0xff]
    %v495 = vld [vmem:[%s7 + $0x38] sm:$0xff]
    %v496 = vld [vmem:[%s7 + $0x40] sm:$0xff]
    %v497 = vld [vmem:[%s7 + $0x48] sm:$0xff]
    %v498 = vld [vmem:[%s7 + $0x50] sm:$0xff]
    %v499 = vld [vmem:[%s7 + $0x58] sm:$0xff]
    %v500 = vld [vmem:[%s7 + $0x60] sm:$0xff]
    %v501 = vld [vmem:[%s7 + $0x68] sm:$0xff]
    %v502 = vld [vmem:[%s7 + $0x70] sm:$0xff]
    %v503 = vld [vmem:[%s7 + $0x78] sm:$0xff]
    %v504 = vld [vmem:[%s7 + $0x80] sm:$0xff]
    %v505 = vld [vmem:[%s7 + $0x88] sm:$0xff]
    %v506 = vld [vmem:[%s7 + $0x90] sm:$0xff]
    %v507 = vld [vmem:[%s7 + $0x98] sm:$0xff]
    %v508 = vld [vmem:[%s7 + $0xa0] sm:$0xff]
    %v509 = vld [vmem:[%s7 + $0xa8] sm:$0xff]
    %v510 = vld [vmem:[%s7 + $0xb0] sm:$0xff]
    %v511 = vld [vmem:[%s7 + $0xb8] sm:$0xff]
    %v512 = vld [vmem:[%s7 + $0xc0] sm:$0xff]
    %v513 = vld [vmem:[%s7 + $0xc8] sm:$0xff]
    %v514 = vld [vmem:[%s7 + $0xd0] sm:$0xff]
    %v515 = vld [vmem:[%s7 + $0xd8] sm:$0xff]
    %v516 = vld [vmem:[%s7 + $0xe0] sm:$0xff]
    %v517 = vld [vmem:[%s7 + $0xe8] sm:$0xff]
    %v518 = vld [vmem:[%s7 + $0xf0] sm:$0xff]
    %v519 = vld [vmem:[%s7 + $0xf8] sm:$0xff]
    %v520 = vld [vmem:[%s7 + $0x100] sm:$0xff]
    %v521 = vld [vmem:[%s7 + $0x108] sm:$0xff]
    %v522 = vld [vmem:[%s7 + $0x110] sm:$0xff]
    %v523 = vld [vmem:[%s7 + $0x118] sm:$0xff]
    %v524 = vld [vmem:[%s7 + $0x120] sm:$0xff]
    %v525 = vld [vmem:[%s7 + $0x128] sm:$0xff]
    %v526 = vld [vmem:[%s7 + $0x130] sm:$0xff]
    %v527 = vld [vmem:[%s7 + $0x138] sm:$0xff]
    %v528 = vld [vmem:[%s7 + $0x140] sm:$0xff]
    %v529 = vld [vmem:[%s7 + $0x148] sm:$0xff]
    %v530 = vld [vmem:[%s7 + $0x150] sm:$0xff]
    %v531 = vld [vmem:[%s7 + $0x158] sm:$0xff]
    %v532 = vld [vmem:[%s7 + $0x160] sm:$0xff]
    %v533 = vld [vmem:[%s7 + $0x168] sm:$0xff]
    %v534 = vld [vmem:[%s7 + $0x170] sm:$0xff]
    %v535 = vld [vmem:[%s7 + $0x178] sm:$0xff]
    %v536 = vld [vmem:[%s7 + $0x180] sm:$0xff]
    %v537 = vld [vmem:[%s7 + $0x188] sm:$0xff]
    %v538 = vld [vmem:[%s7 + $0x190] sm:$0xff]
    %v539 = vld [vmem:[%s7 + $0x198] sm:$0xff]
    %v540 = vld [vmem:[%s7 + $0x1a0] sm:$0xff]
    %v541 = vld [vmem:[%s7 + $0x1a8] sm:$0xff]
    %v542 = vld [vmem:[%s7 + $0x1b0] sm:$0xff]
    %v543 = vld [vmem:[%s7 + $0x1b8] sm:$0xff]
    %v544 = vld [vmem:[%s7 + $0x1c0] sm:$0xff]
    %v545 = vld [vmem:[%s7 + $0x1c8] sm:$0xff]
    %v546 = vld [vmem:[%s7 + $0x1d0] sm:$0xff]
    %v547 = vld [vmem:[%s7 + $0x1d8] sm:$0xff]
    %v548 = vld [vmem:[%s7 + $0x1e0] sm:$0xff]
    %v549 = vld [vmem:[%s7 + $0x1e8] sm:$0xff]
    %v550 = vld [vmem:[%s7 + $0x1f0] sm:$0xff]
    %v551 = vld [vmem:[%s7 + $0x1f8] sm:$0xff]
    %v552 = vld [vmem:[#allocation7] sm:$0x3]
    %v553 = vld [vmem:[#allocation9] sm:$0x3]
    %554 = vmatprep.subr.mxu0 %v519
    %555 = vmatpush1.msra.mxu0 %v518
    %556 = vmatprep.subr.mxu0 %v517
    %557 = vmatpush1.msra.mxu0 %v516
    %558 = vmatprep.subr.mxu0 %v515
    %559 = vmatpush1.msra.mxu0 %v514
    %560 = vmatprep.subr.mxu0 %v513
    %561 = vmatpush1.msra.mxu0 %v512
    %562 = vmatprep.subr.mxu0 %v511
    %563 = vmatpush1.msra.mxu0 %v510
    %564 = vmatprep.subr.mxu0 %v509
    %565 = vmatpush1.msra.mxu0 %v508
    %566 = vmatprep.subr.mxu0 %v507
    %567 = vmatpush1.msra.mxu0 %v506
    %568 = vmatprep.subr.mxu0 %v505
    %569 = vmatpush1.msra.mxu0 %v504
    %570 = vmatprep.subr.mxu0 %v503
    %571 = vmatpush1.msra.mxu0 %v502
    %572 = vmatprep.subr.mxu0 %v501
    %573 = vmatpush1.msra.mxu0 %v500
    %574 = vmatprep.subr.mxu0 %v499
    %575 = vmatpush1.msra.mxu0 %v498
    %576 = vmatprep.subr.mxu0 %v497
    %577 = vmatpush1.msra.mxu0 %v496
    %578 = vmatprep.subr.mxu0 %v495
    %579 = vmatpush1.msra.mxu0 %v494
    %580 = vmatprep.subr.mxu0 %v493
    %581 = vmatpush1.msra.mxu0 %v492
    %582 = vmatprep.subr.mxu0 %v491
    %583 = vmatpush1.msra.mxu0 %v490
    %584 = vmatprep.subr.mxu0 %v489
    %585 = vmatpush1.msra.mxu0 %v488
    %586 = vmatprep.subr.mxu0 %v551
    %587 = vmatpush2.msra.mxu0 %v550
    %588 = vmatprep.subr.mxu0 %v549
    %589 = vmatpush2.msra.mxu0 %v548
    %590 = vmatprep.subr.mxu0 %v547
    %591 = vmatpush2.msra.mxu0 %v546
    %592 = vmatprep.subr.mxu0 %v545
    %593 = vmatpush2.msra.mxu0 %v544
    %594 = vmatprep.subr.mxu0 %v543
    %595 = vmatpush2.msra.mxu0 %v542
    %596 = vmatprep.subr.mxu0 %v541
    %597 = vmatpush2.msra.mxu0 %v540
    %598 = vmatprep.subr.mxu0 %v539
    %599 = vmatpush2.msra.mxu0 %v538
    %600 = vmatprep.subr.mxu0 %v537
    %601 = vmatpush2.msra.mxu0 %v536
    %602 = vmatprep.subr.mxu0 %v535
    %603 = vmatpush2.msra.mxu0 %v534
    %604 = vmatprep.subr.mxu0 %v533
    %605 = vmatpush2.msra.mxu0 %v532
    %606 = vmatprep.subr.mxu0 %v531
    %607 = vmatpush2.msra.mxu0 %v530
    %608 = vmatprep.subr.mxu0 %v529
    %609 = vmatpush2.msra.mxu0 %v528
    %610 = vmatprep.subr.mxu0 %v527
    %611 = vmatpush2.msra.mxu0 %v526
    %612 = vmatprep.subr.mxu0 %v525
    %613 = vmatpush2.msra.mxu0 %v524
    %614 = vmatprep.subr.mxu0 %v523
    %615 = vmatpush2.msra.mxu0 %v522
    %616 = vmatprep.subr.mxu0 %v521
    %617 = vmatpush2.msra.mxu0 %v520
    %618 = vmatprep.mubr.f32.mxu0 %v486
    %619 = vmatmul.mubr.f32.gmra.mxu0 %v484
    %v620 = vpop.f32.mrf.mxu0
    %v621 = vadd.f32 0.0, %v620
    %v622 = vpop.f32.mrf.mxu0
    %v623 = vadd.f32 0.0, %v622
    %624 = vdwg.mxu0
    %vm625 = vcmask 1041408
    %v626 = vsel %vm625, %v621, 0.0
    %v627 = vrot.slane %v626, 4
    %v628 = vadd.f32 %v626, %v627
    %v629 = vrot.slane %v628, 2
    %v630 = vadd.f32 %v628, %v629
    %v631 = vrot.slane %v630, 1
    %v632 = vadd.f32 %v630, %v631
    %v633 = vsel %vm625, %v623, 0.0
    %v634 = vrot.slane %v633, 4
    %v635 = vadd.f32 %v633, %v634
    %v636 = vrot.slane %v635, 2
    %v637 = vadd.f32 %v635, %v636
    %v638 = vrot.slane %v637, 1
    %v639 = vadd.f32 %v637, %v638
    %v640 = vrcp.pop 2.0
    %v641 = vmul.f32 %v632, %v640
    %v642 = vmul.f32 %v639, %v640
    %v643 = vsub.f32 %v484, %v641
    %v644 = vsub.f32 %v486, %v642
    %v645 = vmul.f32 %v643, %v643
    %v646 = vmul.f32 %v644, %v644
    %647 = vmatprep.subr.mxu0 %v519
    %648 = vmatpush1.msra.mxu0 %v518
    %649 = vmatprep.subr.mxu0 %v517
    %650 = vmatpush1.msra.mxu0 %v516
    %651 = vmatprep.subr.mxu0 %v515
    %652 = vmatpush1.msra.mxu0 %v514
    %653 = vmatprep.subr.mxu0 %v513
    %654 = vmatpush1.msra.mxu0 %v512
    %655 = vmatprep.subr.mxu0 %v511
    %656 = vmatpush1.msra.mxu0 %v510
    %657 = vmatprep.subr.mxu0 %v509
    %658 = vmatpush1.msra.mxu0 %v508
    %659 = vmatprep.subr.mxu0 %v507
    %660 = vmatpush1.msra.mxu0 %v506
    %661 = vmatprep.subr.mxu0 %v505
    %662 = vmatpush1.msra.mxu0 %v504
    %663 = vmatprep.subr.mxu0 %v503
    %664 = vmatpush1.msra.mxu0 %v502
    %665 = vmatprep.subr.mxu0 %v501
    %666 = vmatpush1.msra.mxu0 %v500
    %667 = vmatprep.subr.mxu0 %v499
    %668 = vmatpush1.msra.mxu0 %v498
    %669 = vmatprep.subr.mxu0 %v497
    %670 = vmatpush1.msra.mxu0 %v496
    %671 = vmatprep.subr.mxu0 %v495
    %672 = vmatpush1.msra.mxu0 %v494
    %673 = vmatprep.subr.mxu0 %v493
    %674 = vmatpush1.msra.mxu0 %v492
    %675 = vmatprep.subr.mxu0 %v491
    %676 = vmatpush1.msra.mxu0 %v490
    %677 = vmatprep.subr.mxu0 %v489
    %678 = vmatpush1.msra.mxu0 %v488
    %679 = vmatprep.subr.mxu0 %v551
    %680 = vmatpush2.msra.mxu0 %v550
    %681 = vmatprep.subr.mxu0 %v549
    %682 = vmatpush2.msra.mxu0 %v548
    %683 = vmatprep.subr.mxu0 %v547
    %684 = vmatpush2.msra.mxu0 %v546
    %685 = vmatprep.subr.mxu0 %v545
    %686 = vmatpush2.msra.mxu0 %v544
    %687 = vmatprep.subr.mxu0 %v543
    %688 = vmatpush2.msra.mxu0 %v542
    %689 = vmatprep.subr.mxu0 %v541
    %690 = vmatpush2.msra.mxu0 %v540
    %691 = vmatprep.subr.mxu0 %v539
    %692 = vmatpush2.msra.mxu0 %v538
    %693 = vmatprep.subr.mxu0 %v537
    %694 = vmatpush2.msra.mxu0 %v536
    %695 = vmatprep.subr.mxu0 %v535
    %696 = vmatpush2.msra.mxu0 %v534
    %697 = vmatprep.subr.mxu0 %v533
    %698 = vmatpush2.msra.mxu0 %v532
    %699 = vmatprep.subr.mxu0 %v531
    %700 = vmatpush2.msra.mxu0 %v530
    %701 = vmatprep.subr.mxu0 %v529
    %702 = vmatpush2.msra.mxu0 %v528
    %703 = vmatprep.subr.mxu0 %v527
    %704 = vmatpush2.msra.mxu0 %v526
    %705 = vmatprep.subr.mxu0 %v525
    %706 = vmatpush2.msra.mxu0 %v524
    %707 = vmatprep.subr.mxu0 %v523
    %708 = vmatpush2.msra.mxu0 %v522
    %709 = vmatprep.subr.mxu0 %v521
    %710 = vmatpush2.msra.mxu0 %v520
    %711 = vmatprep.mubr.f32.mxu0 %v646
    %712 = vmatmul.mubr.f32.gmra.mxu0 %v645
    %v713 = vpop.f32.mrf.mxu0
    %v714 = vadd.f32 0.0, %v713
    %v715 = vpop.f32.mrf.mxu0
    %v716 = vadd.f32 0.0, %v715
    %717 = vdwg.mxu0
    %v718 = vsel %vm625, %v714, 0.0
    %v719 = vrot.slane %v718, 4
    %v720 = vadd.f32 %v718, %v719
    %v721 = vrot.slane %v720, 2
    %v722 = vadd.f32 %v720, %v721
    %v723 = vrot.slane %v722, 1
    %v724 = vadd.f32 %v722, %v723
    %v725 = vsel %vm625, %v716, 0.0
    %v726 = vrot.slane %v725, 4
    %v727 = vadd.f32 %v725, %v726
    %v728 = vrot.slane %v727, 2
    %v729 = vadd.f32 %v727, %v728
    %v730 = vrot.slane %v729, 1
    %v731 = vadd.f32 %v729, %v730
    %v732 = vmul.f32 %v724, %v640
    %v733 = vmul.f32 %v731, %v640
    %v734 = vadd.f32 %v732, 1e-05
    %v735 = vadd.f32 %v733, 1e-05
    %v736 = vrsqrt.pop %v734
    %v737 = vrsqrt.pop %v735
    %v738 = vmul.f32 %v643, %v736
    %v739 = vmul.f32 %v644, %v737
    %v741 = vlaneseq
    %v742 = vshrl.u32 %v741, 7
    %v743 = vsub.s32 0, %v742
    %v744 = vrot.slane %v552, %v743
    %v745 = vlaneseq
    %v746 = vshrl.u32 %v745, 7
    %v747 = vsub.s32 1, %v746
    %v748 = vrot.slane %v552, %v747
    %v751 = vmul.f32 %v738, %v744
    %v752 = vmul.f32 %v739, %v748
    %v754 = vlaneseq
    %v755 = vshrl.u32 %v754, 7
    %v756 = vsub.s32 0, %v755
    %v757 = vrot.slane %v553, %v756
    %v758 = vlaneseq
    %v759 = vshrl.u32 %v758, 7
    %v760 = vsub.s32 1, %v759
    %v761 = vrot.slane %v553, %v760
    %v764 = vadd.f32 %v751, %v757
    %v765 = vadd.f32 %v752, %v761
    %v766 = vmax.f32 %v764, 0.0
    %v767 = vmax.f32 %v765, 0.0
    %v768 = vld [vmem:[#allocation10] sm:$0xff]
    %v769 = vld [vmem:[#allocation10 + $0x8] sm:$0xff]
    %v770 = vld [vmem:[#allocation10 + $0x10] sm:$0xff]
    %v771 = vld [vmem:[#allocation10 + $0x18] sm:$0xff]
    %v772 = vld [vmem:[#allocation10 + $0x20] sm:$0xff]
    %v773 = vld [vmem:[#allocation10 + $0x28] sm:$0xff]
    %v774 = vld [vmem:[#allocation10 + $0x30] sm:$0xff]
    %v775 = vld [vmem:[#allocation10 + $0x38] sm:$0xff]
    %v776 = vld [vmem:[#allocation10 + $0x40] sm:$0xff]
    %v777 = vld [vmem:[#allocation10 + $0x48] sm:$0xff]
    %v778 = vld [vmem:[#allocation10 + $0x50] sm:$0xff]
    %v779 = vld [vmem:[#allocation10 + $0x58] sm:$0xff]
    %v780 = vld [vmem:[#allocation10 + $0x60] sm:$0xff]
    %v781 = vld [vmem:[#allocation10 + $0x68] sm:$0xff]
    %v782 = vld [vmem:[#allocation10 + $0x70] sm:$0xff]
    %v783 = vld [vmem:[#allocation10 + $0x78] sm:$0xff]
    %v784 = vld [vmem:[#allocation10 + $0x80] sm:$0xff]
    %v785 = vld [vmem:[#allocation10 + $0x88] sm:$0xff]
    %v786 = vld [vmem:[#allocation10 + $0x90] sm:$0xff]
    %v787 = vld [vmem:[#allocation10 + $0x98] sm:$0xff]
    %v788 = vld [vmem:[#allocation10 + $0xa0] sm:$0xff]
    %v789 = vld [vmem:[#allocation10 + $0xa8] sm:$0xff]
    %v790 = vld [vmem:[#allocation10 + $0xb0] sm:$0xff]
    %v791 = vld [vmem:[#allocation10 + $0xb8] sm:$0xff]
    %v792 = vld [vmem:[#allocation10 + $0xc0] sm:$0xff]
    %v793 = vld [vmem:[#allocation10 + $0xc8] sm:$0xff]
    %v794 = vld [vmem:[#allocation10 + $0xd0] sm:$0xff]
    %v795 = vld [vmem:[#allocation10 + $0xd8] sm:$0xff]
    %v796 = vld [vmem:[#allocation10 + $0xe0] sm:$0xff]
    %v797 = vld [vmem:[#allocation10 + $0xe8] sm:$0xff]
    %v798 = vld [vmem:[#allocation10 + $0xf0] sm:$0xff]
    %v799 = vld [vmem:[#allocation10 + $0xf8] sm:$0xff]
    %v800 = vld [vmem:[#allocation10 + $0x100] sm:$0xff]
    %v801 = vld [vmem:[#allocation10 + $0x108] sm:$0xff]
    %v802 = vld [vmem:[#allocation10 + $0x110] sm:$0xff]
    %v803 = vld [vmem:[#allocation10 + $0x118] sm:$0xff]
    %v804 = vld [vmem:[#allocation10 + $0x120] sm:$0xff]
    %v805 = vld [vmem:[#allocation10 + $0x128] sm:$0xff]
    %v806 = vld [vmem:[#allocation10 + $0x130] sm:$0xff]
    %v807 = vld [vmem:[#allocation10 + $0x138] sm:$0xff]
    %v808 = vld [vmem:[#allocation10 + $0x140] sm:$0xff]
    %v809 = vld [vmem:[#allocation10 + $0x148] sm:$0xff]
    %v810 = vld [vmem:[#allocation10 + $0x150] sm:$0xff]
    %v811 = vld [vmem:[#allocation10 + $0x158] sm:$0xff]
    %v812 = vld [vmem:[#allocation10 + $0x160] sm:$0xff]
    %v813 = vld [vmem:[#allocation10 + $0x168] sm:$0xff]
    %v814 = vld [vmem:[#allocation10 + $0x170] sm:$0xff]
    %v815 = vld [vmem:[#allocation10 + $0x178] sm:$0xff]
    %v816 = vld [vmem:[#allocation10 + $0x180] sm:$0xff]
    %v817 = vld [vmem:[#allocation10 + $0x188] sm:$0xff]
    %v818 = vld [vmem:[#allocation10 + $0x190] sm:$0xff]
    %v819 = vld [vmem:[#allocation10 + $0x198] sm:$0xff]
    %v820 = vld [vmem:[#allocation10 + $0x1a0] sm:$0xff]
    %v821 = vld [vmem:[#allocation10 + $0x1a8] sm:$0xff]
    %v822 = vld [vmem:[#allocation10 + $0x1b0] sm:$0xff]
    %v823 = vld [vmem:[#allocation10 + $0x1b8] sm:$0xff]
    %v824 = vld [vmem:[#allocation10 + $0x1c0] sm:$0xff]
    %v825 = vld [vmem:[#allocation10 + $0x1c8] sm:$0xff]
    %v826 = vld [vmem:[#allocation10 + $0x1d0] sm:$0xff]
    %v827 = vld [vmem:[#allocation10 + $0x1d8] sm:$0xff]
    %v828 = vld [vmem:[#allocation10 + $0x1e0] sm:$0xff]
    %v829 = vld [vmem:[#allocation10 + $0x1e8] sm:$0xff]
    %v830 = vld [vmem:[#allocation10 + $0x1f0] sm:$0xff]
    %v831 = vld [vmem:[#allocation10 + $0x1f8] sm:$0xff]
    %v832 = vld [vmem:[%s9] sm:$0x3]
    %v834 = vlaneseq
    %v835 = vshrl.u32 %v834, 7
    %v836 = vsub.s32 0, %v835
    %v837 = vrot.slane %v832, %v836
    %v838 = vlaneseq
    %v839 = vshrl.u32 %v838, 7
    %v840 = vsub.s32 1, %v839
    %v841 = vrot.slane %v832, %v840
    %844 = vmatprep.subr.mxu0 %v799
    %845 = vmatpush1.msra.mxu0 %v798
    %846 = vmatprep.subr.mxu0 %v797
    %847 = vmatpush1.msra.mxu0 %v796
    %848 = vmatprep.subr.mxu0 %v795
    %849 = vmatpush1.msra.mxu0 %v794
    %850 = vmatprep.subr.mxu0 %v793
    %851 = vmatpush1.msra.mxu0 %v792
    %852 = vmatprep.subr.mxu0 %v791
    %853 = vmatpush1.msra.mxu0 %v790
    %854 = vmatprep.subr.mxu0 %v789
    %855 = vmatpush1.msra.mxu0 %v788
    %856 = vmatprep.subr.mxu0 %v787
    %857 = vmatpush1.msra.mxu0 %v786
    %858 = vmatprep.subr.mxu0 %v785
    %859 = vmatpush1.msra.mxu0 %v784
    %860 = vmatprep.subr.mxu0 %v783
    %861 = vmatpush1.msra.mxu0 %v782
    %862 = vmatprep.subr.mxu0 %v781
    %863 = vmatpush1.msra.mxu0 %v780
    %864 = vmatprep.subr.mxu0 %v779
    %865 = vmatpush1.msra.mxu0 %v778
    %866 = vmatprep.subr.mxu0 %v777
    %867 = vmatpush1.msra.mxu0 %v776
    %868 = vmatprep.subr.mxu0 %v775
    %869 = vmatpush1.msra.mxu0 %v774
    %870 = vmatprep.subr.mxu0 %v773
    %871 = vmatpush1.msra.mxu0 %v772
    %872 = vmatprep.subr.mxu0 %v771
    %873 = vmatpush1.msra.mxu0 %v770
    %874 = vmatprep.subr.mxu0 %v769
    %875 = vmatpush1.msra.mxu0 %v768
    %876 = vmatprep.subr.mxu0 %v831
    %877 = vmatpush2.msra.mxu0 %v830
    %878 = vmatprep.subr.mxu0 %v829
    %879 = vmatpush2.msra.mxu0 %v828
    %880 = vmatprep.subr.mxu0 %v827
    %881 = vmatpush2.msra.mxu0 %v826
    %882 = vmatprep.subr.mxu0 %v825
    %883 = vmatpush2.msra.mxu0 %v824
    %884 = vmatprep.subr.mxu0 %v823
    %885 = vmatpush2.msra.mxu0 %v822
    %886 = vmatprep.subr.mxu0 %v821
    %887 = vmatpush2.msra.mxu0 %v820
    %888 = vmatprep.subr.mxu0 %v819
    %889 = vmatpush2.msra.mxu0 %v818
    %890 = vmatprep.subr.mxu0 %v817
    %891 = vmatpush2.msra.mxu0 %v816
    %892 = vmatprep.subr.mxu0 %v815
    %893 = vmatpush2.msra.mxu0 %v814
    %894 = vmatprep.subr.mxu0 %v813
    %895 = vmatpush2.msra.mxu0 %v812
    %896 = vmatprep.subr.mxu0 %v811
    %897 = vmatpush2.msra.mxu0 %v810
    %898 = vmatprep.subr.mxu0 %v809
    %899 = vmatpush2.msra.mxu0 %v808
    %900 = vmatprep.subr.mxu0 %v807
    %901 = vmatpush2.msra.mxu0 %v806
    %902 = vmatprep.subr.mxu0 %v805
    %903 = vmatpush2.msra.mxu0 %v804
    %904 = vmatprep.subr.mxu0 %v803
    %905 = vmatpush2.msra.mxu0 %v802
    %906 = vmatprep.subr.mxu0 %v801
    %907 = vmatpush2.msra.mxu0 %v800
    %908 = vmatprep.mubr.f32.mxu0 %v767
    %909 = vmatmul.mubr.f32.gmra.mxu0 %v766
    %v910 = vpop.f32.mrf.mxu0
    %v911 = vadd.f32 %v837, %v910
    %v912 = vpop.f32.mrf.mxu0
    %v913 = vadd.f32 %v841, %v912
    %914 = vdwg.mxu0
    %v915 = vld [vmem:[%s12] sm:$0xff]
    %v916 = vld [vmem:[%s12 + $0x8] sm:$0xff]
    %v917 = vld [vmem:[%s12 + $0x10] sm:$0xff]
    %v918 = vld [vmem:[%s12 + $0x18] sm:$0xff]
    %v919 = vld [vmem:[%s12 + $0x20] sm:$0xff]
    %v920 = vld [vmem:[%s12 + $0x28] sm:$0xff]
    %v921 = vld [vmem:[%s12 + $0x30] sm:$0xff]
    %v922 = vld [vmem:[%s12 + $0x38] sm:$0xff]
    %v923 = vld [vmem:[%s12 + $0x40] sm:$0xff]
    %v924 = vld [vmem:[%s12 + $0x48] sm:$0xff]
    %v925 = vld [vmem:[%s12 + $0x50] sm:$0xff]
    %v926 = vld [vmem:[%s12 + $0x58] sm:$0xff]
    %v927 = vld [vmem:[%s12 + $0x60] sm:$0xff]
    %v928 = vld [vmem:[%s12 + $0x68] sm:$0xff]
    %v929 = vld [vmem:[%s12 + $0x70] sm:$0xff]
    %v930 = vld [vmem:[%s12 + $0x78] sm:$0xff]
    %v931 = vld [vmem:[%s12 + $0x80] sm:$0xff]
    %v932 = vld [vmem:[%s12 + $0x88] sm:$0xff]
    %v933 = vld [vmem:[%s12 + $0x90] sm:$0xff]
    %v934 = vld [vmem:[%s12 + $0x98] sm:$0xff]
    %v935 = vld [vmem:[%s12 + $0xa0] sm:$0xff]
    %v936 = vld [vmem:[%s12 + $0xa8] sm:$0xff]
    %v937 = vld [vmem:[%s12 + $0xb0] sm:$0xff]
    %v938 = vld [vmem:[%s12 + $0xb8] sm:$0xff]
    %v939 = vld [vmem:[%s12 + $0xc0] sm:$0xff]
    %v940 = vld [vmem:[%s12 + $0xc8] sm:$0xff]
    %v941 = vld [vmem:[%s12 + $0xd0] sm:$0xff]
    %v942 = vld [vmem:[%s12 + $0xd8] sm:$0xff]
    %v943 = vld [vmem:[%s12 + $0xe0] sm:$0xff]
    %v944 = vld [vmem:[%s12 + $0xe8] sm:$0xff]
    %v945 = vld [vmem:[%s12 + $0xf0] sm:$0xff]
    %v946 = vld [vmem:[%s12 + $0xf8] sm:$0xff]
    %v947 = vld [vmem:[%s12 + $0x100] sm:$0xff]
    %v948 = vld [vmem:[%s12 + $0x108] sm:$0xff]
    %v949 = vld [vmem:[%s12 + $0x110] sm:$0xff]
    %v950 = vld [vmem:[%s12 + $0x118] sm:$0xff]
    %v951 = vld [vmem:[%s12 + $0x120] sm:$0xff]
    %v952 = vld [vmem:[%s12 + $0x128] sm:$0xff]
    %v953 = vld [vmem:[%s12 + $0x130] sm:$0xff]
    %v954 = vld [vmem:[%s12 + $0x138] sm:$0xff]
    %v955 = vld [vmem:[%s12 + $0x140] sm:$0xff]
    %v956 = vld [vmem:[%s12 + $0x148] sm:$0xff]
    %v957 = vld [vmem:[%s12 + $0x150] sm:$0xff]
    %v958 = vld [vmem:[%s12 + $0x158] sm:$0xff]
    %v959 = vld [vmem:[%s12 + $0x160] sm:$0xff]
    %v960 = vld [vmem:[%s12 + $0x168] sm:$0xff]
    %v961 = vld [vmem:[%s12 + $0x170] sm:$0xff]
    %v962 = vld [vmem:[%s12 + $0x178] sm:$0xff]
    %v963 = vld [vmem:[%s12 + $0x180] sm:$0xff]
    %v964 = vld [vmem:[%s12 + $0x188] sm:$0xff]
    %v965 = vld [vmem:[%s12 + $0x190] sm:$0xff]
    %v966 = vld [vmem:[%s12 + $0x198] sm:$0xff]
    %v967 = vld [vmem:[%s12 + $0x1a0] sm:$0xff]
    %v968 = vld [vmem:[%s12 + $0x1a8] sm:$0xff]
    %v969 = vld [vmem:[%s12 + $0x1b0] sm:$0xff]
    %v970 = vld [vmem:[%s12 + $0x1b8] sm:$0xff]
    %v971 = vld [vmem:[%s12 + $0x1c0] sm:$0xff]
    %v972 = vld [vmem:[%s12 + $0x1c8] sm:$0xff]
    %v973 = vld [vmem:[%s12 + $0x1d0] sm:$0xff]
    %v974 = vld [vmem:[%s12 + $0x1d8] sm:$0xff]
    %v975 = vld [vmem:[%s12 + $0x1e0] sm:$0xff]
    %v976 = vld [vmem:[%s12 + $0x1e8] sm:$0xff]
    %v977 = vld [vmem:[%s12 + $0x1f0] sm:$0xff]
    %v978 = vld [vmem:[%s12 + $0x1f8] sm:$0xff]
    %v979 = vld [vmem:[#allocation12] sm:$0x3]
    %v980 = vld [vmem:[#allocation13] sm:$0x3]
    %981 = vmatprep.subr.mxu0 %v946
    %982 = vmatpush1.msra.mxu0 %v945
    %983 = vmatprep.subr.mxu0 %v944
    %984 = vmatpush1.msra.mxu0 %v943
    %985 = vmatprep.subr.mxu0 %v942
    %986 = vmatpush1.msra.mxu0 %v941
    %987 = vmatprep.subr.mxu0 %v940
    %988 = vmatpush1.msra.mxu0 %v939
    %989 = vmatprep.subr.mxu0 %v938
    %990 = vmatpush1.msra.mxu0 %v937
    %991 = vmatprep.subr.mxu0 %v936
    %992 = vmatpush1.msra.mxu0 %v935
    %993 = vmatprep.subr.mxu0 %v934
    %994 = vmatpush1.msra.mxu0 %v933
    %995 = vmatprep.subr.mxu0 %v932
    %996 = vmatpush1.msra.mxu0 %v931
    %997 = vmatprep.subr.mxu0 %v930
    %998 = vmatpush1.msra.mxu0 %v929
    %999 = vmatprep.subr.mxu0 %v928
    %1000 = vmatpush1.msra.mxu0 %v927
    %1001 = vmatprep.subr.mxu0 %v926
    %1002 = vmatpush1.msra.mxu0 %v925
    %1003 = vmatprep.subr.mxu0 %v924
    %1004 = vmatpush1.msra.mxu0 %v923
    %1005 = vmatprep.subr.mxu0 %v922
    %1006 = vmatpush1.msra.mxu0 %v921
    %1007 = vmatprep.subr.mxu0 %v920
    %1008 = vmatpush1.msra.mxu0 %v919
    %1009 = vmatprep.subr.mxu0 %v918
    %1010 = vmatpush1.msra.mxu0 %v917
    %1011 = vmatprep.subr.mxu0 %v916
    %1012 = vmatpush1.msra.mxu0 %v915
    %1013 = vmatprep.subr.mxu0 %v978
    %1014 = vmatpush2.msra.mxu0 %v977
    %1015 = vmatprep.subr.mxu0 %v976
    %1016 = vmatpush2.msra.mxu0 %v975
    %1017 = vmatprep.subr.mxu0 %v974
    %1018 = vmatpush2.msra.mxu0 %v973
    %1019 = vmatprep.subr.mxu0 %v972
    %1020 = vmatpush2.msra.mxu0 %v971
    %1021 = vmatprep.subr.mxu0 %v970
    %1022 = vmatpush2.msra.mxu0 %v969
    %1023 = vmatprep.subr.mxu0 %v968
    %1024 = vmatpush2.msra.mxu0 %v967
    %1025 = vmatprep.subr.mxu0 %v966
    %1026 = vmatpush2.msra.mxu0 %v965
    %1027 = vmatprep.subr.mxu0 %v964
    %1028 = vmatpush2.msra.mxu0 %v963
    %1029 = vmatprep.subr.mxu0 %v962
    %1030 = vmatpush2.msra.mxu0 %v961
    %1031 = vmatprep.subr.mxu0 %v960
    %1032 = vmatpush2.msra.mxu0 %v959
    %1033 = vmatprep.subr.mxu0 %v958
    %1034 = vmatpush2.msra.mxu0 %v957
    %1035 = vmatprep.subr.mxu0 %v956
    %1036 = vmatpush2.msra.mxu0 %v955
    %1037 = vmatprep.subr.mxu0 %v954
    %1038 = vmatpush2.msra.mxu0 %v953
    %1039 = vmatprep.subr.mxu0 %v952
    %1040 = vmatpush2.msra.mxu0 %v951
    %1041 = vmatprep.subr.mxu0 %v950
    %1042 = vmatpush2.msra.mxu0 %v949
    %1043 = vmatprep.subr.mxu0 %v948
    %1044 = vmatpush2.msra.mxu0 %v947
    %1045 = vmatprep.mubr.f32.mxu0 %v913
    %1046 = vmatmul.mubr.f32.gmra.mxu0 %v911
    %v1047 = vpop.f32.mrf.mxu0
    %v1048 = vadd.f32 0.0, %v1047
    %v1049 = vpop.f32.mrf.mxu0
    %v1050 = vadd.f32 0.0, %v1049
    %1051 = vdwg.mxu0
    %v1052 = vsel %vm625, %v1048, 0.0
    %v1053 = vrot.slane %v1052, 4
    %v1054 = vadd.f32 %v1052, %v1053
    %v1055 = vrot.slane %v1054, 2
    %v1056 = vadd.f32 %v1054, %v1055
    %v1057 = vrot.slane %v1056, 1
    %v1058 = vadd.f32 %v1056, %v1057
    %v1059 = vsel %vm625, %v1050, 0.0
    %v1060 = vrot.slane %v1059, 4
    %v1061 = vadd.f32 %v1059, %v1060
    %v1062 = vrot.slane %v1061, 2
    %v1063 = vadd.f32 %v1061, %v1062
    %v1064 = vrot.slane %v1063, 1
    %v1065 = vadd.f32 %v1063, %v1064
    %v1066 = vmul.f32 %v1058, %v640
    %v1067 = vmul.f32 %v1065, %v640
    %v1068 = vsub.f32 %v911, %v1066
    %v1069 = vsub.f32 %v913, %v1067
    %v1070 = vmul.f32 %v1068, %v1068
    %v1071 = vmul.f32 %v1069, %v1069
    %1072 = vmatprep.subr.mxu0 %v946
    %1073 = vmatpush1.msra.mxu0 %v945
    %1074 = vmatprep.subr.mxu0 %v944
    %1075 = vmatpush1.msra.mxu0 %v943
    %1076 = vmatprep.subr.mxu0 %v942
    %1077 = vmatpush1.msra.mxu0 %v941
    %1078 = vmatprep.subr.mxu0 %v940
    %1079 = vmatpush1.msra.mxu0 %v939
    %1080 = vmatprep.subr.mxu0 %v938
    %1081 = vmatpush1.msra.mxu0 %v937
    %1082 = vmatprep.subr.mxu0 %v936
    %1083 = vmatpush1.msra.mxu0 %v935
    %1084 = vmatprep.subr.mxu0 %v934
    %1085 = vmatpush1.msra.mxu0 %v933
    %1086 = vmatprep.subr.mxu0 %v932
    %1087 = vmatpush1.msra.mxu0 %v931
    %1088 = vmatprep.subr.mxu0 %v930
    %1089 = vmatpush1.msra.mxu0 %v929
    %1090 = vmatprep.subr.mxu0 %v928
    %1091 = vmatpush1.msra.mxu0 %v927
    %1092 = vmatprep.subr.mxu0 %v926
    %1093 = vmatpush1.msra.mxu0 %v925
    %1094 = vmatprep.subr.mxu0 %v924
    %1095 = vmatpush1.msra.mxu0 %v923
    %1096 = vmatprep.subr.mxu0 %v922
    %1097 = vmatpush1.msra.mxu0 %v921
    %1098 = vmatprep.subr.mxu0 %v920
    %1099 = vmatpush1.msra.mxu0 %v919
    %1100 = vmatprep.subr.mxu0 %v918
    %1101 = vmatpush1.msra.mxu0 %v917
    %1102 = vmatprep.subr.mxu0 %v916
    %1103 = vmatpush1.msra.mxu0 %v915
    %1104 = vmatprep.subr.mxu0 %v978
    %1105 = vmatpush2.msra.mxu0 %v977
    %1106 = vmatprep.subr.mxu0 %v976
    %1107 = vmatpush2.msra.mxu0 %v975
    %1108 = vmatprep.subr.mxu0 %v974
    %1109 = vmatpush2.msra.mxu0 %v973
    %1110 = vmatprep.subr.mxu0 %v972
    %1111 = vmatpush2.msra.mxu0 %v971
    %1112 = vmatprep.subr.mxu0 %v970
    %1113 = vmatpush2.msra.mxu0 %v969
    %1114 = vmatprep.subr.mxu0 %v968
    %1115 = vmatpush2.msra.mxu0 %v967
    %1116 = vmatprep.subr.mxu0 %v966
    %1117 = vmatpush2.msra.mxu0 %v965
    %1118 = vmatprep.subr.mxu0 %v964
    %1119 = vmatpush2.msra.mxu0 %v963
    %1120 = vmatprep.subr.mxu0 %v962
    %1121 = vmatpush2.msra.mxu0 %v961
    %1122 = vmatprep.subr.mxu0 %v960
    %1123 = vmatpush2.msra.mxu0 %v959
    %1124 = vmatprep.subr.mxu0 %v958
    %1125 = vmatpush2.msra.mxu0 %v957
    %1126 = vmatprep.subr.mxu0 %v956
    %1127 = vmatpush2.msra.mxu0 %v955
    %1128 = vmatprep.subr.mxu0 %v954
    %1129 = vmatpush2.msra.mxu0 %v953
    %1130 = vmatprep.subr.mxu0 %v952
    %1131 = vmatpush2.msra.mxu0 %v951
    %1132 = vmatprep.subr.mxu0 %v950
    %1133 = vmatpush2.msra.mxu0 %v949
    %1134 = vmatprep.subr.mxu0 %v948
    %1135 = vmatpush2.msra.mxu0 %v947
    %1136 = vmatprep.mubr.f32.mxu0 %v1071
    %1137 = vmatmul.mubr.f32.gmra.mxu0 %v1070
    %v1138 = vpop.f32.mrf.mxu0
    %v1139 = vadd.f32 0.0, %v1138
    %v1140 = vpop.f32.mrf.mxu0
    %v1141 = vadd.f32 0.0, %v1140
    %1142 = vdwg.mxu0
    %v1143 = vsel %vm625, %v1139, 0.0
    %v1144 = vrot.slane %v1143, 4
    %v1145 = vadd.f32 %v1143, %v1144
    %v1146 = vrot.slane %v1145, 2
    %v1147 = vadd.f32 %v1145, %v1146
    %v1148 = vrot.slane %v1147, 1
    %v1149 = vadd.f32 %v1147, %v1148
    %v1150 = vsel %vm625, %v1141, 0.0
    %v1151 = vrot.slane %v1150, 4
    %v1152 = vadd.f32 %v1150, %v1151
    %v1153 = vrot.slane %v1152, 2
    %v1154 = vadd.f32 %v1152, %v1153
    %v1155 = vrot.slane %v1154, 1
    %v1156 = vadd.f32 %v1154, %v1155
    %v1157 = vmul.f32 %v1149, %v640
    %v1158 = vmul.f32 %v1156, %v640
    %v1159 = vadd.f32 %v1157, 1e-05
    %v1160 = vadd.f32 %v1158, 1e-05
    %v1161 = vrsqrt.pop %v1159
    %v1162 = vrsqrt.pop %v1160
    %v1163 = vmul.f32 %v1068, %v1161
    %v1164 = vmul.f32 %v1069, %v1162
    %v1166 = vlaneseq
    %v1167 = vshrl.u32 %v1166, 7
    %v1168 = vsub.s32 0, %v1167
    %v1169 = vrot.slane %v979, %v1168
    %v1170 = vlaneseq
    %v1171 = vshrl.u32 %v1170, 7
    %v1172 = vsub.s32 1, %v1171
    %v1173 = vrot.slane %v979, %v1172
    %v1176 = vmul.f32 %v1163, %v1169
    %v1177 = vmul.f32 %v1164, %v1173
    %v1179 = vlaneseq
    %v1180 = vshrl.u32 %v1179, 7
    %v1181 = vsub.s32 0, %v1180
    %v1182 = vrot.slane %v980, %v1181
    %v1183 = vlaneseq
    %v1184 = vshrl.u32 %v1183, 7
    %v1185 = vsub.s32 1, %v1184
    %v1186 = vrot.slane %v980, %v1185
    %v1189 = vadd.f32 %v1176, %v1182
    %v1190 = vadd.f32 %v1177, %v1186
    %v1191 = vmax.f32 %v1189, 0.0
    %v1192 = vmax.f32 %v1190, 0.0
    %v1193 = vld [vmem:[#allocation15] sm:$0xff]
    %v1194 = vld [vmem:[#allocation15 + $0x8] sm:$0xff]
    %v1195 = vld [vmem:[#allocation15 + $0x10] sm:$0xff]
    %v1196 = vld [vmem:[#allocation15 + $0x18] sm:$0xff]
    %v1197 = vld [vmem:[#allocation15 + $0x20] sm:$0xff]
    %v1198 = vld [vmem:[#allocation15 + $0x28] sm:$0xff]
    %v1199 = vld [vmem:[#allocation15 + $0x30] sm:$0xff]
    %v1200 = vld [vmem:[#allocation15 + $0x38] sm:$0xff]
    %v1201 = vld [vmem:[#allocation15 + $0x40] sm:$0xff]
    %v1202 = vld [vmem:[#allocation15 + $0x48] sm:$0xff]
    %v1203 = vld [vmem:[#allocation15 + $0x50] sm:$0xff]
    %v1204 = vld [vmem:[#allocation15 + $0x58] sm:$0xff]
    %v1205 = vld [vmem:[#allocation15 + $0x60] sm:$0xff]
    %v1206 = vld [vmem:[#allocation15 + $0x68] sm:$0xff]
    %v1207 = vld [vmem:[#allocation15 + $0x70] sm:$0xff]
    %v1208 = vld [vmem:[#allocation15 + $0x78] sm:$0xff]
    %v1209 = vld [vmem:[#allocation15 + $0x80] sm:$0xff]
    %v1210 = vld [vmem:[#allocation15 + $0x88] sm:$0xff]
    %v1211 = vld [vmem:[#allocation15 + $0x90] sm:$0xff]
    %v1212 = vld [vmem:[#allocation15 + $0x98] sm:$0xff]
    %v1213 = vld [vmem:[#allocation15 + $0xa0] sm:$0xff]
    %v1214 = vld [vmem:[#allocation15 + $0xa8] sm:$0xff]
    %v1215 = vld [vmem:[#allocation15 + $0xb0] sm:$0xff]
    %v1216 = vld [vmem:[#allocation15 + $0xb8] sm:$0xff]
    %v1217 = vld [vmem:[#allocation15 + $0xc0] sm:$0xff]
    %v1218 = vld [vmem:[#allocation15 + $0xc8] sm:$0xff]
    %v1219 = vld [vmem:[#allocation15 + $0xd0] sm:$0xff]
    %v1220 = vld [vmem:[#allocation15 + $0xd8] sm:$0xff]
    %v1221 = vld [vmem:[#allocation15 + $0xe0] sm:$0xff]
    %v1222 = vld [vmem:[#allocation15 + $0xe8] sm:$0xff]
    %v1223 = vld [vmem:[#allocation15 + $0xf0] sm:$0xff]
    %v1224 = vld [vmem:[#allocation15 + $0xf8] sm:$0xff]
    %v1225 = vld [vmem:[#allocation15 + $0x100] sm:$0xff]
    %v1226 = vld [vmem:[#allocation15 + $0x108] sm:$0xff]
    %v1227 = vld [vmem:[#allocation15 + $0x110] sm:$0xff]
    %v1228 = vld [vmem:[#allocation15 + $0x118] sm:$0xff]
    %v1229 = vld [vmem:[#allocation15 + $0x120] sm:$0xff]
    %v1230 = vld [vmem:[#allocation15 + $0x128] sm:$0xff]
    %v1231 = vld [vmem:[#allocation15 + $0x130] sm:$0xff]
    %v1232 = vld [vmem:[#allocation15 + $0x138] sm:$0xff]
    %v1233 = vld [vmem:[#allocation15 + $0x140] sm:$0xff]
    %v1234 = vld [vmem:[#allocation15 + $0x148] sm:$0xff]
    %v1235 = vld [vmem:[#allocation15 + $0x150] sm:$0xff]
    %v1236 = vld [vmem:[#allocation15 + $0x158] sm:$0xff]
    %v1237 = vld [vmem:[#allocation15 + $0x160] sm:$0xff]
    %v1238 = vld [vmem:[#allocation15 + $0x168] sm:$0xff]
    %v1239 = vld [vmem:[#allocation15 + $0x170] sm:$0xff]
    %v1240 = vld [vmem:[#allocation15 + $0x178] sm:$0xff]
    %v1241 = vld [vmem:[#allocation15 + $0x180] sm:$0xff]
    %v1242 = vld [vmem:[#allocation15 + $0x188] sm:$0xff]
    %v1243 = vld [vmem:[#allocation15 + $0x190] sm:$0xff]
    %v1244 = vld [vmem:[#allocation15 + $0x198] sm:$0xff]
    %v1245 = vld [vmem:[#allocation15 + $0x1a0] sm:$0xff]
    %v1246 = vld [vmem:[#allocation15 + $0x1a8] sm:$0xff]
    %v1247 = vld [vmem:[#allocation15 + $0x1b0] sm:$0xff]
    %v1248 = vld [vmem:[#allocation15 + $0x1b8] sm:$0xff]
    %v1249 = vld [vmem:[#allocation15 + $0x1c0] sm:$0xff]
    %v1250 = vld [vmem:[#allocation15 + $0x1c8] sm:$0xff]
    %v1251 = vld [vmem:[#allocation15 + $0x1d0] sm:$0xff]
    %v1252 = vld [vmem:[#allocation15 + $0x1d8] sm:$0xff]
    %v1253 = vld [vmem:[#allocation15 + $0x1e0] sm:$0xff]
    %v1254 = vld [vmem:[#allocation15 + $0x1e8] sm:$0xff]
    %v1255 = vld [vmem:[#allocation15 + $0x1f0] sm:$0xff]
    %v1256 = vld [vmem:[#allocation15 + $0x1f8] sm:$0xff]
    %v1257 = vld [vmem:[#allocation16] sm:$0x3]
    %v1259 = vlaneseq
    %v1260 = vshrl.u32 %v1259, 7
    %v1261 = vsub.s32 0, %v1260
    %v1262 = vrot.slane %v1257, %v1261
    %v1263 = vlaneseq
    %v1264 = vshrl.u32 %v1263, 7
    %v1265 = vsub.s32 1, %v1264
    %v1266 = vrot.slane %v1257, %v1265
    %1269 = vmatprep.subr.mxu0 %v1224
    %1270 = vmatpush1.msra.mxu0 %v1223
    %1271 = vmatprep.subr.mxu0 %v1222
    %1272 = vmatpush1.msra.mxu0 %v1221
    %1273 = vmatprep.subr.mxu0 %v1220
    %1274 = vmatpush1.msra.mxu0 %v1219
    %1275 = vmatprep.subr.mxu0 %v1218
    %1276 = vmatpush1.msra.mxu0 %v1217
    %1277 = vmatprep.subr.mxu0 %v1216
    %1278 = vmatpush1.msra.mxu0 %v1215
    %1279 = vmatprep.subr.mxu0 %v1214
    %1280 = vmatpush1.msra.mxu0 %v1213
    %1281 = vmatprep.subr.mxu0 %v1212
    %1282 = vmatpush1.msra.mxu0 %v1211
    %1283 = vmatprep.subr.mxu0 %v1210
    %1284 = vmatpush1.msra.mxu0 %v1209
    %1285 = vmatprep.subr.mxu0 %v1208
    %1286 = vmatpush1.msra.mxu0 %v1207
    %1287 = vmatprep.subr.mxu0 %v1206
    %1288 = vmatpush1.msra.mxu0 %v1205
    %1289 = vmatprep.subr.mxu0 %v1204
    %1290 = vmatpush1.msra.mxu0 %v1203
    %1291 = vmatprep.subr.mxu0 %v1202
    %1292 = vmatpush1.msra.mxu0 %v1201
    %1293 = vmatprep.subr.mxu0 %v1200
    %1294 = vmatpush1.msra.mxu0 %v1199
    %1295 = vmatprep.subr.mxu0 %v1198
    %1296 = vmatpush1.msra.mxu0 %v1197
    %1297 = vmatprep.subr.mxu0 %v1196
    %1298 = vmatpush1.msra.mxu0 %v1195
    %1299 = vmatprep.subr.mxu0 %v1194
    %1300 = vmatpush1.msra.mxu0 %v1193
    %1301 = vmatprep.subr.mxu0 %v1256
    %1302 = vmatpush2.msra.mxu0 %v1255
    %1303 = vmatprep.subr.mxu0 %v1254
    %1304 = vmatpush2.msra.mxu0 %v1253
    %1305 = vmatprep.subr.mxu0 %v1252
    %1306 = vmatpush2.msra.mxu0 %v1251
    %1307 = vmatprep.subr.mxu0 %v1250
    %1308 = vmatpush2.msra.mxu0 %v1249
    %1309 = vmatprep.subr.mxu0 %v1248
    %1310 = vmatpush2.msra.mxu0 %v1247
    %1311 = vmatprep.subr.mxu0 %v1246
    %1312 = vmatpush2.msra.mxu0 %v1245
    %1313 = vmatprep.subr.mxu0 %v1244
    %1314 = vmatpush2.msra.mxu0 %v1243
    %1315 = vmatprep.subr.mxu0 %v1242
    %1316 = vmatpush2.msra.mxu0 %v1241
    %1317 = vmatprep.subr.mxu0 %v1240
    %1318 = vmatpush2.msra.mxu0 %v1239
    %1319 = vmatprep.subr.mxu0 %v1238
    %1320 = vmatpush2.msra.mxu0 %v1237
    %1321 = vmatprep.subr.mxu0 %v1236
    %1322 = vmatpush2.msra.mxu0 %v1235
    %1323 = vmatprep.subr.mxu0 %v1234
    %1324 = vmatpush2.msra.mxu0 %v1233
    %1325 = vmatprep.subr.mxu0 %v1232
    %1326 = vmatpush2.msra.mxu0 %v1231
    %1327 = vmatprep.subr.mxu0 %v1230
    %1328 = vmatpush2.msra.mxu0 %v1229
    %1329 = vmatprep.subr.mxu0 %v1228
    %1330 = vmatpush2.msra.mxu0 %v1227
    %1331 = vmatprep.subr.mxu0 %v1226
    %1332 = vmatpush2.msra.mxu0 %v1225
    %1333 = vmatprep.mubr.f32.mxu0 %v1192
    %1334 = vmatmul.mubr.f32.gmra.mxu0 %v1191
    %v1335 = vpop.f32.mrf.mxu0
    %v1336 = vadd.f32 %v1262, %v1335
    %v1337 = vpop.f32.mrf.mxu0
    %v1338 = vadd.f32 %v1266, %v1337
    %1339 = vdwg.mxu0
    %v1340 = vld [vmem:[#allocation21] sm:$0xff]
    %v1341 = vld [vmem:[#allocation21 + $0x8] sm:$0xff]
    %v1342 = vld [vmem:[#allocation21 + $0x10] sm:$0xff]
    %v1343 = vld [vmem:[#allocation21 + $0x18] sm:$0xff]
    %v1344 = vld [vmem:[#allocation21 + $0x20] sm:$0xff]
    %v1345 = vld [vmem:[#allocation21 + $0x28] sm:$0xff]
    %v1346 = vld [vmem:[#allocation21 + $0x30] sm:$0xff]
    %v1347 = vld [vmem:[#allocation21 + $0x38] sm:$0xff]
    %v1348 = vld [vmem:[#allocation21 + $0x40] sm:$0xff]
    %v1349 = vld [vmem:[#allocation21 + $0x48] sm:$0xff]
    %v1350 = vld [vmem:[#allocation21 + $0x50] sm:$0xff]
    %v1351 = vld [vmem:[#allocation21 + $0x58] sm:$0xff]
    %v1352 = vld [vmem:[#allocation21 + $0x60] sm:$0xff]
    %v1353 = vld [vmem:[#allocation21 + $0x68] sm:$0xff]
    %v1354 = vld [vmem:[#allocation21 + $0x70] sm:$0xff]
    %v1355 = vld [vmem:[#allocation21 + $0x78] sm:$0xff]
    %v1356 = vld [vmem:[#allocation21 + $0x80] sm:$0xff]
    %v1357 = vld [vmem:[#allocation21 + $0x88] sm:$0xff]
    %v1358 = vld [vmem:[#allocation21 + $0x90] sm:$0xff]
    %v1359 = vld [vmem:[#allocation21 + $0x98] sm:$0xff]
    %v1360 = vld [vmem:[#allocation21 + $0xa0] sm:$0xff]
    %v1361 = vld [vmem:[#allocation21 + $0xa8] sm:$0xff]
    %v1362 = vld [vmem:[#allocation21 + $0xb0] sm:$0xff]
    %v1363 = vld [vmem:[#allocation21 + $0xb8] sm:$0xff]
    %v1364 = vld [vmem:[#allocation21 + $0xc0] sm:$0xff]
    %v1365 = vld [vmem:[#allocation21 + $0xc8] sm:$0xff]
    %v1366 = vld [vmem:[#allocation21 + $0xd0] sm:$0xff]
    %v1367 = vld [vmem:[#allocation21 + $0xd8] sm:$0xff]
    %v1368 = vld [vmem:[#allocation21 + $0xe0] sm:$0xff]
    %v1369 = vld [vmem:[#allocation21 + $0xe8] sm:$0xff]
    %v1370 = vld [vmem:[#allocation21 + $0xf0] sm:$0xff]
    %v1371 = vld [vmem:[#allocation21 + $0xf8] sm:$0xff]
    %v1372 = vld [vmem:[#allocation21 + $0x100] sm:$0xff]
    %v1373 = vld [vmem:[#allocation21 + $0x108] sm:$0xff]
    %v1374 = vld [vmem:[#allocation21 + $0x110] sm:$0xff]
    %v1375 = vld [vmem:[#allocation21 + $0x118] sm:$0xff]
    %v1376 = vld [vmem:[#allocation21 + $0x120] sm:$0xff]
    %v1377 = vld [vmem:[#allocation21 + $0x128] sm:$0xff]
    %v1378 = vld [vmem:[#allocation21 + $0x130] sm:$0xff]
    %v1379 = vld [vmem:[#allocation21 + $0x138] sm:$0xff]
    %v1380 = vld [vmem:[#allocation21 + $0x140] sm:$0xff]
    %v1381 = vld [vmem:[#allocation21 + $0x148] sm:$0xff]
    %v1382 = vld [vmem:[#allocation21 + $0x150] sm:$0xff]
    %v1383 = vld [vmem:[#allocation21 + $0x158] sm:$0xff]
    %v1384 = vld [vmem:[#allocation21 + $0x160] sm:$0xff]
    %v1385 = vld [vmem:[#allocation21 + $0x168] sm:$0xff]
    %v1386 = vld [vmem:[#allocation21 + $0x170] sm:$0xff]
    %v1387 = vld [vmem:[#allocation21 + $0x178] sm:$0xff]
    %v1388 = vld [vmem:[#allocation21 + $0x180] sm:$0xff]
    %v1389 = vld [vmem:[#allocation21 + $0x188] sm:$0xff]
    %v1390 = vld [vmem:[#allocation21 + $0x190] sm:$0xff]
    %v1391 = vld [vmem:[#allocation21 + $0x198] sm:$0xff]
    %v1392 = vld [vmem:[#allocation21 + $0x1a0] sm:$0xff]
    %v1393 = vld [vmem:[#allocation21 + $0x1a8] sm:$0xff]
    %v1394 = vld [vmem:[#allocation21 + $0x1b0] sm:$0xff]
    %v1395 = vld [vmem:[#allocation21 + $0x1b8] sm:$0xff]
    %v1396 = vld [vmem:[#allocation21 + $0x1c0] sm:$0xff]
    %v1397 = vld [vmem:[#allocation21 + $0x1c8] sm:$0xff]
    %v1398 = vld [vmem:[#allocation21 + $0x1d0] sm:$0xff]
    %v1399 = vld [vmem:[#allocation21 + $0x1d8] sm:$0xff]
    %v1400 = vld [vmem:[#allocation21 + $0x1e0] sm:$0xff]
    %v1401 = vld [vmem:[#allocation21 + $0x1e8] sm:$0xff]
    %v1402 = vld [vmem:[#allocation21 + $0x1f0] sm:$0xff]
    %v1403 = vld [vmem:[#allocation21 + $0x1f8] sm:$0xff]
    %v1404 = vld [vmem:[#allocation18] sm:$0x3]
    %v1405 = vld [vmem:[#allocation19] sm:$0x3]
    %1406 = vmatprep.subr.mxu0 %v1371
    %1407 = vmatpush1.msra.mxu0 %v1370
    %1408 = vmatprep.subr.mxu0 %v1369
    %1409 = vmatpush1.msra.mxu0 %v1368
    %1410 = vmatprep.subr.mxu0 %v1367
    %1411 = vmatpush1.msra.mxu0 %v1366
    %1412 = vmatprep.subr.mxu0 %v1365
    %1413 = vmatpush1.msra.mxu0 %v1364
    %1414 = vmatprep.subr.mxu0 %v1363
    %1415 = vmatpush1.msra.mxu0 %v1362
    %1416 = vmatprep.subr.mxu0 %v1361
    %1417 = vmatpush1.msra.mxu0 %v1360
    %1418 = vmatprep.subr.mxu0 %v1359
    %1419 = vmatpush1.msra.mxu0 %v1358
    %1420 = vmatprep.subr.mxu0 %v1357
    %1421 = vmatpush1.msra.mxu0 %v1356
    %1422 = vmatprep.subr.mxu0 %v1355
    %1423 = vmatpush1.msra.mxu0 %v1354
    %1424 = vmatprep.subr.mxu0 %v1353
    %1425 = vmatpush1.msra.mxu0 %v1352
    %1426 = vmatprep.subr.mxu0 %v1351
    %1427 = vmatpush1.msra.mxu0 %v1350
    %1428 = vmatprep.subr.mxu0 %v1349
    %1429 = vmatpush1.msra.mxu0 %v1348
    %1430 = vmatprep.subr.mxu0 %v1347
    %1431 = vmatpush1.msra.mxu0 %v1346
    %1432 = vmatprep.subr.mxu0 %v1345
    %1433 = vmatpush1.msra.mxu0 %v1344
    %1434 = vmatprep.subr.mxu0 %v1343
    %1435 = vmatpush1.msra.mxu0 %v1342
    %1436 = vmatprep.subr.mxu0 %v1341
    %1437 = vmatpush1.msra.mxu0 %v1340
    %1438 = vmatprep.subr.mxu0 %v1403
    %1439 = vmatpush2.msra.mxu0 %v1402
    %1440 = vmatprep.subr.mxu0 %v1401
    %1441 = vmatpush2.msra.mxu0 %v1400
    %1442 = vmatprep.subr.mxu0 %v1399
    %1443 = vmatpush2.msra.mxu0 %v1398
    %1444 = vmatprep.subr.mxu0 %v1397
    %1445 = vmatpush2.msra.mxu0 %v1396
    %1446 = vmatprep.subr.mxu0 %v1395
    %1447 = vmatpush2.msra.mxu0 %v1394
    %1448 = vmatprep.subr.mxu0 %v1393
    %1449 = vmatpush2.msra.mxu0 %v1392
    %1450 = vmatprep.subr.mxu0 %v1391
    %1451 = vmatpush2.msra.mxu0 %v1390
    %1452 = vmatprep.subr.mxu0 %v1389
    %1453 = vmatpush2.msra.mxu0 %v1388
    %1454 = vmatprep.subr.mxu0 %v1387
    %1455 = vmatpush2.msra.mxu0 %v1386
    %1456 = vmatprep.subr.mxu0 %v1385
    %1457 = vmatpush2.msra.mxu0 %v1384
    %1458 = vmatprep.subr.mxu0 %v1383
    %1459 = vmatpush2.msra.mxu0 %v1382
    %1460 = vmatprep.subr.mxu0 %v1381
    %1461 = vmatpush2.msra.mxu0 %v1380
    %1462 = vmatprep.subr.mxu0 %v1379
    %1463 = vmatpush2.msra.mxu0 %v1378
    %1464 = vmatprep.subr.mxu0 %v1377
    %1465 = vmatpush2.msra.mxu0 %v1376
    %1466 = vmatprep.subr.mxu0 %v1375
    %1467 = vmatpush2.msra.mxu0 %v1374
    %1468 = vmatprep.subr.mxu0 %v1373
    %1469 = vmatpush2.msra.mxu0 %v1372
    %1470 = vmatprep.mubr.f32.mxu0 %v1338
    %1471 = vmatmul.mubr.f32.gmra.mxu0 %v1336
    %v1472 = vpop.f32.mrf.mxu0
    %v1473 = vadd.f32 0.0, %v1472
    %v1474 = vpop.f32.mrf.mxu0
    %v1475 = vadd.f32 0.0, %v1474
    %1476 = vdwg.mxu0
    %v1477 = vsel %vm625, %v1473, 0.0
    %v1478 = vrot.slane %v1477, 4
    %v1479 = vadd.f32 %v1477, %v1478
    %v1480 = vrot.slane %v1479, 2
    %v1481 = vadd.f32 %v1479, %v1480
    %v1482 = vrot.slane %v1481, 1
    %v1483 = vadd.f32 %v1481, %v1482
    %v1484 = vsel %vm625, %v1475, 0.0
    %v1485 = vrot.slane %v1484, 4
    %v1486 = vadd.f32 %v1484, %v1485
    %v1487 = vrot.slane %v1486, 2
    %v1488 = vadd.f32 %v1486, %v1487
    %v1489 = vrot.slane %v1488, 1
    %v1490 = vadd.f32 %v1488, %v1489
    %v1491 = vmul.f32 %v1483, %v640
    %v1492 = vmul.f32 %v1490, %v640
    %v1493 = vsub.f32 %v1336, %v1491
    %v1494 = vsub.f32 %v1338, %v1492
    %v1495 = vmul.f32 %v1493, %v1493
    %v1496 = vmul.f32 %v1494, %v1494
    %1497 = vmatprep.subr.mxu0 %v1371
    %1498 = vmatpush1.msra.mxu0 %v1370
    %1499 = vmatprep.subr.mxu0 %v1369
    %1500 = vmatpush1.msra.mxu0 %v1368
    %1501 = vmatprep.subr.mxu0 %v1367
    %1502 = vmatpush1.msra.mxu0 %v1366
    %1503 = vmatprep.subr.mxu0 %v1365
    %1504 = vmatpush1.msra.mxu0 %v1364
    %1505 = vmatprep.subr.mxu0 %v1363
    %1506 = vmatpush1.msra.mxu0 %v1362
    %1507 = vmatprep.subr.mxu0 %v1361
    %1508 = vmatpush1.msra.mxu0 %v1360
    %1509 = vmatprep.subr.mxu0 %v1359
    %1510 = vmatpush1.msra.mxu0 %v1358
    %1511 = vmatprep.subr.mxu0 %v1357
    %1512 = vmatpush1.msra.mxu0 %v1356
    %1513 = vmatprep.subr.mxu0 %v1355
    %1514 = vmatpush1.msra.mxu0 %v1354
    %1515 = vmatprep.subr.mxu0 %v1353
    %1516 = vmatpush1.msra.mxu0 %v1352
    %1517 = vmatprep.subr.mxu0 %v1351
    %1518 = vmatpush1.msra.mxu0 %v1350
    %1519 = vmatprep.subr.mxu0 %v1349
    %1520 = vmatpush1.msra.mxu0 %v1348
    %1521 = vmatprep.subr.mxu0 %v1347
    %1522 = vmatpush1.msra.mxu0 %v1346
    %1523 = vmatprep.subr.mxu0 %v1345
    %1524 = vmatpush1.msra.mxu0 %v1344
    %1525 = vmatprep.subr.mxu0 %v1343
    %1526 = vmatpush1.msra.mxu0 %v1342
    %1527 = vmatprep.subr.mxu0 %v1341
    %1528 = vmatpush1.msra.mxu0 %v1340
    %1529 = vmatprep.subr.mxu0 %v1403
    %1530 = vmatpush2.msra.mxu0 %v1402
    %1531 = vmatprep.subr.mxu0 %v1401
    %1532 = vmatpush2.msra.mxu0 %v1400
    %1533 = vmatprep.subr.mxu0 %v1399
    %1534 = vmatpush2.msra.mxu0 %v1398
    %1535 = vmatprep.subr.mxu0 %v1397
    %1536 = vmatpush2.msra.mxu0 %v1396
    %1537 = vmatprep.subr.mxu0 %v1395
    %1538 = vmatpush2.msra.mxu0 %v1394
    %1539 = vmatprep.subr.mxu0 %v1393
    %1540 = vmatpush2.msra.mxu0 %v1392
    %1541 = vmatprep.subr.mxu0 %v1391
    %1542 = vmatpush2.msra.mxu0 %v1390
    %1543 = vmatprep.subr.mxu0 %v1389
    %1544 = vmatpush2.msra.mxu0 %v1388
    %1545 = vmatprep.subr.mxu0 %v1387
    %1546 = vmatpush2.msra.mxu0 %v1386
    %1547 = vmatprep.subr.mxu0 %v1385
    %1548 = vmatpush2.msra.mxu0 %v1384
    %1549 = vmatprep.subr.mxu0 %v1383
    %1550 = vmatpush2.msra.mxu0 %v1382
    %1551 = vmatprep.subr.mxu0 %v1381
    %1552 = vmatpush2.msra.mxu0 %v1380
    %1553 = vmatprep.subr.mxu0 %v1379
    %1554 = vmatpush2.msra.mxu0 %v1378
    %1555 = vmatprep.subr.mxu0 %v1377
    %1556 = vmatpush2.msra.mxu0 %v1376
    %1557 = vmatprep.subr.mxu0 %v1375
    %1558 = vmatpush2.msra.mxu0 %v1374
    %1559 = vmatprep.subr.mxu0 %v1373
    %1560 = vmatpush2.msra.mxu0 %v1372
    %1561 = vmatprep.mubr.f32.mxu0 %v1496
    %1562 = vmatmul.mubr.f32.gmra.mxu0 %v1495
    %v1563 = vpop.f32.mrf.mxu0
    %v1564 = vadd.f32 0.0, %v1563
    %v1565 = vpop.f32.mrf.mxu0
    %v1566 = vadd.f32 0.0, %v1565
    %1567 = vdwg.mxu0
    %v1568 = vsel %vm625, %v1564, 0.0
    %v1569 = vrot.slane %v1568, 4
    %v1570 = vadd.f32 %v1568, %v1569
    %v1571 = vrot.slane %v1570, 2
    %v1572 = vadd.f32 %v1570, %v1571
    %v1573 = vrot.slane %v1572, 1
    %v1574 = vadd.f32 %v1572, %v1573
    %v1575 = vsel %vm625, %v1566, 0.0
    %v1576 = vrot.slane %v1575, 4
    %v1577 = vadd.f32 %v1575, %v1576
    %v1578 = vrot.slane %v1577, 2
    %v1579 = vadd.f32 %v1577, %v1578
    %v1580 = vrot.slane %v1579, 1
    %v1581 = vadd.f32 %v1579, %v1580
    %v1582 = vmul.f32 %v1574, %v640
    %v1583 = vmul.f32 %v1581, %v640
    %v1584 = vadd.f32 %v1582, 1e-05
    %v1585 = vadd.f32 %v1583, 1e-05
    %v1586 = vrsqrt.pop %v1584
    %v1587 = vrsqrt.pop %v1585
    %v1588 = vmul.f32 %v1493, %v1586
    %v1589 = vmul.f32 %v1494, %v1587
    %v1591 = vlaneseq
    %v1592 = vshrl.u32 %v1591, 7
    %v1593 = vsub.s32 0, %v1592
    %v1594 = vrot.slane %v1404, %v1593
    %v1595 = vlaneseq
    %v1596 = vshrl.u32 %v1595, 7
    %v1597 = vsub.s32 1, %v1596
    %v1598 = vrot.slane %v1404, %v1597
    %v1601 = vmul.f32 %v1588, %v1594
    %v1602 = vmul.f32 %v1589, %v1598
    %v1604 = vlaneseq
    %v1605 = vshrl.u32 %v1604, 7
    %v1606 = vsub.s32 0, %v1605
    %v1607 = vrot.slane %v1405, %v1606
    %v1608 = vlaneseq
    %v1609 = vshrl.u32 %v1608, 7
    %v1610 = vsub.s32 1, %v1609
    %v1611 = vrot.slane %v1405, %v1610
    %v1614 = vadd.f32 %v1601, %v1607
    %v1615 = vadd.f32 %v1602, %v1611
    %v1616 = vmax.f32 %v1614, 0.0
    %v1617 = vmax.f32 %v1615, 0.0
    %v1618 = vld [vmem:[%s18] sm:$0xff]
    %v1619 = vld [vmem:[%s18 + $0x8] sm:$0xff]
    %v1620 = vld [vmem:[%s18 + $0x10] sm:$0xff]
    %v1621 = vld [vmem:[%s18 + $0x18] sm:$0xff]
    %v1622 = vld [vmem:[%s18 + $0x20] sm:$0xff]
    %v1623 = vld [vmem:[%s18 + $0x28] sm:$0xff]
    %v1624 = vld [vmem:[%s18 + $0x30] sm:$0xff]
    %v1625 = vld [vmem:[%s18 + $0x38] sm:$0xff]
    %v1626 = vld [vmem:[%s18 + $0x40] sm:$0xff]
    %v1627 = vld [vmem:[%s18 + $0x48] sm:$0xff]
    %v1628 = vld [vmem:[%s18 + $0x50] sm:$0xff]
    %v1629 = vld [vmem:[%s18 + $0x58] sm:$0xff]
    %v1630 = vld [vmem:[%s18 + $0x60] sm:$0xff]
    %v1631 = vld [vmem:[%s18 + $0x68] sm:$0xff]
    %v1632 = vld [vmem:[%s18 + $0x70] sm:$0xff]
    %v1633 = vld [vmem:[%s18 + $0x78] sm:$0xff]
    %v1634 = vld [vmem:[%s18 + $0x80] sm:$0xff]
    %v1635 = vld [vmem:[%s18 + $0x88] sm:$0xff]
    %v1636 = vld [vmem:[%s18 + $0x90] sm:$0xff]
    %v1637 = vld [vmem:[%s18 + $0x98] sm:$0xff]
    %v1638 = vld [vmem:[%s18 + $0xa0] sm:$0xff]
    %v1639 = vld [vmem:[%s18 + $0xa8] sm:$0xff]
    %v1640 = vld [vmem:[%s18 + $0xb0] sm:$0xff]
    %v1641 = vld [vmem:[%s18 + $0xb8] sm:$0xff]
    %v1642 = vld [vmem:[%s18 + $0xc0] sm:$0xff]
    %v1643 = vld [vmem:[%s18 + $0xc8] sm:$0xff]
    %v1644 = vld [vmem:[%s18 + $0xd0] sm:$0xff]
    %v1645 = vld [vmem:[%s18 + $0xd8] sm:$0xff]
    %v1646 = vld [vmem:[%s18 + $0xe0] sm:$0xff]
    %v1647 = vld [vmem:[%s18 + $0xe8] sm:$0xff]
    %v1648 = vld [vmem:[%s18 + $0xf0] sm:$0xff]
    %v1649 = vld [vmem:[%s18 + $0xf8] sm:$0xff]
    %v1650 = vld [vmem:[%s19] sm:$0x1]
    %v1652 = vlaneseq
    %v1653 = vshrl.u32 %v1652, 7
    %v1654 = vsub.s32 0, %v1653
    %v1655 = vrot.slane %v1650, %v1654
    %1657 = vmatprep.subr.mxu0 0.0
    %1658 = vmatpush1.msra.mxu0 %v1633
    %1659 = vmatprep.subr.mxu0 0.0
    %1660 = vmatpush1.msra.mxu0 %v1632
    %1661 = vmatprep.subr.mxu0 0.0
    %1662 = vmatpush1.msra.mxu0 %v1631
    %1663 = vmatprep.subr.mxu0 0.0
    %1664 = vmatpush1.msra.mxu0 %v1630
    %1665 = vmatprep.subr.mxu0 0.0
    %1666 = vmatpush1.msra.mxu0 %v1629
    %1667 = vmatprep.subr.mxu0 0.0
    %1668 = vmatpush1.msra.mxu0 %v1628
    %1669 = vmatprep.subr.mxu0 0.0
    %1670 = vmatpush1.msra.mxu0 %v1627
    %1671 = vmatprep.subr.mxu0 0.0
    %1672 = vmatpush1.msra.mxu0 %v1626
    %1673 = vmatprep.subr.mxu0 0.0
    %1674 = vmatpush1.msra.mxu0 %v1625
    %1675 = vmatprep.subr.mxu0 0.0
    %1676 = vmatpush1.msra.mxu0 %v1624
    %1677 = vmatprep.subr.mxu0 0.0
    %1678 = vmatpush1.msra.mxu0 %v1623
    %1679 = vmatprep.subr.mxu0 0.0
    %1680 = vmatpush1.msra.mxu0 %v1622
    %1681 = vmatprep.subr.mxu0 0.0
    %1682 = vmatpush1.msra.mxu0 %v1621
    %1683 = vmatprep.subr.mxu0 0.0
    %1684 = vmatpush1.msra.mxu0 %v1620
    %1685 = vmatprep.subr.mxu0 0.0
    %1686 = vmatpush1.msra.mxu0 %v1619
    %1687 = vmatprep.subr.mxu0 0.0
    %1688 = vmatpush1.msra.mxu0 %v1618
    %1689 = vmatprep.subr.mxu0 0.0
    %1690 = vmatpush2.msra.mxu0 %v1649
    %1691 = vmatprep.subr.mxu0 0.0
    %1692 = vmatpush2.msra.mxu0 %v1648
    %1693 = vmatprep.subr.mxu0 0.0
    %1694 = vmatpush2.msra.mxu0 %v1647
    %1695 = vmatprep.subr.mxu0 0.0
    %1696 = vmatpush2.msra.mxu0 %v1646
    %1697 = vmatprep.subr.mxu0 0.0
    %1698 = vmatpush2.msra.mxu0 %v1645
    %1699 = vmatprep.subr.mxu0 0.0
    %1700 = vmatpush2.msra.mxu0 %v1644
    %1701 = vmatprep.subr.mxu0 0.0
    %1702 = vmatpush2.msra.mxu0 %v1643
    %1703 = vmatprep.subr.mxu0 0.0
    %1704 = vmatpush2.msra.mxu0 %v1642
    %1705 = vmatprep.subr.mxu0 0.0
    %1706 = vmatpush2.msra.mxu0 %v1641
    %1707 = vmatprep.subr.mxu0 0.0
    %1708 = vmatpush2.msra.mxu0 %v1640
    %1709 = vmatprep.subr.mxu0 0.0
    %1710 = vmatpush2.msra.mxu0 %v1639
    %1711 = vmatprep.subr.mxu0 0.0
    %1712 = vmatpush2.msra.mxu0 %v1638
    %1713 = vmatprep.subr.mxu0 0.0
    %1714 = vmatpush2.msra.mxu0 %v1637
    %1715 = vmatprep.subr.mxu0 0.0
    %1716 = vmatpush2.msra.mxu0 %v1636
    %1717 = vmatprep.subr.mxu0 0.0
    %1718 = vmatpush2.msra.mxu0 %v1635
    %1719 = vmatprep.subr.mxu0 0.0
    %1720 = vmatpush2.msra.mxu0 %v1634
    %1721 = vmatprep.mubr.f32.mxu0 %v1617
    %1722 = vmatmul.mubr.f32.gmra.mxu0 %v1616
    %v1723 = vpop.f32.mrf.mxu0
    %v1724 = vadd.f32 %v1655, %v1723
    %v1725 = vpop.f32.mrf.mxu0
    %1726 = vdwg.mxu0
    %v1727 = vld [vmem:[#allocation25] sm:$0xff]
    %v1728 = vld [vmem:[#allocation25 + $0x8] sm:$0xff]
    %v1729 = vld [vmem:[#allocation25 + $0x10] sm:$0xff]
    %v1730 = vld [vmem:[#allocation25 + $0x18] sm:$0xff]
    %v1731 = vld [vmem:[#allocation25 + $0x20] sm:$0xff]
    %v1732 = vld [vmem:[#allocation25 + $0x28] sm:$0xff]
    %v1733 = vld [vmem:[#allocation25 + $0x30] sm:$0xff]
    %v1734 = vld [vmem:[#allocation25 + $0x38] sm:$0xff]
    %v1735 = vld [vmem:[#allocation22] sm:$0x1]
    %v1736 = vld [vmem:[#allocation24] sm:$0x1]
    %v1738 = vsel %vm413, %v1724, 0
    %1740 = vmatprep.subr.mxu0 0.0
    %1741 = vmatpush1.msra.mxu0 0.0
    %1742 = vmatprep.subr.mxu0 0.0
    %1743 = vmatpush1.msra.mxu0 0.0
    %1744 = vmatprep.subr.mxu0 0.0
    %1745 = vmatpush1.msra.mxu0 0.0
    %1746 = vmatprep.subr.mxu0 0.0
    %1747 = vmatpush1.msra.mxu0 0.0
    %1748 = vmatprep.subr.mxu0 0.0
    %1749 = vmatpush1.msra.mxu0 0.0
    %1750 = vmatprep.subr.mxu0 0.0
    %1751 = vmatpush1.msra.mxu0 0.0
    %1752 = vmatprep.subr.mxu0 0.0
    %1753 = vmatpush1.msra.mxu0 0.0
    %1754 = vmatprep.subr.mxu0 0.0
    %1755 = vmatpush1.msra.mxu0 0.0
    %1756 = vmatprep.subr.mxu0 0.0
    %1757 = vmatpush1.msra.mxu0 %v1734
    %1758 = vmatprep.subr.mxu0 0.0
    %1759 = vmatpush1.msra.mxu0 %v1733
    %1760 = vmatprep.subr.mxu0 0.0
    %1761 = vmatpush1.msra.mxu0 %v1732
    %1762 = vmatprep.subr.mxu0 0.0
    %1763 = vmatpush1.msra.mxu0 %v1731
    %1764 = vmatprep.subr.mxu0 0.0
    %1765 = vmatpush1.msra.mxu0 %v1730
    %1766 = vmatprep.subr.mxu0 0.0
    %1767 = vmatpush1.msra.mxu0 %v1729
    %1768 = vmatprep.subr.mxu0 0.0
    %1769 = vmatpush1.msra.mxu0 %v1728
    %1770 = vmatprep.subr.mxu0 0.0
    %1771 = vmatpush1.msra.mxu0 %v1727
    %1772 = vmatprep.subr.mxu0 0.0
    %1773 = vmatpush2.msra.mxu0 0.0
    %1774 = vmatprep.subr.mxu0 0.0
    %1775 = vmatpush2.msra.mxu0 0.0
    %1776 = vmatprep.subr.mxu0 0.0
    %1777 = vmatpush2.msra.mxu0 0.0
    %1778 = vmatprep.subr.mxu0 0.0
    %1779 = vmatpush2.msra.mxu0 0.0
    %1780 = vmatprep.subr.mxu0 0.0
    %1781 = vmatpush2.msra.mxu0 0.0
    %1782 = vmatprep.subr.mxu0 0.0
    %1783 = vmatpush2.msra.mxu0 0.0
    %1784 = vmatprep.subr.mxu0 0.0
    %1785 = vmatpush2.msra.mxu0 0.0
    %1786 = vmatprep.subr.mxu0 0.0
    %1787 = vmatpush2.msra.mxu0 0.0
    %1788 = vmatprep.subr.mxu0 0.0
    %1789 = vmatpush2.msra.mxu0 0.0
    %1790 = vmatprep.subr.mxu0 0.0
    %1791 = vmatpush2.msra.mxu0 0.0
    %1792 = vmatprep.subr.mxu0 0.0
    %1793 = vmatpush2.msra.mxu0 0.0
    %1794 = vmatprep.subr.mxu0 0.0
    %1795 = vmatpush2.msra.mxu0 0.0
    %1796 = vmatprep.subr.mxu0 0.0
    %1797 = vmatpush2.msra.mxu0 0.0
    %1798 = vmatprep.subr.mxu0 0.0
    %1799 = vmatpush2.msra.mxu0 0.0
    %1800 = vmatprep.subr.mxu0 0.0
    %1801 = vmatpush2.msra.mxu0 0.0
    %1802 = vmatprep.subr.mxu0 0.0
    %1803 = vmatpush2.msra.mxu0 0.0
    %1804 = vmatprep.mubr.f32.mxu0 0.0
    %1805 = vmatmul.mubr.f32.gmra.mxu0 %v1738
    %v1806 = vpop.f32.mrf.mxu0
    %v1807 = vadd.f32 0.0, %v1806
    %v1808 = vpop.f32.mrf.mxu0
    %1809 = vdwg.mxu0
    %vm1810 = vcmask 517120
    %v1811 = vsel %vm1810, %v1807, 0.0
    %v1812 = vrot.slane %v1811, 4
    %v1813 = vadd.f32 %v1811, %v1812
    %v1814 = vrot.slane %v1813, 2
    %v1815 = vadd.f32 %v1813, %v1814
    %v1816 = vrot.slane %v1815, 1
    %v1817 = vadd.f32 %v1815, %v1816
    %v1818 = vmul.f32 %v1817, %v640
    %v1819 = vsub.f32 %v1724, %v1818
    %v1820 = vmul.f32 %v1819, %v1819
    %v1822 = vsel %vm413, %v1820, 0
    %1824 = vmatprep.subr.mxu0 0.0
    %1825 = vmatpush1.msra.mxu0 0.0
    %1826 = vmatprep.subr.mxu0 0.0
    %1827 = vmatpush1.msra.mxu0 0.0
    %1828 = vmatprep.subr.mxu0 0.0
    %1829 = vmatpush1.msra.mxu0 0.0
    %1830 = vmatprep.subr.mxu0 0.0
    %1831 = vmatpush1.msra.mxu0 0.0
    %1832 = vmatprep.subr.mxu0 0.0
    %1833 = vmatpush1.msra.mxu0 0.0
    %1834 = vmatprep.subr.mxu0 0.0
    %1835 = vmatpush1.msra.mxu0 0.0
    %1836 = vmatprep.subr.mxu0 0.0
    %1837 = vmatpush1.msra.mxu0 0.0
    %1838 = vmatprep.subr.mxu0 0.0
    %1839 = vmatpush1.msra.mxu0 0.0
    %1840 = vmatprep.subr.mxu0 0.0
    %1841 = vmatpush1.msra.mxu0 %v1734
    %1842 = vmatprep.subr.mxu0 0.0
    %1843 = vmatpush1.msra.mxu0 %v1733
    %1844 = vmatprep.subr.mxu0 0.0
    %1845 = vmatpush1.msra.mxu0 %v1732
    %1846 = vmatprep.subr.mxu0 0.0
    %1847 = vmatpush1.msra.mxu0 %v1731
    %1848 = vmatprep.subr.mxu0 0.0
    %1849 = vmatpush1.msra.mxu0 %v1730
    %1850 = vmatprep.subr.mxu0 0.0
    %1851 = vmatpush1.msra.mxu0 %v1729
    %1852 = vmatprep.subr.mxu0 0.0
    %1853 = vmatpush1.msra.mxu0 %v1728
    %1854 = vmatprep.subr.mxu0 0.0
    %1855 = vmatpush1.msra.mxu0 %v1727
    %1856 = vmatprep.subr.mxu0 0.0
    %1857 = vmatpush2.msra.mxu0 0.0
    %1858 = vmatprep.subr.mxu0 0.0
    %1859 = vmatpush2.msra.mxu0 0.0
    %1860 = vmatprep.subr.mxu0 0.0
    %1861 = vmatpush2.msra.mxu0 0.0
    %1862 = vmatprep.subr.mxu0 0.0
    %1863 = vmatpush2.msra.mxu0 0.0
    %1864 = vmatprep.subr.mxu0 0.0
    %1865 = vmatpush2.msra.mxu0 0.0
    %1866 = vmatprep.subr.mxu0 0.0
    %1867 = vmatpush2.msra.mxu0 0.0
    %1868 = vmatprep.subr.mxu0 0.0
    %1869 = vmatpush2.msra.mxu0 0.0
    %1870 = vmatprep.subr.mxu0 0.0
    %1871 = vmatpush2.msra.mxu0 0.0
    %1872 = vmatprep.subr.mxu0 0.0
    %1873 = vmatpush2.msra.mxu0 0.0
    %1874 = vmatprep.subr.mxu0 0.0
    %1875 = vmatpush2.msra.mxu0 0.0
    %1876 = vmatprep.subr.mxu0 0.0
    %1877 = vmatpush2.msra.mxu0 0.0
    %1878 = vmatprep.subr.mxu0 0.0
    %1879 = vmatpush2.msra.mxu0 0.0
    %1880 = vmatprep.subr.mxu0 0.0
    %1881 = vmatpush2.msra.mxu0 0.0
    %1882 = vmatprep.subr.mxu0 0.0
    %1883 = vmatpush2.msra.mxu0 0.0
    %1884 = vmatprep.subr.mxu0 0.0
    %1885 = vmatpush2.msra.mxu0 0.0
    %1886 = vmatprep.subr.mxu0 0.0
    %1887 = vmatpush2.msra.mxu0 0.0
    %1888 = vmatprep.mubr.f32.mxu0 0.0
    %1889 = vmatmul.mubr.f32.gmra.mxu0 %v1822
    %v1890 = vpop.f32.mrf.mxu0
    %v1891 = vadd.f32 0.0, %v1890
    %v1892 = vpop.f32.mrf.mxu0
    %1893 = vdwg.mxu0
    %v1894 = vsel %vm1810, %v1891, 0.0
    %v1895 = vrot.slane %v1894, 4
    %v1896 = vadd.f32 %v1894, %v1895
    %v1897 = vrot.slane %v1896, 2
    %v1898 = vadd.f32 %v1896, %v1897
    %v1899 = vrot.slane %v1898, 1
    %v1900 = vadd.f32 %v1898, %v1899
    %v1901 = vmul.f32 %v1900, %v640
    %v1902 = vadd.f32 %v1901, 1e-05
    %v1903 = vrsqrt.pop %v1902
    %v1904 = vmul.f32 %v1819, %v1903
    %v1906 = vlaneseq
    %v1907 = vshrl.u32 %v1906, 7
    %v1908 = vsub.s32 0, %v1907
    %v1909 = vrot.slane %v1735, %v1908
    %v1911 = vmul.f32 %v1904, %v1909
    %v1913 = vlaneseq
    %v1914 = vshrl.u32 %v1913, 7
    %v1915 = vsub.s32 0, %v1914
    %v1916 = vrot.slane %v1736, %v1915
    %v1918 = vadd.f32 %v1911, %v1916
    %v1919 = vmax.f32 %v1918, 0.0
    %v1920 = vld [vmem:[#allocation27] sm:$0xff]
    %v1921 = vld [vmem:[#allocation27 + $0x8] sm:$0xff]
    %v1922 = vld [vmem:[#allocation27 + $0x10] sm:$0xff]
    %v1923 = vld [vmem:[#allocation27 + $0x18] sm:$0xff]
    %v1924 = vld [vmem:[#allocation27 + $0x20] sm:$0xff]
    %v1925 = vld [vmem:[#allocation27 + $0x28] sm:$0xff]
    %v1926 = vld [vmem:[#allocation27 + $0x30] sm:$0xff]
    %v1927 = vld [vmem:[#allocation27 + $0x38] sm:$0xff]
    %s1928 = scalar_lea.vmem [#allocation10], 512
    %v1929 = vld [vmem:[%s1928] sm:$0xff]
    %v1930 = vld [vmem:[%s1928 + $0x8] sm:$0xff]
    %v1931 = vld [vmem:[%s1928 + $0x10] sm:$0xff]
    %v1932 = vld [vmem:[%s1928 + $0x18] sm:$0xff]
    %v1933 = vld [vmem:[%s1928 + $0x20] sm:$0xff]
    %v1934 = vld [vmem:[%s1928 + $0x28] sm:$0xff]
    %v1935 = vld [vmem:[%s1928 + $0x30] sm:$0xff]
    %v1936 = vld [vmem:[%s1928 + $0x38] sm:$0xff]
    %v1937 = vld [vmem:[%s1928 + $0x40] sm:$0xff]
    %v1938 = vld [vmem:[%s1928 + $0x48] sm:$0xff]
    %v1939 = vld [vmem:[%s1928 + $0x50] sm:$0xff]
    %v1940 = vld [vmem:[%s1928 + $0x58] sm:$0xff]
    %v1941 = vld [vmem:[%s1928 + $0x60] sm:$0xff]
    %v1942 = vld [vmem:[%s1928 + $0x68] sm:$0xff]
    %v1943 = vld [vmem:[%s1928 + $0x70] sm:$0xff]
    %v1944 = vld [vmem:[%s1928 + $0x78] sm:$0xff]
    %v1945 = vld [vmem:[%s1928 + $0x80] sm:$0xff]
    %v1946 = vld [vmem:[%s1928 + $0x88] sm:$0xff]
    %v1947 = vld [vmem:[%s1928 + $0x90] sm:$0xff]
    %v1948 = vld [vmem:[%s1928 + $0x98] sm:$0xff]
    %v1949 = vld [vmem:[%s1928 + $0xa0] sm:$0xff]
    %v1950 = vld [vmem:[%s1928 + $0xa8] sm:$0xff]
    %v1951 = vld [vmem:[%s1928 + $0xb0] sm:$0xff]
    %v1952 = vld [vmem:[%s1928 + $0xb8] sm:$0xff]
    %v1953 = vld [vmem:[%s1928 + $0xc0] sm:$0xff]
    %v1954 = vld [vmem:[%s1928 + $0xc8] sm:$0xff]
    %v1955 = vld [vmem:[%s1928 + $0xd0] sm:$0xff]
    %v1956 = vld [vmem:[%s1928 + $0xd8] sm:$0xff]
    %v1957 = vld [vmem:[%s1928 + $0xe0] sm:$0xff]
    %v1958 = vld [vmem:[%s1928 + $0xe8] sm:$0xff]
    %v1959 = vld [vmem:[%s1928 + $0xf0] sm:$0xff]
    %v1960 = vld [vmem:[%s1928 + $0xf8] sm:$0xff]
    %v1961 = vld [vmem:[%s1928 + $0x100] sm:$0xff]
    %v1962 = vld [vmem:[%s1928 + $0x108] sm:$0xff]
    %v1963 = vld [vmem:[%s1928 + $0x110] sm:$0xff]
    %v1964 = vld [vmem:[%s1928 + $0x118] sm:$0xff]
    %v1965 = vld [vmem:[%s1928 + $0x120] sm:$0xff]
    %v1966 = vld [vmem:[%s1928 + $0x128] sm:$0xff]
    %v1967 = vld [vmem:[%s1928 + $0x130] sm:$0xff]
    %v1968 = vld [vmem:[%s1928 + $0x138] sm:$0xff]
    %v1969 = vld [vmem:[%s1928 + $0x140] sm:$0xff]
    %v1970 = vld [vmem:[%s1928 + $0x148] sm:$0xff]
    %v1971 = vld [vmem:[%s1928 + $0x150] sm:$0xff]
    %v1972 = vld [vmem:[%s1928 + $0x158] sm:$0xff]
    %v1973 = vld [vmem:[%s1928 + $0x160] sm:$0xff]
    %v1974 = vld [vmem:[%s1928 + $0x168] sm:$0xff]
    %v1975 = vld [vmem:[%s1928 + $0x170] sm:$0xff]
    %v1976 = vld [vmem:[%s1928 + $0x178] sm:$0xff]
    %v1977 = vld [vmem:[%s1928 + $0x180] sm:$0xff]
    %v1978 = vld [vmem:[%s1928 + $0x188] sm:$0xff]
    %v1979 = vld [vmem:[%s1928 + $0x190] sm:$0xff]
    %v1980 = vld [vmem:[%s1928 + $0x198] sm:$0xff]
    %v1981 = vld [vmem:[%s1928 + $0x1a0] sm:$0xff]
    %v1982 = vld [vmem:[%s1928 + $0x1a8] sm:$0xff]
    %v1983 = vld [vmem:[%s1928 + $0x1b0] sm:$0xff]
    %v1984 = vld [vmem:[%s1928 + $0x1b8] sm:$0xff]
    %v1985 = vld [vmem:[%s1928 + $0x1c0] sm:$0xff]
    %v1986 = vld [vmem:[%s1928 + $0x1c8] sm:$0xff]
    %v1987 = vld [vmem:[%s1928 + $0x1d0] sm:$0xff]
    %v1988 = vld [vmem:[%s1928 + $0x1d8] sm:$0xff]
    %v1989 = vld [vmem:[%s1928 + $0x1e0] sm:$0xff]
    %v1990 = vld [vmem:[%s1928 + $0x1e8] sm:$0xff]
    %v1991 = vld [vmem:[%s1928 + $0x1f0] sm:$0xff]
    %v1992 = vld [vmem:[%s1928 + $0x1f8] sm:$0xff]
    %s1993 = scalar_lea.vmem %s9, 2
    %v1994 = vld [vmem:[%s1993] sm:$0x3]
    %v1996 = vlaneseq
    %v1997 = vshrl.u32 %v1996, 7
    %v1998 = vsub.s32 0, %v1997
    %v1999 = vrot.slane %v1994, %v1998
    %v2000 = vlaneseq
    %v2001 = vshrl.u32 %v2000, 7
    %v2002 = vsub.s32 1, %v2001
    %v2003 = vrot.slane %v1994, %v2002
    %2006 = vmatprep.subr.mxu0 %v1960
    %2007 = vmatpush1.msra.mxu0 %v1959
    %2008 = vmatprep.subr.mxu0 %v1958
    %2009 = vmatpush1.msra.mxu0 %v1957
    %2010 = vmatprep.subr.mxu0 %v1956
    %2011 = vmatpush1.msra.mxu0 %v1955
    %2012 = vmatprep.subr.mxu0 %v1954
    %2013 = vmatpush1.msra.mxu0 %v1953
    %2014 = vmatprep.subr.mxu0 %v1952
    %2015 = vmatpush1.msra.mxu0 %v1951
    %2016 = vmatprep.subr.mxu0 %v1950
    %2017 = vmatpush1.msra.mxu0 %v1949
    %2018 = vmatprep.subr.mxu0 %v1948
    %2019 = vmatpush1.msra.mxu0 %v1947
    %2020 = vmatprep.subr.mxu0 %v1946
    %2021 = vmatpush1.msra.mxu0 %v1945
    %2022 = vmatprep.subr.mxu0 %v1944
    %2023 = vmatpush1.msra.mxu0 %v1943
    %2024 = vmatprep.subr.mxu0 %v1942
    %2025 = vmatpush1.msra.mxu0 %v1941
    %2026 = vmatprep.subr.mxu0 %v1940
    %2027 = vmatpush1.msra.mxu0 %v1939
    %2028 = vmatprep.subr.mxu0 %v1938
    %2029 = vmatpush1.msra.mxu0 %v1937
    %2030 = vmatprep.subr.mxu0 %v1936
    %2031 = vmatpush1.msra.mxu0 %v1935
    %2032 = vmatprep.subr.mxu0 %v1934
    %2033 = vmatpush1.msra.mxu0 %v1933
    %2034 = vmatprep.subr.mxu0 %v1932
    %2035 = vmatpush1.msra.mxu0 %v1931
    %2036 = vmatprep.subr.mxu0 %v1930
    %2037 = vmatpush1.msra.mxu0 %v1929
    %2038 = vmatprep.subr.mxu0 %v1992
    %2039 = vmatpush2.msra.mxu0 %v1991
    %2040 = vmatprep.subr.mxu0 %v1990
    %2041 = vmatpush2.msra.mxu0 %v1989
    %2042 = vmatprep.subr.mxu0 %v1988
    %2043 = vmatpush2.msra.mxu0 %v1987
    %2044 = vmatprep.subr.mxu0 %v1986
    %2045 = vmatpush2.msra.mxu0 %v1985
    %2046 = vmatprep.subr.mxu0 %v1984
    %2047 = vmatpush2.msra.mxu0 %v1983
    %2048 = vmatprep.subr.mxu0 %v1982
    %2049 = vmatpush2.msra.mxu0 %v1981
    %2050 = vmatprep.subr.mxu0 %v1980
    %2051 = vmatpush2.msra.mxu0 %v1979
    %2052 = vmatprep.subr.mxu0 %v1978
    %2053 = vmatpush2.msra.mxu0 %v1977
    %2054 = vmatprep.subr.mxu0 %v1976
    %2055 = vmatpush2.msra.mxu0 %v1975
    %2056 = vmatprep.subr.mxu0 %v1974
    %2057 = vmatpush2.msra.mxu0 %v1973
    %2058 = vmatprep.subr.mxu0 %v1972
    %2059 = vmatpush2.msra.mxu0 %v1971
    %2060 = vmatprep.subr.mxu0 %v1970
    %2061 = vmatpush2.msra.mxu0 %v1969
    %2062 = vmatprep.subr.mxu0 %v1968
    %2063 = vmatpush2.msra.mxu0 %v1967
    %2064 = vmatprep.subr.mxu0 %v1966
    %2065 = vmatpush2.msra.mxu0 %v1965
    %2066 = vmatprep.subr.mxu0 %v1964
    %2067 = vmatpush2.msra.mxu0 %v1963
    %2068 = vmatprep.subr.mxu0 %v1962
    %2069 = vmatpush2.msra.mxu0 %v1961
    %2070 = vmatprep.mubr.f32.mxu0 %v767
    %2071 = vmatmul.mubr.f32.gmra.mxu0 %v766
    %v2072 = vpop.f32.mrf.mxu0
    %v2073 = vadd.f32 %v1999, %v2072
    %v2074 = vpop.f32.mrf.mxu0
    %v2075 = vadd.f32 %v2003, %v2074
    %2076 = vdwg.mxu0
    %2077 = vmatprep.subr.mxu0 %v946
    %2078 = vmatpush1.msra.mxu0 %v945
    %2079 = vmatprep.subr.mxu0 %v944
    %2080 = vmatpush1.msra.mxu0 %v943
    %2081 = vmatprep.subr.mxu0 %v942
    %2082 = vmatpush1.msra.mxu0 %v941
    %2083 = vmatprep.subr.mxu0 %v940
    %2084 = vmatpush1.msra.mxu0 %v939
    %2085 = vmatprep.subr.mxu0 %v938
    %2086 = vmatpush1.msra.mxu0 %v937
    %2087 = vmatprep.subr.mxu0 %v936
    %2088 = vmatpush1.msra.mxu0 %v935
    %2089 = vmatprep.subr.mxu0 %v934
    %2090 = vmatpush1.msra.mxu0 %v933
    %2091 = vmatprep.subr.mxu0 %v932
    %2092 = vmatpush1.msra.mxu0 %v931
    %2093 = vmatprep.subr.mxu0 %v930
    %2094 = vmatpush1.msra.mxu0 %v929
    %2095 = vmatprep.subr.mxu0 %v928
    %2096 = vmatpush1.msra.mxu0 %v927
    %2097 = vmatprep.subr.mxu0 %v926
    %2098 = vmatpush1.msra.mxu0 %v925
    %2099 = vmatprep.subr.mxu0 %v924
    %2100 = vmatpush1.msra.mxu0 %v923
    %2101 = vmatprep.subr.mxu0 %v922
    %2102 = vmatpush1.msra.mxu0 %v921
    %2103 = vmatprep.subr.mxu0 %v920
    %2104 = vmatpush1.msra.mxu0 %v919
    %2105 = vmatprep.subr.mxu0 %v918
    %2106 = vmatpush1.msra.mxu0 %v917
    %2107 = vmatprep.subr.mxu0 %v916
    %2108 = vmatpush1.msra.mxu0 %v915
    %2109 = vmatprep.subr.mxu0 %v978
    %2110 = vmatpush2.msra.mxu0 %v977
    %2111 = vmatprep.subr.mxu0 %v976
    %2112 = vmatpush2.msra.mxu0 %v975
    %2113 = vmatprep.subr.mxu0 %v974
    %2114 = vmatpush2.msra.mxu0 %v973
    %2115 = vmatprep.subr.mxu0 %v972
    %2116 = vmatpush2.msra.mxu0 %v971
    %2117 = vmatprep.subr.mxu0 %v970
    %2118 = vmatpush2.msra.mxu0 %v969
    %2119 = vmatprep.subr.mxu0 %v968
    %2120 = vmatpush2.msra.mxu0 %v967
    %2121 = vmatprep.subr.mxu0 %v966
    %2122 = vmatpush2.msra.mxu0 %v965
    %2123 = vmatprep.subr.mxu0 %v964
    %2124 = vmatpush2.msra.mxu0 %v963
    %2125 = vmatprep.subr.mxu0 %v962
    %2126 = vmatpush2.msra.mxu0 %v961
    %2127 = vmatprep.subr.mxu0 %v960
    %2128 = vmatpush2.msra.mxu0 %v959
    %2129 = vmatprep.subr.mxu0 %v958
    %2130 = vmatpush2.msra.mxu0 %v957
    %2131 = vmatprep.subr.mxu0 %v956
    %2132 = vmatpush2.msra.mxu0 %v955
    %2133 = vmatprep.subr.mxu0 %v954
    %2134 = vmatpush2.msra.mxu0 %v953
    %2135 = vmatprep.subr.mxu0 %v952
    %2136 = vmatpush2.msra.mxu0 %v951
    %2137 = vmatprep.subr.mxu0 %v950
    %2138 = vmatpush2.msra.mxu0 %v949
    %2139 = vmatprep.subr.mxu0 %v948
    %2140 = vmatpush2.msra.mxu0 %v947
    %2141 = vmatprep.mubr.f32.mxu0 %v2075
    %2142 = vmatmul.mubr.f32.gmra.mxu0 %v2073
    %v2143 = vpop.f32.mrf.mxu0
    %v2144 = vadd.f32 0.0, %v2143
    %v2145 = vpop.f32.mrf.mxu0
    %v2146 = vadd.f32 0.0, %v2145
    %2147 = vdwg.mxu0
    %v2148 = vsel %vm625, %v2144, 0.0
    %v2149 = vrot.slane %v2148, 4
    %v2150 = vadd.f32 %v2148, %v2149
    %v2151 = vrot.slane %v2150, 2
    %v2152 = vadd.f32 %v2150, %v2151
    %v2153 = vrot.slane %v2152, 1
    %v2154 = vadd.f32 %v2152, %v2153
    %v2155 = vsel %vm625, %v2146, 0.0
    %v2156 = vrot.slane %v2155, 4
    %v2157 = vadd.f32 %v2155, %v2156
    %v2158 = vrot.slane %v2157, 2
    %v2159 = vadd.f32 %v2157, %v2158
    %v2160 = vrot.slane %v2159, 1
    %v2161 = vadd.f32 %v2159, %v2160
    %v2162 = vmul.f32 %v2154, %v640
    %v2163 = vmul.f32 %v2161, %v640
    %v2164 = vsub.f32 %v2073, %v2162
    %v2165 = vsub.f32 %v2075, %v2163
    %v2166 = vmul.f32 %v2164, %v2164
    %v2167 = vmul.f32 %v2165, %v2165
    %2168 = vmatprep.subr.mxu0 %v946
    %2169 = vmatpush1.msra.mxu0 %v945
    %2170 = vmatprep.subr.mxu0 %v944
    %2171 = vmatpush1.msra.mxu0 %v943
    %2172 = vmatprep.subr.mxu0 %v942
    %2173 = vmatpush1.msra.mxu0 %v941
    %2174 = vmatprep.subr.mxu0 %v940
    %2175 = vmatpush1.msra.mxu0 %v939
    %2176 = vmatprep.subr.mxu0 %v938
    %2177 = vmatpush1.msra.mxu0 %v937
    %2178 = vmatprep.subr.mxu0 %v936
    %2179 = vmatpush1.msra.mxu0 %v935
    %2180 = vmatprep.subr.mxu0 %v934
    %2181 = vmatpush1.msra.mxu0 %v933
    %2182 = vmatprep.subr.mxu0 %v932
    %2183 = vmatpush1.msra.mxu0 %v931
    %2184 = vmatprep.subr.mxu0 %v930
    %2185 = vmatpush1.msra.mxu0 %v929
    %2186 = vmatprep.subr.mxu0 %v928
    %2187 = vmatpush1.msra.mxu0 %v927
    %2188 = vmatprep.subr.mxu0 %v926
    %2189 = vmatpush1.msra.mxu0 %v925
    %2190 = vmatprep.subr.mxu0 %v924
    %2191 = vmatpush1.msra.mxu0 %v923
    %2192 = vmatprep.subr.mxu0 %v922
    %2193 = vmatpush1.msra.mxu0 %v921
    %2194 = vmatprep.subr.mxu0 %v920
    %2195 = vmatpush1.msra.mxu0 %v919
    %2196 = vmatprep.subr.mxu0 %v918
    %2197 = vmatpush1.msra.mxu0 %v917
    %2198 = vmatprep.subr.mxu0 %v916
    %2199 = vmatpush1.msra.mxu0 %v915
    %2200 = vmatprep.subr.mxu0 %v978
    %2201 = vmatpush2.msra.mxu0 %v977
    %2202 = vmatprep.subr.mxu0 %v976
    %2203 = vmatpush2.msra.mxu0 %v975
    %2204 = vmatprep.subr.mxu0 %v974
    %2205 = vmatpush2.msra.mxu0 %v973
    %2206 = vmatprep.subr.mxu0 %v972
    %2207 = vmatpush2.msra.mxu0 %v971
    %2208 = vmatprep.subr.mxu0 %v970
    %2209 = vmatpush2.msra.mxu0 %v969
    %2210 = vmatprep.subr.mxu0 %v968
    %2211 = vmatpush2.msra.mxu0 %v967
    %2212 = vmatprep.subr.mxu0 %v966
    %2213 = vmatpush2.msra.mxu0 %v965
    %2214 = vmatprep.subr.mxu0 %v964
    %2215 = vmatpush2.msra.mxu0 %v963
    %2216 = vmatprep.subr.mxu0 %v962
    %2217 = vmatpush2.msra.mxu0 %v961
    %2218 = vmatprep.subr.mxu0 %v960
    %2219 = vmatpush2.msra.mxu0 %v959
    %2220 = vmatprep.subr.mxu0 %v958
    %2221 = vmatpush2.msra.mxu0 %v957
    %2222 = vmatprep.subr.mxu0 %v956
    %2223 = vmatpush2.msra.mxu0 %v955
    %2224 = vmatprep.subr.mxu0 %v954
    %2225 = vmatpush2.msra.mxu0 %v953
    %2226 = vmatprep.subr.mxu0 %v952
    %2227 = vmatpush2.msra.mxu0 %v951
    %2228 = vmatprep.subr.mxu0 %v950
    %2229 = vmatpush2.msra.mxu0 %v949
    %2230 = vmatprep.subr.mxu0 %v948
    %2231 = vmatpush2.msra.mxu0 %v947
    %2232 = vmatprep.mubr.f32.mxu0 %v2167
    %2233 = vmatmul.mubr.f32.gmra.mxu0 %v2166
    %v2234 = vpop.f32.mrf.mxu0
    %v2235 = vadd.f32 0.0, %v2234
    %v2236 = vpop.f32.mrf.mxu0
    %v2237 = vadd.f32 0.0, %v2236
    %2238 = vdwg.mxu0
    %v2239 = vsel %vm625, %v2235, 0.0
    %v2240 = vrot.slane %v2239, 4
    %v2241 = vadd.f32 %v2239, %v2240
    %v2242 = vrot.slane %v2241, 2
    %v2243 = vadd.f32 %v2241, %v2242
    %v2244 = vrot.slane %v2243, 1
    %v2245 = vadd.f32 %v2243, %v2244
    %v2246 = vsel %vm625, %v2237, 0.0
    %v2247 = vrot.slane %v2246, 4
    %v2248 = vadd.f32 %v2246, %v2247
    %v2249 = vrot.slane %v2248, 2
    %v2250 = vadd.f32 %v2248, %v2249
    %v2251 = vrot.slane %v2250, 1
    %v2252 = vadd.f32 %v2250, %v2251
    %v2253 = vmul.f32 %v2245, %v640
    %v2254 = vmul.f32 %v2252, %v640
    %v2255 = vadd.f32 %v2253, 1e-05
    %v2256 = vadd.f32 %v2254, 1e-05
    %v2257 = vrsqrt.pop %v2255
    %v2258 = vrsqrt.pop %v2256
    %v2259 = vmul.f32 %v2164, %v2257
    %v2260 = vmul.f32 %v2165, %v2258
    %v2261 = vmul.f32 %v2259, %v1169
    %v2262 = vmul.f32 %v2260, %v1173
    %v2263 = vadd.f32 %v2261, %v1182
    %v2264 = vadd.f32 %v2262, %v1186
    %v2265 = vmax.f32 %v2263, 0.0
    %v2266 = vmax.f32 %v2264, 0.0
    %s2267 = scalar_lea.vmem [#allocation15], 512
    %v2268 = vld [vmem:[%s2267] sm:$0xff]
    %v2269 = vld [vmem:[%s2267 + $0x8] sm:$0xff]
    %v2270 = vld [vmem:[%s2267 + $0x10] sm:$0xff]
    %v2271 = vld [vmem:[%s2267 + $0x18] sm:$0xff]
    %v2272 = vld [vmem:[%s2267 + $0x20] sm:$0xff]
    %v2273 = vld [vmem:[%s2267 + $0x28] sm:$0xff]
    %v2274 = vld [vmem:[%s2267 + $0x30] sm:$0xff]
    %v2275 = vld [vmem:[%s2267 + $0x38] sm:$0xff]
    %v2276 = vld [vmem:[%s2267 + $0x40] sm:$0xff]
    %v2277 = vld [vmem:[%s2267 + $0x48] sm:$0xff]
    %v2278 = vld [vmem:[%s2267 + $0x50] sm:$0xff]
    %v2279 = vld [vmem:[%s2267 + $0x58] sm:$0xff]
    %v2280 = vld [vmem:[%s2267 + $0x60] sm:$0xff]
    %v2281 = vld [vmem:[%s2267 + $0x68] sm:$0xff]
    %v2282 = vld [vmem:[%s2267 + $0x70] sm:$0xff]
    %v2283 = vld [vmem:[%s2267 + $0x78] sm:$0xff]
    %v2284 = vld [vmem:[%s2267 + $0x80] sm:$0xff]
    %v2285 = vld [vmem:[%s2267 + $0x88] sm:$0xff]
    %v2286 = vld [vmem:[%s2267 + $0x90] sm:$0xff]
    %v2287 = vld [vmem:[%s2267 + $0x98] sm:$0xff]
    %v2288 = vld [vmem:[%s2267 + $0xa0] sm:$0xff]
    %v2289 = vld [vmem:[%s2267 + $0xa8] sm:$0xff]
    %v2290 = vld [vmem:[%s2267 + $0xb0] sm:$0xff]
    %v2291 = vld [vmem:[%s2267 + $0xb8] sm:$0xff]
    %v2292 = vld [vmem:[%s2267 + $0xc0] sm:$0xff]
    %v2293 = vld [vmem:[%s2267 + $0xc8] sm:$0xff]
    %v2294 = vld [vmem:[%s2267 + $0xd0] sm:$0xff]
    %v2295 = vld [vmem:[%s2267 + $0xd8] sm:$0xff]
    %v2296 = vld [vmem:[%s2267 + $0xe0] sm:$0xff]
    %v2297 = vld [vmem:[%s2267 + $0xe8] sm:$0xff]
    %v2298 = vld [vmem:[%s2267 + $0xf0] sm:$0xff]
    %v2299 = vld [vmem:[%s2267 + $0xf8] sm:$0xff]
    %v2300 = vld [vmem:[%s2267 + $0x100] sm:$0xff]
    %v2301 = vld [vmem:[%s2267 + $0x108] sm:$0xff]
    %v2302 = vld [vmem:[%s2267 + $0x110] sm:$0xff]
    %v2303 = vld [vmem:[%s2267 + $0x118] sm:$0xff]
    %v2304 = vld [vmem:[%s2267 + $0x120] sm:$0xff]
    %v2305 = vld [vmem:[%s2267 + $0x128] sm:$0xff]
    %v2306 = vld [vmem:[%s2267 + $0x130] sm:$0xff]
    %v2307 = vld [vmem:[%s2267 + $0x138] sm:$0xff]
    %v2308 = vld [vmem:[%s2267 + $0x140] sm:$0xff]
    %v2309 = vld [vmem:[%s2267 + $0x148] sm:$0xff]
    %v2310 = vld [vmem:[%s2267 + $0x150] sm:$0xff]
    %v2311 = vld [vmem:[%s2267 + $0x158] sm:$0xff]
    %v2312 = vld [vmem:[%s2267 + $0x160] sm:$0xff]
    %v2313 = vld [vmem:[%s2267 + $0x168] sm:$0xff]
    %v2314 = vld [vmem:[%s2267 + $0x170] sm:$0xff]
    %v2315 = vld [vmem:[%s2267 + $0x178] sm:$0xff]
    %v2316 = vld [vmem:[%s2267 + $0x180] sm:$0xff]
    %v2317 = vld [vmem:[%s2267 + $0x188] sm:$0xff]
    %v2318 = vld [vmem:[%s2267 + $0x190] sm:$0xff]
    %v2319 = vld [vmem:[%s2267 + $0x198] sm:$0xff]
    %v2320 = vld [vmem:[%s2267 + $0x1a0] sm:$0xff]
    %v2321 = vld [vmem:[%s2267 + $0x1a8] sm:$0xff]
    %v2322 = vld [vmem:[%s2267 + $0x1b0] sm:$0xff]
    %v2323 = vld [vmem:[%s2267 + $0x1b8] sm:$0xff]
    %v2324 = vld [vmem:[%s2267 + $0x1c0] sm:$0xff]
    %v2325 = vld [vmem:[%s2267 + $0x1c8] sm:$0xff]
    %v2326 = vld [vmem:[%s2267 + $0x1d0] sm:$0xff]
    %v2327 = vld [vmem:[%s2267 + $0x1d8] sm:$0xff]
    %v2328 = vld [vmem:[%s2267 + $0x1e0] sm:$0xff]
    %v2329 = vld [vmem:[%s2267 + $0x1e8] sm:$0xff]
    %v2330 = vld [vmem:[%s2267 + $0x1f0] sm:$0xff]
    %v2331 = vld [vmem:[%s2267 + $0x1f8] sm:$0xff]
    %s2332 = scalar_lea.vmem [#allocation16], 2
    %v2333 = vld [vmem:[%s2332] sm:$0x3]
    %v2335 = vlaneseq
    %v2336 = vshrl.u32 %v2335, 7
    %v2337 = vsub.s32 0, %v2336
    %v2338 = vrot.slane %v2333, %v2337
    %v2339 = vlaneseq
    %v2340 = vshrl.u32 %v2339, 7
    %v2341 = vsub.s32 1, %v2340
    %v2342 = vrot.slane %v2333, %v2341
    %2345 = vmatprep.subr.mxu0 %v2299
    %2346 = vmatpush1.msra.mxu0 %v2298
    %2347 = vmatprep.subr.mxu0 %v2297
    %2348 = vmatpush1.msra.mxu0 %v2296
    %2349 = vmatprep.subr.mxu0 %v2295
    %2350 = vmatpush1.msra.mxu0 %v2294
    %2351 = vmatprep.subr.mxu0 %v2293
    %2352 = vmatpush1.msra.mxu0 %v2292
    %2353 = vmatprep.subr.mxu0 %v2291
    %2354 = vmatpush1.msra.mxu0 %v2290
    %2355 = vmatprep.subr.mxu0 %v2289
    %2356 = vmatpush1.msra.mxu0 %v2288
    %2357 = vmatprep.subr.mxu0 %v2287
    %2358 = vmatpush1.msra.mxu0 %v2286
    %2359 = vmatprep.subr.mxu0 %v2285
    %2360 = vmatpush1.msra.mxu0 %v2284
    %2361 = vmatprep.subr.mxu0 %v2283
    %2362 = vmatpush1.msra.mxu0 %v2282
    %2363 = vmatprep.subr.mxu0 %v2281
    %2364 = vmatpush1.msra.mxu0 %v2280
    %2365 = vmatprep.subr.mxu0 %v2279
    %2366 = vmatpush1.msra.mxu0 %v2278
    %2367 = vmatprep.subr.mxu0 %v2277
    %2368 = vmatpush1.msra.mxu0 %v2276
    %2369 = vmatprep.subr.mxu0 %v2275
    %2370 = vmatpush1.msra.mxu0 %v2274
    %2371 = vmatprep.subr.mxu0 %v2273
    %2372 = vmatpush1.msra.mxu0 %v2272
    %2373 = vmatprep.subr.mxu0 %v2271
    %2374 = vmatpush1.msra.mxu0 %v2270
    %2375 = vmatprep.subr.mxu0 %v2269
    %2376 = vmatpush1.msra.mxu0 %v2268
    %2377 = vmatprep.subr.mxu0 %v2331
    %2378 = vmatpush2.msra.mxu0 %v2330
    %2379 = vmatprep.subr.mxu0 %v2329
    %2380 = vmatpush2.msra.mxu0 %v2328
    %2381 = vmatprep.subr.mxu0 %v2327
    %2382 = vmatpush2.msra.mxu0 %v2326
    %2383 = vmatprep.subr.mxu0 %v2325
    %2384 = vmatpush2.msra.mxu0 %v2324
    %2385 = vmatprep.subr.mxu0 %v2323
    %2386 = vmatpush2.msra.mxu0 %v2322
    %2387 = vmatprep.subr.mxu0 %v2321
    %2388 = vmatpush2.msra.mxu0 %v2320
    %2389 = vmatprep.subr.mxu0 %v2319
    %2390 = vmatpush2.msra.mxu0 %v2318
    %2391 = vmatprep.subr.mxu0 %v2317
    %2392 = vmatpush2.msra.mxu0 %v2316
    %2393 = vmatprep.subr.mxu0 %v2315
    %2394 = vmatpush2.msra.mxu0 %v2314
    %2395 = vmatprep.subr.mxu0 %v2313
    %2396 = vmatpush2.msra.mxu0 %v2312
    %2397 = vmatprep.subr.mxu0 %v2311
    %2398 = vmatpush2.msra.mxu0 %v2310
    %2399 = vmatprep.subr.mxu0 %v2309
    %2400 = vmatpush2.msra.mxu0 %v2308
    %2401 = vmatprep.subr.mxu0 %v2307
    %2402 = vmatpush2.msra.mxu0 %v2306
    %2403 = vmatprep.subr.mxu0 %v2305
    %2404 = vmatpush2.msra.mxu0 %v2304
    %2405 = vmatprep.subr.mxu0 %v2303
    %2406 = vmatpush2.msra.mxu0 %v2302
    %2407 = vmatprep.subr.mxu0 %v2301
    %2408 = vmatpush2.msra.mxu0 %v2300
    %2409 = vmatprep.mubr.f32.mxu0 %v2266
    %2410 = vmatmul.mubr.f32.gmra.mxu0 %v2265
    %v2411 = vpop.f32.mrf.mxu0
    %v2412 = vadd.f32 %v2338, %v2411
    %v2413 = vpop.f32.mrf.mxu0
    %v2414 = vadd.f32 %v2342, %v2413
    %2415 = vdwg.mxu0
    %2416 = vmatprep.subr.mxu0 %v1371
    %2417 = vmatpush1.msra.mxu0 %v1370
    %2418 = vmatprep.subr.mxu0 %v1369
    %2419 = vmatpush1.msra.mxu0 %v1368
    %2420 = vmatprep.subr.mxu0 %v1367
    %2421 = vmatpush1.msra.mxu0 %v1366
    %2422 = vmatprep.subr.mxu0 %v1365
    %2423 = vmatpush1.msra.mxu0 %v1364
    %2424 = vmatprep.subr.mxu0 %v1363
    %2425 = vmatpush1.msra.mxu0 %v1362
    %2426 = vmatprep.subr.mxu0 %v1361
    %2427 = vmatpush1.msra.mxu0 %v1360
    %2428 = vmatprep.subr.mxu0 %v1359
    %2429 = vmatpush1.msra.mxu0 %v1358
    %2430 = vmatprep.subr.mxu0 %v1357
    %2431 = vmatpush1.msra.mxu0 %v1356
    %2432 = vmatprep.subr.mxu0 %v1355
    %2433 = vmatpush1.msra.mxu0 %v1354
    %2434 = vmatprep.subr.mxu0 %v1353
    %2435 = vmatpush1.msra.mxu0 %v1352
    %2436 = vmatprep.subr.mxu0 %v1351
    %2437 = vmatpush1.msra.mxu0 %v1350
    %2438 = vmatprep.subr.mxu0 %v1349
    %2439 = vmatpush1.msra.mxu0 %v1348
    %2440 = vmatprep.subr.mxu0 %v1347
    %2441 = vmatpush1.msra.mxu0 %v1346
    %2442 = vmatprep.subr.mxu0 %v1345
    %2443 = vmatpush1.msra.mxu0 %v1344
    %2444 = vmatprep.subr.mxu0 %v1343
    %2445 = vmatpush1.msra.mxu0 %v1342
    %2446 = vmatprep.subr.mxu0 %v1341
    %2447 = vmatpush1.msra.mxu0 %v1340
    %2448 = vmatprep.subr.mxu0 %v1403
    %2449 = vmatpush2.msra.mxu0 %v1402
    %2450 = vmatprep.subr.mxu0 %v1401
    %2451 = vmatpush2.msra.mxu0 %v1400
    %2452 = vmatprep.subr.mxu0 %v1399
    %2453 = vmatpush2.msra.mxu0 %v1398
    %2454 = vmatprep.subr.mxu0 %v1397
    %2455 = vmatpush2.msra.mxu0 %v1396
    %2456 = vmatprep.subr.mxu0 %v1395
    %2457 = vmatpush2.msra.mxu0 %v1394
    %2458 = vmatprep.subr.mxu0 %v1393
    %2459 = vmatpush2.msra.mxu0 %v1392
    %2460 = vmatprep.subr.mxu0 %v1391
    %2461 = vmatpush2.msra.mxu0 %v1390
    %2462 = vmatprep.subr.mxu0 %v1389
    %2463 = vmatpush2.msra.mxu0 %v1388
    %2464 = vmatprep.subr.mxu0 %v1387
    %2465 = vmatpush2.msra.mxu0 %v1386
    %2466 = vmatprep.subr.mxu0 %v1385
    %2467 = vmatpush2.msra.mxu0 %v1384
    %2468 = vmatprep.subr.mxu0 %v1383
    %2469 = vmatpush2.msra.mxu0 %v1382
    %2470 = vmatprep.subr.mxu0 %v1381
    %2471 = vmatpush2.msra.mxu0 %v1380
    %2472 = vmatprep.subr.mxu0 %v1379
    %2473 = vmatpush2.msra.mxu0 %v1378
    %2474 = vmatprep.subr.mxu0 %v1377
    %2475 = vmatpush2.msra.mxu0 %v1376
    %2476 = vmatprep.subr.mxu0 %v1375
    %2477 = vmatpush2.msra.mxu0 %v1374
    %2478 = vmatprep.subr.mxu0 %v1373
    %2479 = vmatpush2.msra.mxu0 %v1372
    %2480 = vmatprep.mubr.f32.mxu0 %v2414
    %2481 = vmatmul.mubr.f32.gmra.mxu0 %v2412
    %v2482 = vpop.f32.mrf.mxu0
    %v2483 = vadd.f32 0.0, %v2482
    %v2484 = vpop.f32.mrf.mxu0
    %v2485 = vadd.f32 0.0, %v2484
    %2486 = vdwg.mxu0
    %v2487 = vsel %vm625, %v2483, 0.0
    %v2488 = vrot.slane %v2487, 4
    %v2489 = vadd.f32 %v2487, %v2488
    %v2490 = vrot.slane %v2489, 2
    %v2491 = vadd.f32 %v2489, %v2490
    %v2492 = vrot.slane %v2491, 1
    %v2493 = vadd.f32 %v2491, %v2492
    %v2494 = vsel %vm625, %v2485, 0.0
    %v2495 = vrot.slane %v2494, 4
    %v2496 = vadd.f32 %v2494, %v2495
    %v2497 = vrot.slane %v2496, 2
    %v2498 = vadd.f32 %v2496, %v2497
    %v2499 = vrot.slane %v2498, 1
    %v2500 = vadd.f32 %v2498, %v2499
    %v2501 = vmul.f32 %v2493, %v640
    %v2502 = vmul.f32 %v2500, %v640
    %v2503 = vsub.f32 %v2412, %v2501
    %v2504 = vsub.f32 %v2414, %v2502
    %v2505 = vmul.f32 %v2503, %v2503
    %v2506 = vmul.f32 %v2504, %v2504
    %2507 = vmatprep.subr.mxu0 %v1371
    %2508 = vmatpush1.msra.mxu0 %v1370
    %2509 = vmatprep.subr.mxu0 %v1369
    %2510 = vmatpush1.msra.mxu0 %v1368
    %2511 = vmatprep.subr.mxu0 %v1367
    %2512 = vmatpush1.msra.mxu0 %v1366
    %2513 = vmatprep.subr.mxu0 %v1365
    %2514 = vmatpush1.msra.mxu0 %v1364
    %2515 = vmatprep.subr.mxu0 %v1363
    %2516 = vmatpush1.msra.mxu0 %v1362
    %2517 = vmatprep.subr.mxu0 %v1361
    %2518 = vmatpush1.msra.mxu0 %v1360
    %2519 = vmatprep.subr.mxu0 %v1359
    %2520 = vmatpush1.msra.mxu0 %v1358
    %2521 = vmatprep.subr.mxu0 %v1357
    %2522 = vmatpush1.msra.mxu0 %v1356
    %2523 = vmatprep.subr.mxu0 %v1355
    %2524 = vmatpush1.msra.mxu0 %v1354
    %2525 = vmatprep.subr.mxu0 %v1353
    %2526 = vmatpush1.msra.mxu0 %v1352
    %2527 = vmatprep.subr.mxu0 %v1351
    %2528 = vmatpush1.msra.mxu0 %v1350
    %2529 = vmatprep.subr.mxu0 %v1349
    %2530 = vmatpush1.msra.mxu0 %v1348
    %2531 = vmatprep.subr.mxu0 %v1347
    %2532 = vmatpush1.msra.mxu0 %v1346
    %2533 = vmatprep.subr.mxu0 %v1345
    %2534 = vmatpush1.msra.mxu0 %v1344
    %2535 = vmatprep.subr.mxu0 %v1343
    %2536 = vmatpush1.msra.mxu0 %v1342
    %2537 = vmatprep.subr.mxu0 %v1341
    %2538 = vmatpush1.msra.mxu0 %v1340
    %2539 = vmatprep.subr.mxu0 %v1403
    %2540 = vmatpush2.msra.mxu0 %v1402
    %2541 = vmatprep.subr.mxu0 %v1401
    %2542 = vmatpush2.msra.mxu0 %v1400
    %2543 = vmatprep.subr.mxu0 %v1399
    %2544 = vmatpush2.msra.mxu0 %v1398
    %2545 = vmatprep.subr.mxu0 %v1397
    %2546 = vmatpush2.msra.mxu0 %v1396
    %2547 = vmatprep.subr.mxu0 %v1395
    %2548 = vmatpush2.msra.mxu0 %v1394
    %2549 = vmatprep.subr.mxu0 %v1393
    %2550 = vmatpush2.msra.mxu0 %v1392
    %2551 = vmatprep.subr.mxu0 %v1391
    %2552 = vmatpush2.msra.mxu0 %v1390
    %2553 = vmatprep.subr.mxu0 %v1389
    %2554 = vmatpush2.msra.mxu0 %v1388
    %2555 = vmatprep.subr.mxu0 %v1387
    %2556 = vmatpush2.msra.mxu0 %v1386
    %2557 = vmatprep.subr.mxu0 %v1385
    %2558 = vmatpush2.msra.mxu0 %v1384
    %2559 = vmatprep.subr.mxu0 %v1383
    %2560 = vmatpush2.msra.mxu0 %v1382
    %2561 = vmatprep.subr.mxu0 %v1381
    %2562 = vmatpush2.msra.mxu0 %v1380
    %2563 = vmatprep.subr.mxu0 %v1379
    %2564 = vmatpush2.msra.mxu0 %v1378
    %2565 = vmatprep.subr.mxu0 %v1377
    %2566 = vmatpush2.msra.mxu0 %v1376
    %2567 = vmatprep.subr.mxu0 %v1375
    %2568 = vmatpush2.msra.mxu0 %v1374
    %2569 = vmatprep.subr.mxu0 %v1373
    %2570 = vmatpush2.msra.mxu0 %v1372
    %2571 = vmatprep.mubr.f32.mxu0 %v2506
    %2572 = vmatmul.mubr.f32.gmra.mxu0 %v2505
    %v2573 = vpop.f32.mrf.mxu0
    %v2574 = vadd.f32 0.0, %v2573
    %v2575 = vpop.f32.mrf.mxu0
    %v2576 = vadd.f32 0.0, %v2575
    %2577 = vdwg.mxu0
    %v2578 = vsel %vm625, %v2574, 0.0
    %v2579 = vrot.slane %v2578, 4
    %v2580 = vadd.f32 %v2578, %v2579
    %v2581 = vrot.slane %v2580, 2
    %v2582 = vadd.f32 %v2580, %v2581
    %v2583 = vrot.slane %v2582, 1
    %v2584 = vadd.f32 %v2582, %v2583
    %v2585 = vsel %vm625, %v2576, 0.0
    %v2586 = vrot.slane %v2585, 4
    %v2587 = vadd.f32 %v2585, %v2586
    %v2588 = vrot.slane %v2587, 2
    %v2589 = vadd.f32 %v2587, %v2588
    %v2590 = vrot.slane %v2589, 1
    %v2591 = vadd.f32 %v2589, %v2590
    %v2592 = vmul.f32 %v2584, %v640
    %v2593 = vmul.f32 %v2591, %v640
    %v2594 = vadd.f32 %v2592, 1e-05
    %v2595 = vadd.f32 %v2593, 1e-05
    %v2596 = vrsqrt.pop %v2594
    %v2597 = vrsqrt.pop %v2595
    %v2598 = vmul.f32 %v2503, %v2596
    %v2599 = vmul.f32 %v2504, %v2597
    %v2600 = vmul.f32 %v2598, %v1594
    %v2601 = vmul.f32 %v2599, %v1598
    %v2602 = vadd.f32 %v2600, %v1607
    %v2603 = vadd.f32 %v2601, %v1611
    %v2604 = vmax.f32 %v2602, 0.0
    %v2605 = vmax.f32 %v2603, 0.0
    %s2606 = scalar_lea.vmem %s18, 256
    %v2607 = vld [vmem:[%s2606] sm:$0xff]
    %v2608 = vld [vmem:[%s2606 + $0x8] sm:$0xff]
    %v2609 = vld [vmem:[%s2606 + $0x10] sm:$0xff]
    %v2610 = vld [vmem:[%s2606 + $0x18] sm:$0xff]
    %v2611 = vld [vmem:[%s2606 + $0x20] sm:$0xff]
    %v2612 = vld [vmem:[%s2606 + $0x28] sm:$0xff]
    %v2613 = vld [vmem:[%s2606 + $0x30] sm:$0xff]
    %v2614 = vld [vmem:[%s2606 + $0x38] sm:$0xff]
    %v2615 = vld [vmem:[%s2606 + $0x40] sm:$0xff]
    %v2616 = vld [vmem:[%s2606 + $0x48] sm:$0xff]
    %v2617 = vld [vmem:[%s2606 + $0x50] sm:$0xff]
    %v2618 = vld [vmem:[%s2606 + $0x58] sm:$0xff]
    %v2619 = vld [vmem:[%s2606 + $0x60] sm:$0xff]
    %v2620 = vld [vmem:[%s2606 + $0x68] sm:$0xff]
    %v2621 = vld [vmem:[%s2606 + $0x70] sm:$0xff]
    %v2622 = vld [vmem:[%s2606 + $0x78] sm:$0xff]
    %v2623 = vld [vmem:[%s2606 + $0x80] sm:$0xff]
    %v2624 = vld [vmem:[%s2606 + $0x88] sm:$0xff]
    %v2625 = vld [vmem:[%s2606 + $0x90] sm:$0xff]
    %v2626 = vld [vmem:[%s2606 + $0x98] sm:$0xff]
    %v2627 = vld [vmem:[%s2606 + $0xa0] sm:$0xff]
    %v2628 = vld [vmem:[%s2606 + $0xa8] sm:$0xff]
    %v2629 = vld [vmem:[%s2606 + $0xb0] sm:$0xff]
    %v2630 = vld [vmem:[%s2606 + $0xb8] sm:$0xff]
    %v2631 = vld [vmem:[%s2606 + $0xc0] sm:$0xff]
    %v2632 = vld [vmem:[%s2606 + $0xc8] sm:$0xff]
    %v2633 = vld [vmem:[%s2606 + $0xd0] sm:$0xff]
    %v2634 = vld [vmem:[%s2606 + $0xd8] sm:$0xff]
    %v2635 = vld [vmem:[%s2606 + $0xe0] sm:$0xff]
    %v2636 = vld [vmem:[%s2606 + $0xe8] sm:$0xff]
    %v2637 = vld [vmem:[%s2606 + $0xf0] sm:$0xff]
    %v2638 = vld [vmem:[%s2606 + $0xf8] sm:$0xff]
    %s2639 = scalar_lea.vmem %s19, 1
    %v2640 = vld [vmem:[%s2639] sm:$0x1]
    %v2642 = vlaneseq
    %v2643 = vshrl.u32 %v2642, 7
    %v2644 = vsub.s32 0, %v2643
    %v2645 = vrot.slane %v2640, %v2644
    %2647 = vmatprep.subr.mxu0 0.0
    %2648 = vmatpush1.msra.mxu0 %v2622
    %2649 = vmatprep.subr.mxu0 0.0
    %2650 = vmatpush1.msra.mxu0 %v2621
    %2651 = vmatprep.subr.mxu0 0.0
    %2652 = vmatpush1.msra.mxu0 %v2620
    %2653 = vmatprep.subr.mxu0 0.0
    %2654 = vmatpush1.msra.mxu0 %v2619
    %2655 = vmatprep.subr.mxu0 0.0
    %2656 = vmatpush1.msra.mxu0 %v2618
    %2657 = vmatprep.subr.mxu0 0.0
    %2658 = vmatpush1.msra.mxu0 %v2617
    %2659 = vmatprep.subr.mxu0 0.0
    %2660 = vmatpush1.msra.mxu0 %v2616
    %2661 = vmatprep.subr.mxu0 0.0
    %2662 = vmatpush1.msra.mxu0 %v2615
    %2663 = vmatprep.subr.mxu0 0.0
    %2664 = vmatpush1.msra.mxu0 %v2614
    %2665 = vmatprep.subr.mxu0 0.0
    %2666 = vmatpush1.msra.mxu0 %v2613
    %2667 = vmatprep.subr.mxu0 0.0
    %2668 = vmatpush1.msra.mxu0 %v2612
    %2669 = vmatprep.subr.mxu0 0.0
    %2670 = vmatpush1.msra.mxu0 %v2611
    %2671 = vmatprep.subr.mxu0 0.0
    %2672 = vmatpush1.msra.mxu0 %v2610
    %2673 = vmatprep.subr.mxu0 0.0
    %2674 = vmatpush1.msra.mxu0 %v2609
    %2675 = vmatprep.subr.mxu0 0.0
    %2676 = vmatpush1.msra.mxu0 %v2608
    %2677 = vmatprep.subr.mxu0 0.0
    %2678 = vmatpush1.msra.mxu0 %v2607
    %2679 = vmatprep.subr.mxu0 0.0
    %2680 = vmatpush2.msra.mxu0 %v2638
    %2681 = vmatprep.subr.mxu0 0.0
    %2682 = vmatpush2.msra.mxu0 %v2637
    %2683 = vmatprep.subr.mxu0 0.0
    %2684 = vmatpush2.msra.mxu0 %v2636
    %2685 = vmatprep.subr.mxu0 0.0
    %2686 = vmatpush2.msra.mxu0 %v2635
    %2687 = vmatprep.subr.mxu0 0.0
    %2688 = vmatpush2.msra.mxu0 %v2634
    %2689 = vmatprep.subr.mxu0 0.0
    %2690 = vmatpush2.msra.mxu0 %v2633
    %2691 = vmatprep.subr.mxu0 0.0
    %2692 = vmatpush2.msra.mxu0 %v2632
    %2693 = vmatprep.subr.mxu0 0.0
    %2694 = vmatpush2.msra.mxu0 %v2631
    %2695 = vmatprep.subr.mxu0 0.0
    %2696 = vmatpush2.msra.mxu0 %v2630
    %2697 = vmatprep.subr.mxu0 0.0
    %2698 = vmatpush2.msra.mxu0 %v2629
    %2699 = vmatprep.subr.mxu0 0.0
    %2700 = vmatpush2.msra.mxu0 %v2628
    %2701 = vmatprep.subr.mxu0 0.0
    %2702 = vmatpush2.msra.mxu0 %v2627
    %2703 = vmatprep.subr.mxu0 0.0
    %2704 = vmatpush2.msra.mxu0 %v2626
    %2705 = vmatprep.subr.mxu0 0.0
    %2706 = vmatpush2.msra.mxu0 %v2625
    %2707 = vmatprep.subr.mxu0 0.0
    %2708 = vmatpush2.msra.mxu0 %v2624
    %2709 = vmatprep.subr.mxu0 0.0
    %2710 = vmatpush2.msra.mxu0 %v2623
    %2711 = vmatprep.mubr.f32.mxu0 %v2605
    %2712 = vmatmul.mubr.f32.gmra.mxu0 %v2604
    %v2713 = vpop.f32.mrf.mxu0
    %v2714 = vadd.f32 %v2645, %v2713
    %v2715 = vpop.f32.mrf.mxu0
    %2716 = vdwg.mxu0
    %v2718 = vsel %vm413, %v2714, 0
    %2720 = vmatprep.subr.mxu0 0.0
    %2721 = vmatpush1.msra.mxu0 0.0
    %2722 = vmatprep.subr.mxu0 0.0
    %2723 = vmatpush1.msra.mxu0 0.0
    %2724 = vmatprep.subr.mxu0 0.0
    %2725 = vmatpush1.msra.mxu0 0.0
    %2726 = vmatprep.subr.mxu0 0.0
    %2727 = vmatpush1.msra.mxu0 0.0
    %2728 = vmatprep.subr.mxu0 0.0
    %2729 = vmatpush1.msra.mxu0 0.0
    %2730 = vmatprep.subr.mxu0 0.0
    %2731 = vmatpush1.msra.mxu0 0.0
    %2732 = vmatprep.subr.mxu0 0.0
    %2733 = vmatpush1.msra.mxu0 0.0
    %2734 = vmatprep.subr.mxu0 0.0
    %2735 = vmatpush1.msra.mxu0 0.0
    %2736 = vmatprep.subr.mxu0 0.0
    %2737 = vmatpush1.msra.mxu0 %v1734
    %2738 = vmatprep.subr.mxu0 0.0
    %2739 = vmatpush1.msra.mxu0 %v1733
    %2740 = vmatprep.subr.mxu0 0.0
    %2741 = vmatpush1.msra.mxu0 %v1732
    %2742 = vmatprep.subr.mxu0 0.0
    %2743 = vmatpush1.msra.mxu0 %v1731
    %2744 = vmatprep.subr.mxu0 0.0
    %2745 = vmatpush1.msra.mxu0 %v1730
    %2746 = vmatprep.subr.mxu0 0.0
    %2747 = vmatpush1.msra.mxu0 %v1729
    %2748 = vmatprep.subr.mxu0 0.0
    %2749 = vmatpush1.msra.mxu0 %v1728
    %2750 = vmatprep.subr.mxu0 0.0
    %2751 = vmatpush1.msra.mxu0 %v1727
    %2752 = vmatprep.subr.mxu0 0.0
    %2753 = vmatpush2.msra.mxu0 0.0
    %2754 = vmatprep.subr.mxu0 0.0
    %2755 = vmatpush2.msra.mxu0 0.0
    %2756 = vmatprep.subr.mxu0 0.0
    %2757 = vmatpush2.msra.mxu0 0.0
    %2758 = vmatprep.subr.mxu0 0.0
    %2759 = vmatpush2.msra.mxu0 0.0
    %2760 = vmatprep.subr.mxu0 0.0
    %2761 = vmatpush2.msra.mxu0 0.0
    %2762 = vmatprep.subr.mxu0 0.0
    %2763 = vmatpush2.msra.mxu0 0.0
    %2764 = vmatprep.subr.mxu0 0.0
    %2765 = vmatpush2.msra.mxu0 0.0
    %2766 = vmatprep.subr.mxu0 0.0
    %2767 = vmatpush2.msra.mxu0 0.0
    %2768 = vmatprep.subr.mxu0 0.0
    %2769 = vmatpush2.msra.mxu0 0.0
    %2770 = vmatprep.subr.mxu0 0.0
    %2771 = vmatpush2.msra.mxu0 0.0
    %2772 = vmatprep.subr.mxu0 0.0
    %2773 = vmatpush2.msra.mxu0 0.0
    %2774 = vmatprep.subr.mxu0 0.0
    %2775 = vmatpush2.msra.mxu0 0.0
    %2776 = vmatprep.subr.mxu0 0.0
    %2777 = vmatpush2.msra.mxu0 0.0
    %2778 = vmatprep.subr.mxu0 0.0
    %2779 = vmatpush2.msra.mxu0 0.0
    %2780 = vmatprep.subr.mxu0 0.0
    %2781 = vmatpush2.msra.mxu0 0.0
    %2782 = vmatprep.subr.mxu0 0.0
    %2783 = vmatpush2.msra.mxu0 0.0
    %2784 = vmatprep.mubr.f32.mxu0 0.0
    %2785 = vmatmul.mubr.f32.gmra.mxu0 %v2718
    %v2786 = vpop.f32.mrf.mxu0
    %v2787 = vadd.f32 0.0, %v2786
    %v2788 = vpop.f32.mrf.mxu0
    %2789 = vdwg.mxu0
    %v2790 = vsel %vm1810, %v2787, 0.0
    %v2791 = vrot.slane %v2790, 4
    %v2792 = vadd.f32 %v2790, %v2791
    %v2793 = vrot.slane %v2792, 2
    %v2794 = vadd.f32 %v2792, %v2793
    %v2795 = vrot.slane %v2794, 1
    %v2796 = vadd.f32 %v2794, %v2795
    %v2797 = vmul.f32 %v2796, %v640
    %v2798 = vsub.f32 %v2714, %v2797
    %v2799 = vmul.f32 %v2798, %v2798
    %v2801 = vsel %vm413, %v2799, 0
    %2803 = vmatprep.subr.mxu0 0.0
    %2804 = vmatpush1.msra.mxu0 0.0
    %2805 = vmatprep.subr.mxu0 0.0
    %2806 = vmatpush1.msra.mxu0 0.0
    %2807 = vmatprep.subr.mxu0 0.0
    %2808 = vmatpush1.msra.mxu0 0.0
    %2809 = vmatprep.subr.mxu0 0.0
    %2810 = vmatpush1.msra.mxu0 0.0
    %2811 = vmatprep.subr.mxu0 0.0
    %2812 = vmatpush1.msra.mxu0 0.0
    %2813 = vmatprep.subr.mxu0 0.0
    %2814 = vmatpush1.msra.mxu0 0.0
    %2815 = vmatprep.subr.mxu0 0.0
    %2816 = vmatpush1.msra.mxu0 0.0
    %2817 = vmatprep.subr.mxu0 0.0
    %2818 = vmatpush1.msra.mxu0 0.0
    %2819 = vmatprep.subr.mxu0 0.0
    %2820 = vmatpush1.msra.mxu0 %v1734
    %2821 = vmatprep.subr.mxu0 0.0
    %2822 = vmatpush1.msra.mxu0 %v1733
    %2823 = vmatprep.subr.mxu0 0.0
    %2824 = vmatpush1.msra.mxu0 %v1732
    %2825 = vmatprep.subr.mxu0 0.0
    %2826 = vmatpush1.msra.mxu0 %v1731
    %2827 = vmatprep.subr.mxu0 0.0
    %2828 = vmatpush1.msra.mxu0 %v1730
    %2829 = vmatprep.subr.mxu0 0.0
    %2830 = vmatpush1.msra.mxu0 %v1729
    %2831 = vmatprep.subr.mxu0 0.0
    %2832 = vmatpush1.msra.mxu0 %v1728
    %2833 = vmatprep.subr.mxu0 0.0
    %2834 = vmatpush1.msra.mxu0 %v1727
    %2835 = vmatprep.subr.mxu0 0.0
    %2836 = vmatpush2.msra.mxu0 0.0
    %2837 = vmatprep.subr.mxu0 0.0
    %2838 = vmatpush2.msra.mxu0 0.0
    %2839 = vmatprep.subr.mxu0 0.0
    %2840 = vmatpush2.msra.mxu0 0.0
    %2841 = vmatprep.subr.mxu0 0.0
    %2842 = vmatpush2.msra.mxu0 0.0
    %2843 = vmatprep.subr.mxu0 0.0
    %2844 = vmatpush2.msra.mxu0 0.0
    %2845 = vmatprep.subr.mxu0 0.0
    %2846 = vmatpush2.msra.mxu0 0.0
    %2847 = vmatprep.subr.mxu0 0.0
    %2848 = vmatpush2.msra.mxu0 0.0
    %2849 = vmatprep.subr.mxu0 0.0
    %2850 = vmatpush2.msra.mxu0 0.0
    %2851 = vmatprep.subr.mxu0 0.0
    %2852 = vmatpush2.msra.mxu0 0.0
    %2853 = vmatprep.subr.mxu0 0.0
    %2854 = vmatpush2.msra.mxu0 0.0
    %2855 = vmatprep.subr.mxu0 0.0
    %2856 = vmatpush2.msra.mxu0 0.0
    %2857 = vmatprep.subr.mxu0 0.0
    %2858 = vmatpush2.msra.mxu0 0.0
    %2859 = vmatprep.subr.mxu0 0.0
    %2860 = vmatpush2.msra.mxu0 0.0
    %2861 = vmatprep.subr.mxu0 0.0
    %2862 = vmatpush2.msra.mxu0 0.0
    %2863 = vmatprep.subr.mxu0 0.0
    %2864 = vmatpush2.msra.mxu0 0.0
    %2865 = vmatprep.subr.mxu0 0.0
    %2866 = vmatpush2.msra.mxu0 0.0
    %2867 = vmatprep.mubr.f32.mxu0 0.0
    %2868 = vmatmul.mubr.f32.gmra.mxu0 %v2801
    %v2869 = vpop.f32.mrf.mxu0
    %v2870 = vadd.f32 0.0, %v2869
    %v2871 = vpop.f32.mrf.mxu0
    %2872 = vdwg.mxu0
    %v2873 = vsel %vm1810, %v2870, 0.0
    %v2874 = vrot.slane %v2873, 4
    %v2875 = vadd.f32 %v2873, %v2874
    %v2876 = vrot.slane %v2875, 2
    %v2877 = vadd.f32 %v2875, %v2876
    %v2878 = vrot.slane %v2877, 1
    %v2879 = vadd.f32 %v2877, %v2878
    %v2880 = vmul.f32 %v2879, %v640
    %v2881 = vadd.f32 %v2880, 1e-05
    %v2882 = vrsqrt.pop %v2881
    %v2883 = vmul.f32 %v2798, %v2882
    %v2884 = vmul.f32 %v2883, %v1909
    %v2885 = vadd.f32 %v2884, %v1916
    %v2886 = vmax.f32 %v2885, 0.0
    %s2887 = scalar_lea.vmem [#allocation27], 64
    %v2888 = vld [vmem:[%s2887] sm:$0xff]
    %v2889 = vld [vmem:[%s2887 + $0x8] sm:$0xff]
    %v2890 = vld [vmem:[%s2887 + $0x10] sm:$0xff]
    %v2891 = vld [vmem:[%s2887 + $0x18] sm:$0xff]
    %v2892 = vld [vmem:[%s2887 + $0x20] sm:$0xff]
    %v2893 = vld [vmem:[%s2887 + $0x28] sm:$0xff]
    %v2894 = vld [vmem:[%s2887 + $0x30] sm:$0xff]
    %v2895 = vld [vmem:[%s2887 + $0x38] sm:$0xff]
    %v2897 = vsel %vm413, %v2886, 0
    %2899 = vmatprep.subr.mxu0 0.0
    %2900 = vmatpush1.msra.mxu0 0.0
    %2901 = vmatprep.subr.mxu0 0.0
    %2902 = vmatpush1.msra.mxu0 0.0
    %2903 = vmatprep.subr.mxu0 0.0
    %2904 = vmatpush1.msra.mxu0 0.0
    %2905 = vmatprep.subr.mxu0 0.0
    %2906 = vmatpush1.msra.mxu0 0.0
    %2907 = vmatprep.subr.mxu0 0.0
    %2908 = vmatpush1.msra.mxu0 0.0
    %2909 = vmatprep.subr.mxu0 0.0
    %2910 = vmatpush1.msra.mxu0 0.0
    %2911 = vmatprep.subr.mxu0 0.0
    %2912 = vmatpush1.msra.mxu0 0.0
    %2913 = vmatprep.subr.mxu0 0.0
    %2914 = vmatpush1.msra.mxu0 0.0
    %2915 = vmatprep.subr.mxu0 0.0
    %2916 = vmatpush1.msra.mxu0 %v2895
    %2917 = vmatprep.subr.mxu0 0.0
    %2918 = vmatpush1.msra.mxu0 %v2894
    %2919 = vmatprep.subr.mxu0 0.0
    %2920 = vmatpush1.msra.mxu0 %v2893
    %2921 = vmatprep.subr.mxu0 0.0
    %2922 = vmatpush1.msra.mxu0 %v2892
    %2923 = vmatprep.subr.mxu0 0.0
    %2924 = vmatpush1.msra.mxu0 %v2891
    %2925 = vmatprep.subr.mxu0 0.0
    %2926 = vmatpush1.msra.mxu0 %v2890
    %2927 = vmatprep.subr.mxu0 0.0
    %2928 = vmatpush1.msra.mxu0 %v2889
    %2929 = vmatprep.subr.mxu0 0.0
    %2930 = vmatpush1.msra.mxu0 %v2888
    %2931 = vmatprep.subr.mxu0 0.0
    %2932 = vmatpush2.msra.mxu0 0.0
    %2933 = vmatprep.subr.mxu0 0.0
    %2934 = vmatpush2.msra.mxu0 0.0
    %2935 = vmatprep.subr.mxu0 0.0
    %2936 = vmatpush2.msra.mxu0 0.0
    %2937 = vmatprep.subr.mxu0 0.0
    %2938 = vmatpush2.msra.mxu0 0.0
    %2939 = vmatprep.subr.mxu0 0.0
    %2940 = vmatpush2.msra.mxu0 0.0
    %2941 = vmatprep.subr.mxu0 0.0
    %2942 = vmatpush2.msra.mxu0 0.0
    %2943 = vmatprep.subr.mxu0 0.0
    %2944 = vmatpush2.msra.mxu0 0.0
    %2945 = vmatprep.subr.mxu0 0.0
    %2946 = vmatpush2.msra.mxu0 0.0
    %2947 = vmatprep.subr.mxu0 0.0
    %2948 = vmatpush2.msra.mxu0 0.0
    %2949 = vmatprep.subr.mxu0 0.0
    %2950 = vmatpush2.msra.mxu0 0.0
    %2951 = vmatprep.subr.mxu0 0.0
    %2952 = vmatpush2.msra.mxu0 0.0
    %2953 = vmatprep.subr.mxu0 0.0
    %2954 = vmatpush2.msra.mxu0 0.0
    %2955 = vmatprep.subr.mxu0 0.0
    %2956 = vmatpush2.msra.mxu0 0.0
    %2957 = vmatprep.subr.mxu0 0.0
    %2958 = vmatpush2.msra.mxu0 0.0
    %2959 = vmatprep.subr.mxu0 0.0
    %2960 = vmatpush2.msra.mxu0 0.0
    %2961 = vmatprep.subr.mxu0 0.0
    %2962 = vmatpush2.msra.mxu0 0.0
    %2963 = vmatprep.mubr.f32.mxu0 0.0
    %2964 = vmatmul.mubr.f32.gmra.mxu0 %v2897
    %v2965 = vpop.f32.mrf.mxu0
    %v2966 = vadd.f32 0.0, %v2965
    %v2967 = vpop.f32.mrf.mxu0
    %2968 = vdwg.mxu0
    %v2970 = vsel %vm413, %v1919, 0
    %2972 = vmatprep.subr.mxu0 0.0
    %2973 = vmatpush1.msra.mxu0 0.0
    %2974 = vmatprep.subr.mxu0 0.0
    %2975 = vmatpush1.msra.mxu0 0.0
    %2976 = vmatprep.subr.mxu0 0.0
    %2977 = vmatpush1.msra.mxu0 0.0
    %2978 = vmatprep.subr.mxu0 0.0
    %2979 = vmatpush1.msra.mxu0 0.0
    %2980 = vmatprep.subr.mxu0 0.0
    %2981 = vmatpush1.msra.mxu0 0.0
    %2982 = vmatprep.subr.mxu0 0.0
    %2983 = vmatpush1.msra.mxu0 0.0
    %2984 = vmatprep.subr.mxu0 0.0
    %2985 = vmatpush1.msra.mxu0 0.0
    %2986 = vmatprep.subr.mxu0 0.0
    %2987 = vmatpush1.msra.mxu0 0.0
    %2988 = vmatprep.subr.mxu0 0.0
    %2989 = vmatpush1.msra.mxu0 %v1927
    %2990 = vmatprep.subr.mxu0 0.0
    %2991 = vmatpush1.msra.mxu0 %v1926
    %2992 = vmatprep.subr.mxu0 0.0
    %2993 = vmatpush1.msra.mxu0 %v1925
    %2994 = vmatprep.subr.mxu0 0.0
    %2995 = vmatpush1.msra.mxu0 %v1924
    %2996 = vmatprep.subr.mxu0 0.0
    %2997 = vmatpush1.msra.mxu0 %v1923
    %2998 = vmatprep.subr.mxu0 0.0
    %2999 = vmatpush1.msra.mxu0 %v1922
    %3000 = vmatprep.subr.mxu0 0.0
    %3001 = vmatpush1.msra.mxu0 %v1921
    %3002 = vmatprep.subr.mxu0 0.0
    %3003 = vmatpush1.msra.mxu0 %v1920
    %3004 = vmatprep.subr.mxu0 0.0
    %3005 = vmatpush2.msra.mxu0 0.0
    %3006 = vmatprep.subr.mxu0 0.0
    %3007 = vmatpush2.msra.mxu0 0.0
    %3008 = vmatprep.subr.mxu0 0.0
    %3009 = vmatpush2.msra.mxu0 0.0
    %3010 = vmatprep.subr.mxu0 0.0
    %3011 = vmatpush2.msra.mxu0 0.0
    %3012 = vmatprep.subr.mxu0 0.0
    %3013 = vmatpush2.msra.mxu0 0.0
    %3014 = vmatprep.subr.mxu0 0.0
    %3015 = vmatpush2.msra.mxu0 0.0
    %3016 = vmatprep.subr.mxu0 0.0
    %3017 = vmatpush2.msra.mxu0 0.0
    %3018 = vmatprep.subr.mxu0 0.0
    %3019 = vmatpush2.msra.mxu0 0.0
    %3020 = vmatprep.subr.mxu0 0.0
    %3021 = vmatpush2.msra.mxu0 0.0
    %3022 = vmatprep.subr.mxu0 0.0
    %3023 = vmatpush2.msra.mxu0 0.0
    %3024 = vmatprep.subr.mxu0 0.0
    %3025 = vmatpush2.msra.mxu0 0.0
    %3026 = vmatprep.subr.mxu0 0.0
    %3027 = vmatpush2.msra.mxu0 0.0
    %3028 = vmatprep.subr.mxu0 0.0
    %3029 = vmatpush2.msra.mxu0 0.0
    %3030 = vmatprep.subr.mxu0 0.0
    %3031 = vmatpush2.msra.mxu0 0.0
    %3032 = vmatprep.subr.mxu0 0.0
    %3033 = vmatpush2.msra.mxu0 0.0
    %3034 = vmatprep.subr.mxu0 0.0
    %3035 = vmatpush2.msra.mxu0 0.0
    %3036 = vmatprep.mubr.f32.mxu0 0.0
    %3037 = vmatmul.mubr.f32.gmra.mxu0 %v2970
    %v3038 = vpop.f32.mrf.mxu0
    %v3039 = vadd.f32 %v2966, %v3038
    %v3040 = vpop.f32.mrf.mxu0
    %3041 = vdwg.mxu0
    %s3042 = scalar_lea.vmem [#allocation10], 1024
    %v3043 = vld [vmem:[%s3042] sm:$0xff]
    %v3044 = vld [vmem:[%s3042 + $0x8] sm:$0xff]
    %v3045 = vld [vmem:[%s3042 + $0x10] sm:$0xff]
    %v3046 = vld [vmem:[%s3042 + $0x18] sm:$0xff]
    %v3047 = vld [vmem:[%s3042 + $0x20] sm:$0xff]
    %v3048 = vld [vmem:[%s3042 + $0x28] sm:$0xff]
    %v3049 = vld [vmem:[%s3042 + $0x30] sm:$0xff]
    %v3050 = vld [vmem:[%s3042 + $0x38] sm:$0xff]
    %v3051 = vld [vmem:[%s3042 + $0x40] sm:$0xff]
    %v3052 = vld [vmem:[%s3042 + $0x48] sm:$0xff]
    %v3053 = vld [vmem:[%s3042 + $0x50] sm:$0xff]
    %v3054 = vld [vmem:[%s3042 + $0x58] sm:$0xff]
    %v3055 = vld [vmem:[%s3042 + $0x60] sm:$0xff]
    %v3056 = vld [vmem:[%s3042 + $0x68] sm:$0xff]
    %v3057 = vld [vmem:[%s3042 + $0x70] sm:$0xff]
    %v3058 = vld [vmem:[%s3042 + $0x78] sm:$0xff]
    %v3059 = vld [vmem:[%s3042 + $0x80] sm:$0xff]
    %v3060 = vld [vmem:[%s3042 + $0x88] sm:$0xff]
    %v3061 = vld [vmem:[%s3042 + $0x90] sm:$0xff]
    %v3062 = vld [vmem:[%s3042 + $0x98] sm:$0xff]
    %v3063 = vld [vmem:[%s3042 + $0xa0] sm:$0xff]
    %v3064 = vld [vmem:[%s3042 + $0xa8] sm:$0xff]
    %v3065 = vld [vmem:[%s3042 + $0xb0] sm:$0xff]
    %v3066 = vld [vmem:[%s3042 + $0xb8] sm:$0xff]
    %v3067 = vld [vmem:[%s3042 + $0xc0] sm:$0xff]
    %v3068 = vld [vmem:[%s3042 + $0xc8] sm:$0xff]
    %v3069 = vld [vmem:[%s3042 + $0xd0] sm:$0xff]
    %v3070 = vld [vmem:[%s3042 + $0xd8] sm:$0xff]
    %v3071 = vld [vmem:[%s3042 + $0xe0] sm:$0xff]
    %v3072 = vld [vmem:[%s3042 + $0xe8] sm:$0xff]
    %v3073 = vld [vmem:[%s3042 + $0xf0] sm:$0xff]
    %v3074 = vld [vmem:[%s3042 + $0xf8] sm:$0xff]
    %v3075 = vld [vmem:[%s3042 + $0x100] sm:$0xff]
    %v3076 = vld [vmem:[%s3042 + $0x108] sm:$0xff]
    %v3077 = vld [vmem:[%s3042 + $0x110] sm:$0xff]
    %v3078 = vld [vmem:[%s3042 + $0x118] sm:$0xff]
    %v3079 = vld [vmem:[%s3042 + $0x120] sm:$0xff]
    %v3080 = vld [vmem:[%s3042 + $0x128] sm:$0xff]
    %v3081 = vld [vmem:[%s3042 + $0x130] sm:$0xff]
    %v3082 = vld [vmem:[%s3042 + $0x138] sm:$0xff]
    %v3083 = vld [vmem:[%s3042 + $0x140] sm:$0xff]
    %v3084 = vld [vmem:[%s3042 + $0x148] sm:$0xff]
    %v3085 = vld [vmem:[%s3042 + $0x150] sm:$0xff]
    %v3086 = vld [vmem:[%s3042 + $0x158] sm:$0xff]
    %v3087 = vld [vmem:[%s3042 + $0x160] sm:$0xff]
    %v3088 = vld [vmem:[%s3042 + $0x168] sm:$0xff]
    %v3089 = vld [vmem:[%s3042 + $0x170] sm:$0xff]
    %v3090 = vld [vmem:[%s3042 + $0x178] sm:$0xff]
    %v3091 = vld [vmem:[%s3042 + $0x180] sm:$0xff]
    %v3092 = vld [vmem:[%s3042 + $0x188] sm:$0xff]
    %v3093 = vld [vmem:[%s3042 + $0x190] sm:$0xff]
    %v3094 = vld [vmem:[%s3042 + $0x198] sm:$0xff]
    %v3095 = vld [vmem:[%s3042 + $0x1a0] sm:$0xff]
    %v3096 = vld [vmem:[%s3042 + $0x1a8] sm:$0xff]
    %v3097 = vld [vmem:[%s3042 + $0x1b0] sm:$0xff]
    %v3098 = vld [vmem:[%s3042 + $0x1b8] sm:$0xff]
    %v3099 = vld [vmem:[%s3042 + $0x1c0] sm:$0xff]
    %v3100 = vld [vmem:[%s3042 + $0x1c8] sm:$0xff]
    %v3101 = vld [vmem:[%s3042 + $0x1d0] sm:$0xff]
    %v3102 = vld [vmem:[%s3042 + $0x1d8] sm:$0xff]
    %v3103 = vld [vmem:[%s3042 + $0x1e0] sm:$0xff]
    %v3104 = vld [vmem:[%s3042 + $0x1e8] sm:$0xff]
    %v3105 = vld [vmem:[%s3042 + $0x1f0] sm:$0xff]
    %v3106 = vld [vmem:[%s3042 + $0x1f8] sm:$0xff]
    %s3107 = scalar_lea.vmem %s9, 4
    %v3108 = vld [vmem:[%s3107] sm:$0x3]
    %v3110 = vlaneseq
    %v3111 = vshrl.u32 %v3110, 7
    %v3112 = vsub.s32 0, %v3111
    %v3113 = vrot.slane %v3108, %v3112
    %v3114 = vlaneseq
    %v3115 = vshrl.u32 %v3114, 7
    %v3116 = vsub.s32 1, %v3115
    %v3117 = vrot.slane %v3108, %v3116
    %3120 = vmatprep.subr.mxu0 %v3074
    %3121 = vmatpush1.msra.mxu0 %v3073
    %3122 = vmatprep.subr.mxu0 %v3072
    %3123 = vmatpush1.msra.mxu0 %v3071
    %3124 = vmatprep.subr.mxu0 %v3070
    %3125 = vmatpush1.msra.mxu0 %v3069
    %3126 = vmatprep.subr.mxu0 %v3068
    %3127 = vmatpush1.msra.mxu0 %v3067
    %3128 = vmatprep.subr.mxu0 %v3066
    %3129 = vmatpush1.msra.mxu0 %v3065
    %3130 = vmatprep.subr.mxu0 %v3064
    %3131 = vmatpush1.msra.mxu0 %v3063
    %3132 = vmatprep.subr.mxu0 %v3062
    %3133 = vmatpush1.msra.mxu0 %v3061
    %3134 = vmatprep.subr.mxu0 %v3060
    %3135 = vmatpush1.msra.mxu0 %v3059
    %3136 = vmatprep.subr.mxu0 %v3058
    %3137 = vmatpush1.msra.mxu0 %v3057
    %3138 = vmatprep.subr.mxu0 %v3056
    %3139 = vmatpush1.msra.mxu0 %v3055
    %3140 = vmatprep.subr.mxu0 %v3054
    %3141 = vmatpush1.msra.mxu0 %v3053
    %3142 = vmatprep.subr.mxu0 %v3052
    %3143 = vmatpush1.msra.mxu0 %v3051
    %3144 = vmatprep.subr.mxu0 %v3050
    %3145 = vmatpush1.msra.mxu0 %v3049
    %3146 = vmatprep.subr.mxu0 %v3048
    %3147 = vmatpush1.msra.mxu0 %v3047
    %3148 = vmatprep.subr.mxu0 %v3046
    %3149 = vmatpush1.msra.mxu0 %v3045
    %3150 = vmatprep.subr.mxu0 %v3044
    %3151 = vmatpush1.msra.mxu0 %v3043
    %3152 = vmatprep.subr.mxu0 %v3106
    %3153 = vmatpush2.msra.mxu0 %v3105
    %3154 = vmatprep.subr.mxu0 %v3104
    %3155 = vmatpush2.msra.mxu0 %v3103
    %3156 = vmatprep.subr.mxu0 %v3102
    %3157 = vmatpush2.msra.mxu0 %v3101
    %3158 = vmatprep.subr.mxu0 %v3100
    %3159 = vmatpush2.msra.mxu0 %v3099
    %3160 = vmatprep.subr.mxu0 %v3098
    %3161 = vmatpush2.msra.mxu0 %v3097
    %3162 = vmatprep.subr.mxu0 %v3096
    %3163 = vmatpush2.msra.mxu0 %v3095
    %3164 = vmatprep.subr.mxu0 %v3094
    %3165 = vmatpush2.msra.mxu0 %v3093
    %3166 = vmatprep.subr.mxu0 %v3092
    %3167 = vmatpush2.msra.mxu0 %v3091
    %3168 = vmatprep.subr.mxu0 %v3090
    %3169 = vmatpush2.msra.mxu0 %v3089
    %3170 = vmatprep.subr.mxu0 %v3088
    %3171 = vmatpush2.msra.mxu0 %v3087
    %3172 = vmatprep.subr.mxu0 %v3086
    %3173 = vmatpush2.msra.mxu0 %v3085
    %3174 = vmatprep.subr.mxu0 %v3084
    %3175 = vmatpush2.msra.mxu0 %v3083
    %3176 = vmatprep.subr.mxu0 %v3082
    %3177 = vmatpush2.msra.mxu0 %v3081
    %3178 = vmatprep.subr.mxu0 %v3080
    %3179 = vmatpush2.msra.mxu0 %v3079
    %3180 = vmatprep.subr.mxu0 %v3078
    %3181 = vmatpush2.msra.mxu0 %v3077
    %3182 = vmatprep.subr.mxu0 %v3076
    %3183 = vmatpush2.msra.mxu0 %v3075
    %3184 = vmatprep.mubr.f32.mxu0 %v767
    %3185 = vmatmul.mubr.f32.gmra.mxu0 %v766
    %v3186 = vpop.f32.mrf.mxu0
    %v3187 = vadd.f32 %v3113, %v3186
    %v3188 = vpop.f32.mrf.mxu0
    %v3189 = vadd.f32 %v3117, %v3188
    %3190 = vdwg.mxu0
    %3191 = vmatprep.subr.mxu0 %v946
    %3192 = vmatpush1.msra.mxu0 %v945
    %3193 = vmatprep.subr.mxu0 %v944
    %3194 = vmatpush1.msra.mxu0 %v943
    %3195 = vmatprep.subr.mxu0 %v942
    %3196 = vmatpush1.msra.mxu0 %v941
    %3197 = vmatprep.subr.mxu0 %v940
    %3198 = vmatpush1.msra.mxu0 %v939
    %3199 = vmatprep.subr.mxu0 %v938
    %3200 = vmatpush1.msra.mxu0 %v937
    %3201 = vmatprep.subr.mxu0 %v936
    %3202 = vmatpush1.msra.mxu0 %v935
    %3203 = vmatprep.subr.mxu0 %v934
    %3204 = vmatpush1.msra.mxu0 %v933
    %3205 = vmatprep.subr.mxu0 %v932
    %3206 = vmatpush1.msra.mxu0 %v931
    %3207 = vmatprep.subr.mxu0 %v930
    %3208 = vmatpush1.msra.mxu0 %v929
    %3209 = vmatprep.subr.mxu0 %v928
    %3210 = vmatpush1.msra.mxu0 %v927
    %3211 = vmatprep.subr.mxu0 %v926
    %3212 = vmatpush1.msra.mxu0 %v925
    %3213 = vmatprep.subr.mxu0 %v924
    %3214 = vmatpush1.msra.mxu0 %v923
    %3215 = vmatprep.subr.mxu0 %v922
    %3216 = vmatpush1.msra.mxu0 %v921
    %3217 = vmatprep.subr.mxu0 %v920
    %3218 = vmatpush1.msra.mxu0 %v919
    %3219 = vmatprep.subr.mxu0 %v918
    %3220 = vmatpush1.msra.mxu0 %v917
    %3221 = vmatprep.subr.mxu0 %v916
    %3222 = vmatpush1.msra.mxu0 %v915
    %3223 = vmatprep.subr.mxu0 %v978
    %3224 = vmatpush2.msra.mxu0 %v977
    %3225 = vmatprep.subr.mxu0 %v976
    %3226 = vmatpush2.msra.mxu0 %v975
    %3227 = vmatprep.subr.mxu0 %v974
    %3228 = vmatpush2.msra.mxu0 %v973
    %3229 = vmatprep.subr.mxu0 %v972
    %3230 = vmatpush2.msra.mxu0 %v971
    %3231 = vmatprep.subr.mxu0 %v970
    %3232 = vmatpush2.msra.mxu0 %v969
    %3233 = vmatprep.subr.mxu0 %v968
    %3234 = vmatpush2.msra.mxu0 %v967
    %3235 = vmatprep.subr.mxu0 %v966
    %3236 = vmatpush2.msra.mxu0 %v965
    %3237 = vmatprep.subr.mxu0 %v964
    %3238 = vmatpush2.msra.mxu0 %v963
    %3239 = vmatprep.subr.mxu0 %v962
    %3240 = vmatpush2.msra.mxu0 %v961
    %3241 = vmatprep.subr.mxu0 %v960
    %3242 = vmatpush2.msra.mxu0 %v959
    %3243 = vmatprep.subr.mxu0 %v958
    %3244 = vmatpush2.msra.mxu0 %v957
    %3245 = vmatprep.subr.mxu0 %v956
    %3246 = vmatpush2.msra.mxu0 %v955
    %3247 = vmatprep.subr.mxu0 %v954
    %3248 = vmatpush2.msra.mxu0 %v953
    %3249 = vmatprep.subr.mxu0 %v952
    %3250 = vmatpush2.msra.mxu0 %v951
    %3251 = vmatprep.subr.mxu0 %v950
    %3252 = vmatpush2.msra.mxu0 %v949
    %3253 = vmatprep.subr.mxu0 %v948
    %3254 = vmatpush2.msra.mxu0 %v947
    %3255 = vmatprep.mubr.f32.mxu0 %v3189
    %3256 = vmatmul.mubr.f32.gmra.mxu0 %v3187
    %v3257 = vpop.f32.mrf.mxu0
    %v3258 = vadd.f32 0.0, %v3257
    %v3259 = vpop.f32.mrf.mxu0
    %v3260 = vadd.f32 0.0, %v3259
    %3261 = vdwg.mxu0
    %v3262 = vsel %vm625, %v3258, 0.0
    %v3263 = vrot.slane %v3262, 4
    %v3264 = vadd.f32 %v3262, %v3263
    %v3265 = vrot.slane %v3264, 2
    %v3266 = vadd.f32 %v3264, %v3265
    %v3267 = vrot.slane %v3266, 1
    %v3268 = vadd.f32 %v3266, %v3267
    %v3269 = vsel %vm625, %v3260, 0.0
    %v3270 = vrot.slane %v3269, 4
    %v3271 = vadd.f32 %v3269, %v3270
    %v3272 = vrot.slane %v3271, 2
    %v3273 = vadd.f32 %v3271, %v3272
    %v3274 = vrot.slane %v3273, 1
    %v3275 = vadd.f32 %v3273, %v3274
    %v3276 = vmul.f32 %v3268, %v640
    %v3277 = vmul.f32 %v3275, %v640
    %v3278 = vsub.f32 %v3187, %v3276
    %v3279 = vsub.f32 %v3189, %v3277
    %v3280 = vmul.f32 %v3278, %v3278
    %v3281 = vmul.f32 %v3279, %v3279
    %3282 = vmatprep.subr.mxu0 %v946
    %3283 = vmatpush1.msra.mxu0 %v945
    %3284 = vmatprep.subr.mxu0 %v944
    %3285 = vmatpush1.msra.mxu0 %v943
    %3286 = vmatprep.subr.mxu0 %v942
    %3287 = vmatpush1.msra.mxu0 %v941
    %3288 = vmatprep.subr.mxu0 %v940
    %3289 = vmatpush1.msra.mxu0 %v939
    %3290 = vmatprep.subr.mxu0 %v938
    %3291 = vmatpush1.msra.mxu0 %v937
    %3292 = vmatprep.subr.mxu0 %v936
    %3293 = vmatpush1.msra.mxu0 %v935
    %3294 = vmatprep.subr.mxu0 %v934
    %3295 = vmatpush1.msra.mxu0 %v933
    %3296 = vmatprep.subr.mxu0 %v932
    %3297 = vmatpush1.msra.mxu0 %v931
    %3298 = vmatprep.subr.mxu0 %v930
    %3299 = vmatpush1.msra.mxu0 %v929
    %3300 = vmatprep.subr.mxu0 %v928
    %3301 = vmatpush1.msra.mxu0 %v927
    %3302 = vmatprep.subr.mxu0 %v926
    %3303 = vmatpush1.msra.mxu0 %v925
    %3304 = vmatprep.subr.mxu0 %v924
    %3305 = vmatpush1.msra.mxu0 %v923
    %3306 = vmatprep.subr.mxu0 %v922
    %3307 = vmatpush1.msra.mxu0 %v921
    %3308 = vmatprep.subr.mxu0 %v920
    %3309 = vmatpush1.msra.mxu0 %v919
    %3310 = vmatprep.subr.mxu0 %v918
    %3311 = vmatpush1.msra.mxu0 %v917
    %3312 = vmatprep.subr.mxu0 %v916
    %3313 = vmatpush1.msra.mxu0 %v915
    %3314 = vmatprep.subr.mxu0 %v978
    %3315 = vmatpush2.msra.mxu0 %v977
    %3316 = vmatprep.subr.mxu0 %v976
    %3317 = vmatpush2.msra.mxu0 %v975
    %3318 = vmatprep.subr.mxu0 %v974
    %3319 = vmatpush2.msra.mxu0 %v973
    %3320 = vmatprep.subr.mxu0 %v972
    %3321 = vmatpush2.msra.mxu0 %v971
    %3322 = vmatprep.subr.mxu0 %v970
    %3323 = vmatpush2.msra.mxu0 %v969
    %3324 = vmatprep.subr.mxu0 %v968
    %3325 = vmatpush2.msra.mxu0 %v967
    %3326 = vmatprep.subr.mxu0 %v966
    %3327 = vmatpush2.msra.mxu0 %v965
    %3328 = vmatprep.subr.mxu0 %v964
    %3329 = vmatpush2.msra.mxu0 %v963
    %3330 = vmatprep.subr.mxu0 %v962
    %3331 = vmatpush2.msra.mxu0 %v961
    %3332 = vmatprep.subr.mxu0 %v960
    %3333 = vmatpush2.msra.mxu0 %v959
    %3334 = vmatprep.subr.mxu0 %v958
    %3335 = vmatpush2.msra.mxu0 %v957
    %3336 = vmatprep.subr.mxu0 %v956
    %3337 = vmatpush2.msra.mxu0 %v955
    %3338 = vmatprep.subr.mxu0 %v954
    %3339 = vmatpush2.msra.mxu0 %v953
    %3340 = vmatprep.subr.mxu0 %v952
    %3341 = vmatpush2.msra.mxu0 %v951
    %3342 = vmatprep.subr.mxu0 %v950
    %3343 = vmatpush2.msra.mxu0 %v949
    %3344 = vmatprep.subr.mxu0 %v948
    %3345 = vmatpush2.msra.mxu0 %v947
    %3346 = vmatprep.mubr.f32.mxu0 %v3281
    %3347 = vmatmul.mubr.f32.gmra.mxu0 %v3280
    %v3348 = vpop.f32.mrf.mxu0
    %v3349 = vadd.f32 0.0, %v3348
    %v3350 = vpop.f32.mrf.mxu0
    %v3351 = vadd.f32 0.0, %v3350
    %3352 = vdwg.mxu0
    %v3353 = vsel %vm625, %v3349, 0.0
    %v3354 = vrot.slane %v3353, 4
    %v3355 = vadd.f32 %v3353, %v3354
    %v3356 = vrot.slane %v3355, 2
    %v3357 = vadd.f32 %v3355, %v3356
    %v3358 = vrot.slane %v3357, 1
    %v3359 = vadd.f32 %v3357, %v3358
    %v3360 = vsel %vm625, %v3351, 0.0
    %v3361 = vrot.slane %v3360, 4
    %v3362 = vadd.f32 %v3360, %v3361
    %v3363 = vrot.slane %v3362, 2
    %v3364 = vadd.f32 %v3362, %v3363
    %v3365 = vrot.slane %v3364, 1
    %v3366 = vadd.f32 %v3364, %v3365
    %v3367 = vmul.f32 %v3359, %v640
    %v3368 = vmul.f32 %v3366, %v640
    %v3369 = vadd.f32 %v3367, 1e-05
    %v3370 = vadd.f32 %v3368, 1e-05
    %v3371 = vrsqrt.pop %v3369
    %v3372 = vrsqrt.pop %v3370
    %v3373 = vmul.f32 %v3278, %v3371
    %v3374 = vmul.f32 %v3279, %v3372
    %v3375 = vmul.f32 %v3373, %v1169
    %v3376 = vmul.f32 %v3374, %v1173
    %v3377 = vadd.f32 %v3375, %v1182
    %v3378 = vadd.f32 %v3376, %v1186
    %v3379 = vmax.f32 %v3377, 0.0
    %v3380 = vmax.f32 %v3378, 0.0
    %s3381 = scalar_lea.vmem [#allocation15], 1024
    %v3382 = vld [vmem:[%s3381] sm:$0xff]
    %v3383 = vld [vmem:[%s3381 + $0x8] sm:$0xff]
    %v3384 = vld [vmem:[%s3381 + $0x10] sm:$0xff]
    %v3385 = vld [vmem:[%s3381 + $0x18] sm:$0xff]
    %v3386 = vld [vmem:[%s3381 + $0x20] sm:$0xff]
    %v3387 = vld [vmem:[%s3381 + $0x28] sm:$0xff]
    %v3388 = vld [vmem:[%s3381 + $0x30] sm:$0xff]
    %v3389 = vld [vmem:[%s3381 + $0x38] sm:$0xff]
    %v3390 = vld [vmem:[%s3381 + $0x40] sm:$0xff]
    %v3391 = vld [vmem:[%s3381 + $0x48] sm:$0xff]
    %v3392 = vld [vmem:[%s3381 + $0x50] sm:$0xff]
    %v3393 = vld [vmem:[%s3381 + $0x58] sm:$0xff]
    %v3394 = vld [vmem:[%s3381 + $0x60] sm:$0xff]
    %v3395 = vld [vmem:[%s3381 + $0x68] sm:$0xff]
    %v3396 = vld [vmem:[%s3381 + $0x70] sm:$0xff]
    %v3397 = vld [vmem:[%s3381 + $0x78] sm:$0xff]
    %v3398 = vld [vmem:[%s3381 + $0x80] sm:$0xff]
    %v3399 = vld [vmem:[%s3381 + $0x88] sm:$0xff]
    %v3400 = vld [vmem:[%s3381 + $0x90] sm:$0xff]
    %v3401 = vld [vmem:[%s3381 + $0x98] sm:$0xff]
    %v3402 = vld [vmem:[%s3381 + $0xa0] sm:$0xff]
    %v3403 = vld [vmem:[%s3381 + $0xa8] sm:$0xff]
    %v3404 = vld [vmem:[%s3381 + $0xb0] sm:$0xff]
    %v3405 = vld [vmem:[%s3381 + $0xb8] sm:$0xff]
    %v3406 = vld [vmem:[%s3381 + $0xc0] sm:$0xff]
    %v3407 = vld [vmem:[%s3381 + $0xc8] sm:$0xff]
    %v3408 = vld [vmem:[%s3381 + $0xd0] sm:$0xff]
    %v3409 = vld [vmem:[%s3381 + $0xd8] sm:$0xff]
    %v3410 = vld [vmem:[%s3381 + $0xe0] sm:$0xff]
    %v3411 = vld [vmem:[%s3381 + $0xe8] sm:$0xff]
    %v3412 = vld [vmem:[%s3381 + $0xf0] sm:$0xff]
    %v3413 = vld [vmem:[%s3381 + $0xf8] sm:$0xff]
    %v3414 = vld [vmem:[%s3381 + $0x100] sm:$0xff]
    %v3415 = vld [vmem:[%s3381 + $0x108] sm:$0xff]
    %v3416 = vld [vmem:[%s3381 + $0x110] sm:$0xff]
    %v3417 = vld [vmem:[%s3381 + $0x118] sm:$0xff]
    %v3418 = vld [vmem:[%s3381 + $0x120] sm:$0xff]
    %v3419 = vld [vmem:[%s3381 + $0x128] sm:$0xff]
    %v3420 = vld [vmem:[%s3381 + $0x130] sm:$0xff]
    %v3421 = vld [vmem:[%s3381 + $0x138] sm:$0xff]
    %v3422 = vld [vmem:[%s3381 + $0x140] sm:$0xff]
    %v3423 = vld [vmem:[%s3381 + $0x148] sm:$0xff]
    %v3424 = vld [vmem:[%s3381 + $0x150] sm:$0xff]
    %v3425 = vld [vmem:[%s3381 + $0x158] sm:$0xff]
    %v3426 = vld [vmem:[%s3381 + $0x160] sm:$0xff]
    %v3427 = vld [vmem:[%s3381 + $0x168] sm:$0xff]
    %v3428 = vld [vmem:[%s3381 + $0x170] sm:$0xff]
    %v3429 = vld [vmem:[%s3381 + $0x178] sm:$0xff]
    %v3430 = vld [vmem:[%s3381 + $0x180] sm:$0xff]
    %v3431 = vld [vmem:[%s3381 + $0x188] sm:$0xff]
    %v3432 = vld [vmem:[%s3381 + $0x190] sm:$0xff]
    %v3433 = vld [vmem:[%s3381 + $0x198] sm:$0xff]
    %v3434 = vld [vmem:[%s3381 + $0x1a0] sm:$0xff]
    %v3435 = vld [vmem:[%s3381 + $0x1a8] sm:$0xff]
    %v3436 = vld [vmem:[%s3381 + $0x1b0] sm:$0xff]
    %v3437 = vld [vmem:[%s3381 + $0x1b8] sm:$0xff]
    %v3438 = vld [vmem:[%s3381 + $0x1c0] sm:$0xff]
    %v3439 = vld [vmem:[%s3381 + $0x1c8] sm:$0xff]
    %v3440 = vld [vmem:[%s3381 + $0x1d0] sm:$0xff]
    %v3441 = vld [vmem:[%s3381 + $0x1d8] sm:$0xff]
    %v3442 = vld [vmem:[%s3381 + $0x1e0] sm:$0xff]
    %v3443 = vld [vmem:[%s3381 + $0x1e8] sm:$0xff]
    %v3444 = vld [vmem:[%s3381 + $0x1f0] sm:$0xff]
    %v3445 = vld [vmem:[%s3381 + $0x1f8] sm:$0xff]
    %s3446 = scalar_lea.vmem [#allocation16], 4
    %v3447 = vld [vmem:[%s3446] sm:$0x3]
    %v3449 = vlaneseq
    %v3450 = vshrl.u32 %v3449, 7
    %v3451 = vsub.s32 0, %v3450
    %v3452 = vrot.slane %v3447, %v3451
    %v3453 = vlaneseq
    %v3454 = vshrl.u32 %v3453, 7
    %v3455 = vsub.s32 1, %v3454
    %v3456 = vrot.slane %v3447, %v3455
    %3459 = vmatprep.subr.mxu0 %v3413
    %3460 = vmatpush1.msra.mxu0 %v3412
    %3461 = vmatprep.subr.mxu0 %v3411
    %3462 = vmatpush1.msra.mxu0 %v3410
    %3463 = vmatprep.subr.mxu0 %v3409
    %3464 = vmatpush1.msra.mxu0 %v3408
    %3465 = vmatprep.subr.mxu0 %v3407
    %3466 = vmatpush1.msra.mxu0 %v3406
    %3467 = vmatprep.subr.mxu0 %v3405
    %3468 = vmatpush1.msra.mxu0 %v3404
    %3469 = vmatprep.subr.mxu0 %v3403
    %3470 = vmatpush1.msra.mxu0 %v3402
    %3471 = vmatprep.subr.mxu0 %v3401
    %3472 = vmatpush1.msra.mxu0 %v3400
    %3473 = vmatprep.subr.mxu0 %v3399
    %3474 = vmatpush1.msra.mxu0 %v3398
    %3475 = vmatprep.subr.mxu0 %v3397
    %3476 = vmatpush1.msra.mxu0 %v3396
    %3477 = vmatprep.subr.mxu0 %v3395
    %3478 = vmatpush1.msra.mxu0 %v3394
    %3479 = vmatprep.subr.mxu0 %v3393
    %3480 = vmatpush1.msra.mxu0 %v3392
    %3481 = vmatprep.subr.mxu0 %v3391
    %3482 = vmatpush1.msra.mxu0 %v3390
    %3483 = vmatprep.subr.mxu0 %v3389
    %3484 = vmatpush1.msra.mxu0 %v3388
    %3485 = vmatprep.subr.mxu0 %v3387
    %3486 = vmatpush1.msra.mxu0 %v3386
    %3487 = vmatprep.subr.mxu0 %v3385
    %3488 = vmatpush1.msra.mxu0 %v3384
    %3489 = vmatprep.subr.mxu0 %v3383
    %3490 = vmatpush1.msra.mxu0 %v3382
    %3491 = vmatprep.subr.mxu0 %v3445
    %3492 = vmatpush2.msra.mxu0 %v3444
    %3493 = vmatprep.subr.mxu0 %v3443
    %3494 = vmatpush2.msra.mxu0 %v3442
    %3495 = vmatprep.subr.mxu0 %v3441
    %3496 = vmatpush2.msra.mxu0 %v3440
    %3497 = vmatprep.subr.mxu0 %v3439
    %3498 = vmatpush2.msra.mxu0 %v3438
    %3499 = vmatprep.subr.mxu0 %v3437
    %3500 = vmatpush2.msra.mxu0 %v3436
    %3501 = vmatprep.subr.mxu0 %v3435
    %3502 = vmatpush2.msra.mxu0 %v3434
    %3503 = vmatprep.subr.mxu0 %v3433
    %3504 = vmatpush2.msra.mxu0 %v3432
    %3505 = vmatprep.subr.mxu0 %v3431
    %3506 = vmatpush2.msra.mxu0 %v3430
    %3507 = vmatprep.subr.mxu0 %v3429
    %3508 = vmatpush2.msra.mxu0 %v3428
    %3509 = vmatprep.subr.mxu0 %v3427
    %3510 = vmatpush2.msra.mxu0 %v3426
    %3511 = vmatprep.subr.mxu0 %v3425
    %3512 = vmatpush2.msra.mxu0 %v3424
    %3513 = vmatprep.subr.mxu0 %v3423
    %3514 = vmatpush2.msra.mxu0 %v3422
    %3515 = vmatprep.subr.mxu0 %v3421
    %3516 = vmatpush2.msra.mxu0 %v3420
    %3517 = vmatprep.subr.mxu0 %v3419
    %3518 = vmatpush2.msra.mxu0 %v3418
    %3519 = vmatprep.subr.mxu0 %v3417
    %3520 = vmatpush2.msra.mxu0 %v3416
    %3521 = vmatprep.subr.mxu0 %v3415
    %3522 = vmatpush2.msra.mxu0 %v3414
    %3523 = vmatprep.mubr.f32.mxu0 %v3380
    %3524 = vmatmul.mubr.f32.gmra.mxu0 %v3379
    %v3525 = vpop.f32.mrf.mxu0
    %v3526 = vadd.f32 %v3452, %v3525
    %v3527 = vpop.f32.mrf.mxu0
    %v3528 = vadd.f32 %v3456, %v3527
    %3529 = vdwg.mxu0
    %3530 = vmatprep.subr.mxu0 %v1371
    %3531 = vmatpush1.msra.mxu0 %v1370
    %3532 = vmatprep.subr.mxu0 %v1369
    %3533 = vmatpush1.msra.mxu0 %v1368
    %3534 = vmatprep.subr.mxu0 %v1367
    %3535 = vmatpush1.msra.mxu0 %v1366
    %3536 = vmatprep.subr.mxu0 %v1365
    %3537 = vmatpush1.msra.mxu0 %v1364
    %3538 = vmatprep.subr.mxu0 %v1363
    %3539 = vmatpush1.msra.mxu0 %v1362
    %3540 = vmatprep.subr.mxu0 %v1361
    %3541 = vmatpush1.msra.mxu0 %v1360
    %3542 = vmatprep.subr.mxu0 %v1359
    %3543 = vmatpush1.msra.mxu0 %v1358
    %3544 = vmatprep.subr.mxu0 %v1357
    %3545 = vmatpush1.msra.mxu0 %v1356
    %3546 = vmatprep.subr.mxu0 %v1355
    %3547 = vmatpush1.msra.mxu0 %v1354
    %3548 = vmatprep.subr.mxu0 %v1353
    %3549 = vmatpush1.msra.mxu0 %v1352
    %3550 = vmatprep.subr.mxu0 %v1351
    %3551 = vmatpush1.msra.mxu0 %v1350
    %3552 = vmatprep.subr.mxu0 %v1349
    %3553 = vmatpush1.msra.mxu0 %v1348
    %3554 = vmatprep.subr.mxu0 %v1347
    %3555 = vmatpush1.msra.mxu0 %v1346
    %3556 = vmatprep.subr.mxu0 %v1345
    %3557 = vmatpush1.msra.mxu0 %v1344
    %3558 = vmatprep.subr.mxu0 %v1343
    %3559 = vmatpush1.msra.mxu0 %v1342
    %3560 = vmatprep.subr.mxu0 %v1341
    %3561 = vmatpush1.msra.mxu0 %v1340
    %3562 = vmatprep.subr.mxu0 %v1403
    %3563 = vmatpush2.msra.mxu0 %v1402
    %3564 = vmatprep.subr.mxu0 %v1401
    %3565 = vmatpush2.msra.mxu0 %v1400
    %3566 = vmatprep.subr.mxu0 %v1399
    %3567 = vmatpush2.msra.mxu0 %v1398
    %3568 = vmatprep.subr.mxu0 %v1397
    %3569 = vmatpush2.msra.mxu0 %v1396
    %3570 = vmatprep.subr.mxu0 %v1395
    %3571 = vmatpush2.msra.mxu0 %v1394
    %3572 = vmatprep.subr.mxu0 %v1393
    %3573 = vmatpush2.msra.mxu0 %v1392
    %3574 = vmatprep.subr.mxu0 %v1391
    %3575 = vmatpush2.msra.mxu0 %v1390
    %3576 = vmatprep.subr.mxu0 %v1389
    %3577 = vmatpush2.msra.mxu0 %v1388
    %3578 = vmatprep.subr.mxu0 %v1387
    %3579 = vmatpush2.msra.mxu0 %v1386
    %3580 = vmatprep.subr.mxu0 %v1385
    %3581 = vmatpush2.msra.mxu0 %v1384
    %3582 = vmatprep.subr.mxu0 %v1383
    %3583 = vmatpush2.msra.mxu0 %v1382
    %3584 = vmatprep.subr.mxu0 %v1381
    %3585 = vmatpush2.msra.mxu0 %v1380
    %3586 = vmatprep.subr.mxu0 %v1379
    %3587 = vmatpush2.msra.mxu0 %v1378
    %3588 = vmatprep.subr.mxu0 %v1377
    %3589 = vmatpush2.msra.mxu0 %v1376
    %3590 = vmatprep.subr.mxu0 %v1375
    %3591 = vmatpush2.msra.mxu0 %v1374
    %3592 = vmatprep.subr.mxu0 %v1373
    %3593 = vmatpush2.msra.mxu0 %v1372
    %3594 = vmatprep.mubr.f32.mxu0 %v3528
    %3595 = vmatmul.mubr.f32.gmra.mxu0 %v3526
    %v3596 = vpop.f32.mrf.mxu0
    %v3597 = vadd.f32 0.0, %v3596
    %v3598 = vpop.f32.mrf.mxu0
    %v3599 = vadd.f32 0.0, %v3598
    %3600 = vdwg.mxu0
    %v3601 = vsel %vm625, %v3597, 0.0
    %v3602 = vrot.slane %v3601, 4
    %v3603 = vadd.f32 %v3601, %v3602
    %v3604 = vrot.slane %v3603, 2
    %v3605 = vadd.f32 %v3603, %v3604
    %v3606 = vrot.slane %v3605, 1
    %v3607 = vadd.f32 %v3605, %v3606
    %v3608 = vsel %vm625, %v3599, 0.0
    %v3609 = vrot.slane %v3608, 4
    %v3610 = vadd.f32 %v3608, %v3609
    %v3611 = vrot.slane %v3610, 2
    %v3612 = vadd.f32 %v3610, %v3611
    %v3613 = vrot.slane %v3612, 1
    %v3614 = vadd.f32 %v3612, %v3613
    %v3615 = vmul.f32 %v3607, %v640
    %v3616 = vmul.f32 %v3614, %v640
    %v3617 = vsub.f32 %v3526, %v3615
    %v3618 = vsub.f32 %v3528, %v3616
    %v3619 = vmul.f32 %v3617, %v3617
    %v3620 = vmul.f32 %v3618, %v3618
    %3621 = vmatprep.subr.mxu0 %v1371
    %3622 = vmatpush1.msra.mxu0 %v1370
    %3623 = vmatprep.subr.mxu0 %v1369
    %3624 = vmatpush1.msra.mxu0 %v1368
    %3625 = vmatprep.subr.mxu0 %v1367
    %3626 = vmatpush1.msra.mxu0 %v1366
    %3627 = vmatprep.subr.mxu0 %v1365
    %3628 = vmatpush1.msra.mxu0 %v1364
    %3629 = vmatprep.subr.mxu0 %v1363
    %3630 = vmatpush1.msra.mxu0 %v1362
    %3631 = vmatprep.subr.mxu0 %v1361
    %3632 = vmatpush1.msra.mxu0 %v1360
    %3633 = vmatprep.subr.mxu0 %v1359
    %3634 = vmatpush1.msra.mxu0 %v1358
    %3635 = vmatprep.subr.mxu0 %v1357
    %3636 = vmatpush1.msra.mxu0 %v1356
    %3637 = vmatprep.subr.mxu0 %v1355
    %3638 = vmatpush1.msra.mxu0 %v1354
    %3639 = vmatprep.subr.mxu0 %v1353
    %3640 = vmatpush1.msra.mxu0 %v1352
    %3641 = vmatprep.subr.mxu0 %v1351
    %3642 = vmatpush1.msra.mxu0 %v1350
    %3643 = vmatprep.subr.mxu0 %v1349
    %3644 = vmatpush1.msra.mxu0 %v1348
    %3645 = vmatprep.subr.mxu0 %v1347
    %3646 = vmatpush1.msra.mxu0 %v1346
    %3647 = vmatprep.subr.mxu0 %v1345
    %3648 = vmatpush1.msra.mxu0 %v1344
    %3649 = vmatprep.subr.mxu0 %v1343
    %3650 = vmatpush1.msra.mxu0 %v1342
    %3651 = vmatprep.subr.mxu0 %v1341
    %3652 = vmatpush1.msra.mxu0 %v1340
    %3653 = vmatprep.subr.mxu0 %v1403
    %3654 = vmatpush2.msra.mxu0 %v1402
    %3655 = vmatprep.subr.mxu0 %v1401
    %3656 = vmatpush2.msra.mxu0 %v1400
    %3657 = vmatprep.subr.mxu0 %v1399
    %3658 = vmatpush2.msra.mxu0 %v1398
    %3659 = vmatprep.subr.mxu0 %v1397
    %3660 = vmatpush2.msra.mxu0 %v1396
    %3661 = vmatprep.subr.mxu0 %v1395
    %3662 = vmatpush2.msra.mxu0 %v1394
    %3663 = vmatprep.subr.mxu0 %v1393
    %3664 = vmatpush2.msra.mxu0 %v1392
    %3665 = vmatprep.subr.mxu0 %v1391
    %3666 = vmatpush2.msra.mxu0 %v1390
    %3667 = vmatprep.subr.mxu0 %v1389
    %3668 = vmatpush2.msra.mxu0 %v1388
    %3669 = vmatprep.subr.mxu0 %v1387
    %3670 = vmatpush2.msra.mxu0 %v1386
    %3671 = vmatprep.subr.mxu0 %v1385
    %3672 = vmatpush2.msra.mxu0 %v1384
    %3673 = vmatprep.subr.mxu0 %v1383
    %3674 = vmatpush2.msra.mxu0 %v1382
    %3675 = vmatprep.subr.mxu0 %v1381
    %3676 = vmatpush2.msra.mxu0 %v1380
    %3677 = vmatprep.subr.mxu0 %v1379
    %3678 = vmatpush2.msra.mxu0 %v1378
    %3679 = vmatprep.subr.mxu0 %v1377
    %3680 = vmatpush2.msra.mxu0 %v1376
    %3681 = vmatprep.subr.mxu0 %v1375
    %3682 = vmatpush2.msra.mxu0 %v1374
    %3683 = vmatprep.subr.mxu0 %v1373
    %3684 = vmatpush2.msra.mxu0 %v1372
    %3685 = vmatprep.mubr.f32.mxu0 %v3620
    %3686 = vmatmul.mubr.f32.gmra.mxu0 %v3619
    %v3687 = vpop.f32.mrf.mxu0
    %v3688 = vadd.f32 0.0, %v3687
    %v3689 = vpop.f32.mrf.mxu0
    %v3690 = vadd.f32 0.0, %v3689
    %3691 = vdwg.mxu0
    %v3692 = vsel %vm625, %v3688, 0.0
    %v3693 = vrot.slane %v3692, 4
    %v3694 = vadd.f32 %v3692, %v3693
    %v3695 = vrot.slane %v3694, 2
    %v3696 = vadd.f32 %v3694, %v3695
    %v3697 = vrot.slane %v3696, 1
    %v3698 = vadd.f32 %v3696, %v3697
    %v3699 = vsel %vm625, %v3690, 0.0
    %v3700 = vrot.slane %v3699, 4
    %v3701 = vadd.f32 %v3699, %v3700
    %v3702 = vrot.slane %v3701, 2
    %v3703 = vadd.f32 %v3701, %v3702
    %v3704 = vrot.slane %v3703, 1
    %v3705 = vadd.f32 %v3703, %v3704
    %v3706 = vmul.f32 %v3698, %v640
    %v3707 = vmul.f32 %v3705, %v640
    %v3708 = vadd.f32 %v3706, 1e-05
    %v3709 = vadd.f32 %v3707, 1e-05
    %v3710 = vrsqrt.pop %v3708
    %v3711 = vrsqrt.pop %v3709
    %v3712 = vmul.f32 %v3617, %v3710
    %v3713 = vmul.f32 %v3618, %v3711
    %v3714 = vmul.f32 %v3712, %v1594
    %v3715 = vmul.f32 %v3713, %v1598
    %v3716 = vadd.f32 %v3714, %v1607
    %v3717 = vadd.f32 %v3715, %v1611
    %v3718 = vmax.f32 %v3716, 0.0
    %v3719 = vmax.f32 %v3717, 0.0
    %s3720 = scalar_lea.vmem %s18, 512
    %v3721 = vld [vmem:[%s3720] sm:$0xff]
    %v3722 = vld [vmem:[%s3720 + $0x8] sm:$0xff]
    %v3723 = vld [vmem:[%s3720 + $0x10] sm:$0xff]
    %v3724 = vld [vmem:[%s3720 + $0x18] sm:$0xff]
    %v3725 = vld [vmem:[%s3720 + $0x20] sm:$0xff]
    %v3726 = vld [vmem:[%s3720 + $0x28] sm:$0xff]
    %v3727 = vld [vmem:[%s3720 + $0x30] sm:$0xff]
    %v3728 = vld [vmem:[%s3720 + $0x38] sm:$0xff]
    %v3729 = vld [vmem:[%s3720 + $0x40] sm:$0xff]
    %v3730 = vld [vmem:[%s3720 + $0x48] sm:$0xff]
    %v3731 = vld [vmem:[%s3720 + $0x50] sm:$0xff]
    %v3732 = vld [vmem:[%s3720 + $0x58] sm:$0xff]
    %v3733 = vld [vmem:[%s3720 + $0x60] sm:$0xff]
    %v3734 = vld [vmem:[%s3720 + $0x68] sm:$0xff]
    %v3735 = vld [vmem:[%s3720 + $0x70] sm:$0xff]
    %v3736 = vld [vmem:[%s3720 + $0x78] sm:$0xff]
    %v3737 = vld [vmem:[%s3720 + $0x80] sm:$0xff]
    %v3738 = vld [vmem:[%s3720 + $0x88] sm:$0xff]
    %v3739 = vld [vmem:[%s3720 + $0x90] sm:$0xff]
    %v3740 = vld [vmem:[%s3720 + $0x98] sm:$0xff]
    %v3741 = vld [vmem:[%s3720 + $0xa0] sm:$0xff]
    %v3742 = vld [vmem:[%s3720 + $0xa8] sm:$0xff]
    %v3743 = vld [vmem:[%s3720 + $0xb0] sm:$0xff]
    %v3744 = vld [vmem:[%s3720 + $0xb8] sm:$0xff]
    %v3745 = vld [vmem:[%s3720 + $0xc0] sm:$0xff]
    %v3746 = vld [vmem:[%s3720 + $0xc8] sm:$0xff]
    %v3747 = vld [vmem:[%s3720 + $0xd0] sm:$0xff]
    %v3748 = vld [vmem:[%s3720 + $0xd8] sm:$0xff]
    %v3749 = vld [vmem:[%s3720 + $0xe0] sm:$0xff]
    %v3750 = vld [vmem:[%s3720 + $0xe8] sm:$0xff]
    %v3751 = vld [vmem:[%s3720 + $0xf0] sm:$0xff]
    %v3752 = vld [vmem:[%s3720 + $0xf8] sm:$0xff]
    %s3753 = scalar_lea.vmem %s19, 2
    %v3754 = vld [vmem:[%s3753] sm:$0x1]
    %v3756 = vlaneseq
    %v3757 = vshrl.u32 %v3756, 7
    %v3758 = vsub.s32 0, %v3757
    %v3759 = vrot.slane %v3754, %v3758
    %3761 = vmatprep.subr.mxu0 0.0
    %3762 = vmatpush1.msra.mxu0 %v3736
    %3763 = vmatprep.subr.mxu0 0.0
    %3764 = vmatpush1.msra.mxu0 %v3735
    %3765 = vmatprep.subr.mxu0 0.0
    %3766 = vmatpush1.msra.mxu0 %v3734
    %3767 = vmatprep.subr.mxu0 0.0
    %3768 = vmatpush1.msra.mxu0 %v3733
    %3769 = vmatprep.subr.mxu0 0.0
    %3770 = vmatpush1.msra.mxu0 %v3732
    %3771 = vmatprep.subr.mxu0 0.0
    %3772 = vmatpush1.msra.mxu0 %v3731
    %3773 = vmatprep.subr.mxu0 0.0
    %3774 = vmatpush1.msra.mxu0 %v3730
    %3775 = vmatprep.subr.mxu0 0.0
    %3776 = vmatpush1.msra.mxu0 %v3729
    %3777 = vmatprep.subr.mxu0 0.0
    %3778 = vmatpush1.msra.mxu0 %v3728
    %3779 = vmatprep.subr.mxu0 0.0
    %3780 = vmatpush1.msra.mxu0 %v3727
    %3781 = vmatprep.subr.mxu0 0.0
    %3782 = vmatpush1.msra.mxu0 %v3726
    %3783 = vmatprep.subr.mxu0 0.0
    %3784 = vmatpush1.msra.mxu0 %v3725
    %3785 = vmatprep.subr.mxu0 0.0
    %3786 = vmatpush1.msra.mxu0 %v3724
    %3787 = vmatprep.subr.mxu0 0.0
    %3788 = vmatpush1.msra.mxu0 %v3723
    %3789 = vmatprep.subr.mxu0 0.0
    %3790 = vmatpush1.msra.mxu0 %v3722
    %3791 = vmatprep.subr.mxu0 0.0
    %3792 = vmatpush1.msra.mxu0 %v3721
    %3793 = vmatprep.subr.mxu0 0.0
    %3794 = vmatpush2.msra.mxu0 %v3752
    %3795 = vmatprep.subr.mxu0 0.0
    %3796 = vmatpush2.msra.mxu0 %v3751
    %3797 = vmatprep.subr.mxu0 0.0
    %3798 = vmatpush2.msra.mxu0 %v3750
    %3799 = vmatprep.subr.mxu0 0.0
    %3800 = vmatpush2.msra.mxu0 %v3749
    %3801 = vmatprep.subr.mxu0 0.0
    %3802 = vmatpush2.msra.mxu0 %v3748
    %3803 = vmatprep.subr.mxu0 0.0
    %3804 = vmatpush2.msra.mxu0 %v3747
    %3805 = vmatprep.subr.mxu0 0.0
    %3806 = vmatpush2.msra.mxu0 %v3746
    %3807 = vmatprep.subr.mxu0 0.0
    %3808 = vmatpush2.msra.mxu0 %v3745
    %3809 = vmatprep.subr.mxu0 0.0
    %3810 = vmatpush2.msra.mxu0 %v3744
    %3811 = vmatprep.subr.mxu0 0.0
    %3812 = vmatpush2.msra.mxu0 %v3743
    %3813 = vmatprep.subr.mxu0 0.0
    %3814 = vmatpush2.msra.mxu0 %v3742
    %3815 = vmatprep.subr.mxu0 0.0
    %3816 = vmatpush2.msra.mxu0 %v3741
    %3817 = vmatprep.subr.mxu0 0.0
    %3818 = vmatpush2.msra.mxu0 %v3740
    %3819 = vmatprep.subr.mxu0 0.0
    %3820 = vmatpush2.msra.mxu0 %v3739
    %3821 = vmatprep.subr.mxu0 0.0
    %3822 = vmatpush2.msra.mxu0 %v3738
    %3823 = vmatprep.subr.mxu0 0.0
    %3824 = vmatpush2.msra.mxu0 %v3737
    %3825 = vmatprep.mubr.f32.mxu0 %v3719
    %3826 = vmatmul.mubr.f32.gmra.mxu0 %v3718
    %v3827 = vpop.f32.mrf.mxu0
    %v3828 = vadd.f32 %v3759, %v3827
    %v3829 = vpop.f32.mrf.mxu0
    %3830 = vdwg.mxu0
    %v3832 = vsel %vm413, %v3828, 0
    %3834 = vmatprep.subr.mxu0 0.0
    %3835 = vmatpush1.msra.mxu0 0.0
    %3836 = vmatprep.subr.mxu0 0.0
    %3837 = vmatpush1.msra.mxu0 0.0
    %3838 = vmatprep.subr.mxu0 0.0
    %3839 = vmatpush1.msra.mxu0 0.0
    %3840 = vmatprep.subr.mxu0 0.0
    %3841 = vmatpush1.msra.mxu0 0.0
    %3842 = vmatprep.subr.mxu0 0.0
    %3843 = vmatpush1.msra.mxu0 0.0
    %3844 = vmatprep.subr.mxu0 0.0
    %3845 = vmatpush1.msra.mxu0 0.0
    %3846 = vmatprep.subr.mxu0 0.0
    %3847 = vmatpush1.msra.mxu0 0.0
    %3848 = vmatprep.subr.mxu0 0.0
    %3849 = vmatpush1.msra.mxu0 0.0
    %3850 = vmatprep.subr.mxu0 0.0
    %3851 = vmatpush1.msra.mxu0 %v1734
    %3852 = vmatprep.subr.mxu0 0.0
    %3853 = vmatpush1.msra.mxu0 %v1733
    %3854 = vmatprep.subr.mxu0 0.0
    %3855 = vmatpush1.msra.mxu0 %v1732
    %3856 = vmatprep.subr.mxu0 0.0
    %3857 = vmatpush1.msra.mxu0 %v1731
    %3858 = vmatprep.subr.mxu0 0.0
    %3859 = vmatpush1.msra.mxu0 %v1730
    %3860 = vmatprep.subr.mxu0 0.0
    %3861 = vmatpush1.msra.mxu0 %v1729
    %3862 = vmatprep.subr.mxu0 0.0
    %3863 = vmatpush1.msra.mxu0 %v1728
    %3864 = vmatprep.subr.mxu0 0.0
    %3865 = vmatpush1.msra.mxu0 %v1727
    %3866 = vmatprep.subr.mxu0 0.0
    %3867 = vmatpush2.msra.mxu0 0.0
    %3868 = vmatprep.subr.mxu0 0.0
    %3869 = vmatpush2.msra.mxu0 0.0
    %3870 = vmatprep.subr.mxu0 0.0
    %3871 = vmatpush2.msra.mxu0 0.0
    %3872 = vmatprep.subr.mxu0 0.0
    %3873 = vmatpush2.msra.mxu0 0.0
    %3874 = vmatprep.subr.mxu0 0.0
    %3875 = vmatpush2.msra.mxu0 0.0
    %3876 = vmatprep.subr.mxu0 0.0
    %3877 = vmatpush2.msra.mxu0 0.0
    %3878 = vmatprep.subr.mxu0 0.0
    %3879 = vmatpush2.msra.mxu0 0.0
    %3880 = vmatprep.subr.mxu0 0.0
    %3881 = vmatpush2.msra.mxu0 0.0
    %3882 = vmatprep.subr.mxu0 0.0
    %3883 = vmatpush2.msra.mxu0 0.0
    %3884 = vmatprep.subr.mxu0 0.0
    %3885 = vmatpush2.msra.mxu0 0.0
    %3886 = vmatprep.subr.mxu0 0.0
    %3887 = vmatpush2.msra.mxu0 0.0
    %3888 = vmatprep.subr.mxu0 0.0
    %3889 = vmatpush2.msra.mxu0 0.0
    %3890 = vmatprep.subr.mxu0 0.0
    %3891 = vmatpush2.msra.mxu0 0.0
    %3892 = vmatprep.subr.mxu0 0.0
    %3893 = vmatpush2.msra.mxu0 0.0
    %3894 = vmatprep.subr.mxu0 0.0
    %3895 = vmatpush2.msra.mxu0 0.0
    %3896 = vmatprep.subr.mxu0 0.0
    %3897 = vmatpush2.msra.mxu0 0.0
    %3898 = vmatprep.mubr.f32.mxu0 0.0
    %3899 = vmatmul.mubr.f32.gmra.mxu0 %v3832
    %v3900 = vpop.f32.mrf.mxu0
    %v3901 = vadd.f32 0.0, %v3900
    %v3902 = vpop.f32.mrf.mxu0
    %3903 = vdwg.mxu0
    %v3904 = vsel %vm1810, %v3901, 0.0
    %v3905 = vrot.slane %v3904, 4
    %v3906 = vadd.f32 %v3904, %v3905
    %v3907 = vrot.slane %v3906, 2
    %v3908 = vadd.f32 %v3906, %v3907
    %v3909 = vrot.slane %v3908, 1
    %v3910 = vadd.f32 %v3908, %v3909
    %v3911 = vmul.f32 %v3910, %v640
    %v3912 = vsub.f32 %v3828, %v3911
    %v3913 = vmul.f32 %v3912, %v3912
    %v3915 = vsel %vm413, %v3913, 0
    %3917 = vmatprep.subr.mxu0 0.0
    %3918 = vmatpush1.msra.mxu0 0.0
    %3919 = vmatprep.subr.mxu0 0.0
    %3920 = vmatpush1.msra.mxu0 0.0
    %3921 = vmatprep.subr.mxu0 0.0
    %3922 = vmatpush1.msra.mxu0 0.0
    %3923 = vmatprep.subr.mxu0 0.0
    %3924 = vmatpush1.msra.mxu0 0.0
    %3925 = vmatprep.subr.mxu0 0.0
    %3926 = vmatpush1.msra.mxu0 0.0
    %3927 = vmatprep.subr.mxu0 0.0
    %3928 = vmatpush1.msra.mxu0 0.0
    %3929 = vmatprep.subr.mxu0 0.0
    %3930 = vmatpush1.msra.mxu0 0.0
    %3931 = vmatprep.subr.mxu0 0.0
    %3932 = vmatpush1.msra.mxu0 0.0
    %3933 = vmatprep.subr.mxu0 0.0
    %3934 = vmatpush1.msra.mxu0 %v1734
    %3935 = vmatprep.subr.mxu0 0.0
    %3936 = vmatpush1.msra.mxu0 %v1733
    %3937 = vmatprep.subr.mxu0 0.0
    %3938 = vmatpush1.msra.mxu0 %v1732
    %3939 = vmatprep.subr.mxu0 0.0
    %3940 = vmatpush1.msra.mxu0 %v1731
    %3941 = vmatprep.subr.mxu0 0.0
    %3942 = vmatpush1.msra.mxu0 %v1730
    %3943 = vmatprep.subr.mxu0 0.0
    %3944 = vmatpush1.msra.mxu0 %v1729
    %3945 = vmatprep.subr.mxu0 0.0
    %3946 = vmatpush1.msra.mxu0 %v1728
    %3947 = vmatprep.subr.mxu0 0.0
    %3948 = vmatpush1.msra.mxu0 %v1727
    %3949 = vmatprep.subr.mxu0 0.0
    %3950 = vmatpush2.msra.mxu0 0.0
    %3951 = vmatprep.subr.mxu0 0.0
    %3952 = vmatpush2.msra.mxu0 0.0
    %3953 = vmatprep.subr.mxu0 0.0
    %3954 = vmatpush2.msra.mxu0 0.0
    %3955 = vmatprep.subr.mxu0 0.0
    %3956 = vmatpush2.msra.mxu0 0.0
    %3957 = vmatprep.subr.mxu0 0.0
    %3958 = vmatpush2.msra.mxu0 0.0
    %3959 = vmatprep.subr.mxu0 0.0
    %3960 = vmatpush2.msra.mxu0 0.0
    %3961 = vmatprep.subr.mxu0 0.0
    %3962 = vmatpush2.msra.mxu0 0.0
    %3963 = vmatprep.subr.mxu0 0.0
    %3964 = vmatpush2.msra.mxu0 0.0
    %3965 = vmatprep.subr.mxu0 0.0
    %3966 = vmatpush2.msra.mxu0 0.0
    %3967 = vmatprep.subr.mxu0 0.0
    %3968 = vmatpush2.msra.mxu0 0.0
    %3969 = vmatprep.subr.mxu0 0.0
    %3970 = vmatpush2.msra.mxu0 0.0
    %3971 = vmatprep.subr.mxu0 0.0
    %3972 = vmatpush2.msra.mxu0 0.0
    %3973 = vmatprep.subr.mxu0 0.0
    %3974 = vmatpush2.msra.mxu0 0.0
    %3975 = vmatprep.subr.mxu0 0.0
    %3976 = vmatpush2.msra.mxu0 0.0
    %3977 = vmatprep.subr.mxu0 0.0
    %3978 = vmatpush2.msra.mxu0 0.0
    %3979 = vmatprep.subr.mxu0 0.0
    %3980 = vmatpush2.msra.mxu0 0.0
    %3981 = vmatprep.mubr.f32.mxu0 0.0
    %3982 = vmatmul.mubr.f32.gmra.mxu0 %v3915
    %v3983 = vpop.f32.mrf.mxu0
    %v3984 = vadd.f32 0.0, %v3983
    %v3985 = vpop.f32.mrf.mxu0
    %3986 = vdwg.mxu0
    %v3987 = vsel %vm1810, %v3984, 0.0
    %v3988 = vrot.slane %v3987, 4
    %v3989 = vadd.f32 %v3987, %v3988
    %v3990 = vrot.slane %v3989, 2
    %v3991 = vadd.f32 %v3989, %v3990
    %v3992 = vrot.slane %v3991, 1
    %v3993 = vadd.f32 %v3991, %v3992
    %v3994 = vmul.f32 %v3993, %v640
    %v3995 = vadd.f32 %v3994, 1e-05
    %v3996 = vrsqrt.pop %v3995
    %v3997 = vmul.f32 %v3912, %v3996
    %v3998 = vmul.f32 %v3997, %v1909
    %v3999 = vadd.f32 %v3998, %v1916
    %v4000 = vmax.f32 %v3999, 0.0
    %s4001 = scalar_lea.vmem [#allocation27], 128
    %v4002 = vld [vmem:[%s4001] sm:$0xff]
    %v4003 = vld [vmem:[%s4001 + $0x8] sm:$0xff]
    %v4004 = vld [vmem:[%s4001 + $0x10] sm:$0xff]
    %v4005 = vld [vmem:[%s4001 + $0x18] sm:$0xff]
    %v4006 = vld [vmem:[%s4001 + $0x20] sm:$0xff]
    %v4007 = vld [vmem:[%s4001 + $0x28] sm:$0xff]
    %v4008 = vld [vmem:[%s4001 + $0x30] sm:$0xff]
    %v4009 = vld [vmem:[%s4001 + $0x38] sm:$0xff]
    %v4011 = vsel %vm413, %v4000, 0
    %4013 = vmatprep.subr.mxu0 0.0
    %4014 = vmatpush1.msra.mxu0 0.0
    %4015 = vmatprep.subr.mxu0 0.0
    %4016 = vmatpush1.msra.mxu0 0.0
    %4017 = vmatprep.subr.mxu0 0.0
    %4018 = vmatpush1.msra.mxu0 0.0
    %4019 = vmatprep.subr.mxu0 0.0
    %4020 = vmatpush1.msra.mxu0 0.0
    %4021 = vmatprep.subr.mxu0 0.0
    %4022 = vmatpush1.msra.mxu0 0.0
    %4023 = vmatprep.subr.mxu0 0.0
    %4024 = vmatpush1.msra.mxu0 0.0
    %4025 = vmatprep.subr.mxu0 0.0
    %4026 = vmatpush1.msra.mxu0 0.0
    %4027 = vmatprep.subr.mxu0 0.0
    %4028 = vmatpush1.msra.mxu0 0.0
    %4029 = vmatprep.subr.mxu0 0.0
    %4030 = vmatpush1.msra.mxu0 %v4009
    %4031 = vmatprep.subr.mxu0 0.0
    %4032 = vmatpush1.msra.mxu0 %v4008
    %4033 = vmatprep.subr.mxu0 0.0
    %4034 = vmatpush1.msra.mxu0 %v4007
    %4035 = vmatprep.subr.mxu0 0.0
    %4036 = vmatpush1.msra.mxu0 %v4006
    %4037 = vmatprep.subr.mxu0 0.0
    %4038 = vmatpush1.msra.mxu0 %v4005
    %4039 = vmatprep.subr.mxu0 0.0
    %4040 = vmatpush1.msra.mxu0 %v4004
    %4041 = vmatprep.subr.mxu0 0.0
    %4042 = vmatpush1.msra.mxu0 %v4003
    %4043 = vmatprep.subr.mxu0 0.0
    %4044 = vmatpush1.msra.mxu0 %v4002
    %4045 = vmatprep.subr.mxu0 0.0
    %4046 = vmatpush2.msra.mxu0 0.0
    %4047 = vmatprep.subr.mxu0 0.0
    %4048 = vmatpush2.msra.mxu0 0.0
    %4049 = vmatprep.subr.mxu0 0.0
    %4050 = vmatpush2.msra.mxu0 0.0
    %4051 = vmatprep.subr.mxu0 0.0
    %4052 = vmatpush2.msra.mxu0 0.0
    %4053 = vmatprep.subr.mxu0 0.0
    %4054 = vmatpush2.msra.mxu0 0.0
    %4055 = vmatprep.subr.mxu0 0.0
    %4056 = vmatpush2.msra.mxu0 0.0
    %4057 = vmatprep.subr.mxu0 0.0
    %4058 = vmatpush2.msra.mxu0 0.0
    %4059 = vmatprep.subr.mxu0 0.0
    %4060 = vmatpush2.msra.mxu0 0.0
    %4061 = vmatprep.subr.mxu0 0.0
    %4062 = vmatpush2.msra.mxu0 0.0
    %4063 = vmatprep.subr.mxu0 0.0
    %4064 = vmatpush2.msra.mxu0 0.0
    %4065 = vmatprep.subr.mxu0 0.0
    %4066 = vmatpush2.msra.mxu0 0.0
    %4067 = vmatprep.subr.mxu0 0.0
    %4068 = vmatpush2.msra.mxu0 0.0
    %4069 = vmatprep.subr.mxu0 0.0
    %4070 = vmatpush2.msra.mxu0 0.0
    %4071 = vmatprep.subr.mxu0 0.0
    %4072 = vmatpush2.msra.mxu0 0.0
    %4073 = vmatprep.subr.mxu0 0.0
    %4074 = vmatpush2.msra.mxu0 0.0
    %4075 = vmatprep.subr.mxu0 0.0
    %4076 = vmatpush2.msra.mxu0 0.0
    %4077 = vmatprep.mubr.f32.mxu0 0.0
    %4078 = vmatmul.mubr.f32.gmra.mxu0 %v4011
    %v4079 = vpop.f32.mrf.mxu0
    %v4080 = vadd.f32 0.0, %v4079
    %v4081 = vpop.f32.mrf.mxu0
    %4082 = vdwg.mxu0
    %v4083 = vadd.f32 %v3039, %v4080
    %v4084 = vld [vmem:[#allocation28] sm:$0x1]
    %v4086 = vlaneseq
    %v4087 = vshrl.u32 %v4086, 7
    %v4088 = vsub.s32 0, %v4087
    %v4089 = vrot.slane %v4084, %v4088
    %v4091 = vadd.f32 %v4083, %v4089
    %v4092 = vxor.u32 %v4091, 2147483648
    %v4093 = vmul.f32 %v4092, 1.442695
    %v4094 = vpow.pop %v4093
    %v4095 = vadd.f32 %v4094, 1.0
    %v4096 = vrcp.pop %v4095
    %v4097 = vmul.f32 1.0, %v4096
    %4098 = vst [vmem:[%s25] sm:$0x3] %v4097
    // Predicated region
    $region174: #{decoder_forward.1} parent=1 // pred_check
      _
    $region175: #{decoder_forward.1} parent=1 // pred_check_branch
      %4100 = sbr.rel (0) target = $region177
    $region176: #{decoder_forward.1} parent=1 // pred_region
      _
    $region177: #{decoder_forward.1} parent=1 // pred_fallthru
      _
    // Predicated region
    $region178: #{decoder_forward.1} parent=1 // pred_check
      _
    $region179: #{decoder_forward.1} parent=1 // pred_check_branch
      %4102 = sbr.rel (0) target = $region181
    $region180: #{decoder_forward.1} parent=1 // pred_region
      _
    $region181: #{decoder_forward.1} parent=1 // pred_fallthru
      _
    %4103 = vsyncpa [#allocation3], 1
    %4104 = vsyncpa [#allocation5], 1
    %4105 = vsyncpa [#allocation8], 1
    %4106 = vsyncpa [#allocation11], 1
    %4107 = vsyncpa [#allocation14], 1
    %4108 = vsyncpa [#allocation17], 1
    %4109 = vsyncpa [#allocation20], 1
    %4110 = vsyncpa [#allocation23], 1
    %4111 = vsyncpa [#allocation26], 1
    %4112 = vsyncpa [#allocation29], 1

</llo_original>
